<compile_context>
chip_gen: v6e
topology: v6e:2x2x1
jax: 0.10.0
libtpu: 0.0.40
codegen_flags: <defaults>
</compile_context>

<pallas_src>
import functools

import jax
import jax.numpy as jnp
import numpy as np
from jax import lax
from jax.experimental import pallas as pl
from jax.experimental.pallas import tpu as pltpu

EPS = 1e-5


def fused_kernel(x_ref, g1_ref, b1_ref, w1_ref, g2_ref, b2_ref, ws_ref,
                 mask_ref, o_ref, y2p_ref, *, W, C3, P, PP):
    # x_ref: (C1, P) channel-major activations
    # g1/b1: (C1, 1), w1: (C2, C1), g2/b2: (C2, 1), ws: (9*C3, C2)
    # mask_ref: (9, PP) per-tap validity masks, o_ref: (C3, PP)
    # y2p_ref: VMEM (C2, PP) lane-dense padded slab feeding the 3x3-tap matmul
    inv_p = 1.0 / P

    # ---- BN1 (training-mode batch stats, folded scale/bias) + ReLU ----
    x = x_ref[...]                                    # (C1, P)
    s1 = jnp.sum(x, axis=1, keepdims=True)
    s2 = jnp.sum(x * x, axis=1, keepdims=True)
    mean1 = s1 * inv_p
    var1 = s2 * inv_p - mean1 * mean1
    a1 = g1_ref[...] * lax.rsqrt(var1 + EPS)          # (C1, 1)
    c1 = b1_ref[...] - mean1 * a1
    y1 = jnp.maximum(x * a1 + c1, 0.0)                # (C1, P)

    # ---- 1x1 conv as one MXU matmul ----
    h1 = jnp.dot(w1_ref[...], y1,
                 preferred_element_type=jnp.float32)  # (C2, P)

    # ---- BN2 + ReLU ----
    t1 = jnp.sum(h1, axis=1, keepdims=True)
    t2 = jnp.sum(h1 * h1, axis=1, keepdims=True)
    mean2 = t1 * inv_p
    var2 = t2 * inv_p - mean2 * mean2
    a2 = g2_ref[...] * lax.rsqrt(var2 + EPS)
    c2 = b2_ref[...] - mean2 * a2
    y2 = jnp.maximum(h1 * a2 + c2, 0.0)               # (C2, P)

    # ---- lane-dense padded slab (C2, PP): zero tail, aligned interior write --
    y2p_ref[...] = jnp.zeros_like(y2p_ref)
    y2p_ref[:, :P] = y2

    # ---- ALL 9 conv taps in one wide matmul: (9*C3, C2) @ (C2, PP) ----
    # Single dot => the stationary (C2, PP) operand is pushed to the MXU once.
    r = jnp.dot(ws_ref[...], y2p_ref[...],
                preferred_element_type=jnp.float32)   # (9*C3, PP)

    # ---- combine taps: vreg-aligned row slice + XLU lane roll + masked add --
    masks = mask_ref[...]                             # (9, PP)
    # Centre tap (kh=1, kw=1): shift 0 and mask==1 on every valid lane, and its
    # padded lanes are exactly 0 (zero columns of y2p) -> use it to seed acc.
    acc = r[4 * C3:5 * C3, :]
    for kh in range(3):
        for kw in range(3):
            tap = kh * 3 + kw
            if tap == 4:
                continue
            shift = (kh - 1) * W + (kw - 1)           # spatial lane shift
            r_tap = r[tap * C3:(tap + 1) * C3, :]     # (C3, PP), 8-row aligned
            r_tap = pltpu.roll(r_tap, (-shift) % PP, 1)
            acc = acc + r_tap * masks[tap:tap + 1, :]
    o_ref[...] = acc


@jax.jit
def model_forward(x_nchw, params):
    N, C1, H, W = x_nchw.shape
    assert N == 1, "kernel specialized for the module's batch size of 1"
    # TODO(synk): for N > 1 the lane rolls/masks must be made batch-aware so
    # taps do not bleed across images.
    w1 = params["w1"]              # (C2, C1, 1, 1) OIHW
    w2 = params["w2"]              # (C3, C2, 3, 3) OIHW
    C2, C3 = w1.shape[0], w2.shape[0]
    P = N * H * W
    PP = ((P + 127) // 128) * 128  # lane-dense padded spatial extent (256)

    # Free reshape NCHW(N=1) -> channel-major (C1, P). No activation transposes.
    x_cm = x_nchw.reshape(C1, P)
    w1m = w1[:, :, 0, 0]                                       # (C2, C1)
    ws = jnp.transpose(w2, (2, 3, 0, 1)).reshape(9 * C3, C2)   # tap-stacked
    g1 = params["gamma1"].reshape(C1, 1)
    b1 = params["beta1"].reshape(C1, 1)
    g2 = params["gamma2"].reshape(C2, 1)
    b2 = params["beta2"].reshape(C2, 1)

    # Per-tap validity masks of the 3x3/pad=1 conv in flattened spatial space
    # (host-side numpy constant, folded into the jaxpr).
    ii, jj = np.meshgrid(np.arange(H), np.arange(W), indexing="ij")
    masks = np.zeros((9, PP), np.float32)
    for kh in range(3):
        for kw in range(3):
            valid = ((ii + kh - 1 >= 0) & (ii + kh - 1 < H) &
                     (jj + kw - 1 >= 0) & (jj + kw - 1 < W))
            masks[kh * 3 + kw, :P] = valid.reshape(-1).astype(np.float32)
    masks = jnp.asarray(masks)

    kernel = functools.partial(fused_kernel, W=W, C3=C3, P=P, PP=PP)
    out_pp = pl.pallas_call(
        kernel,
        out_shape=jax.ShapeDtypeStruct((C3, PP), jnp.float32),
        grid=(1,),
        in_specs=[
            pl.BlockSpec((C1, P), lambda i: (0, 0)),
            pl.BlockSpec((C1, 1), lambda i: (0, 0)),
            pl.BlockSpec((C1, 1), lambda i: (0, 0)),
            pl.BlockSpec((C2, C1), lambda i: (0, 0)),
            pl.BlockSpec((C2, 1), lambda i: (0, 0)),
            pl.BlockSpec((C2, 1), lambda i: (0, 0)),
            pl.BlockSpec((9 * C3, C2), lambda i: (0, 0)),
            pl.BlockSpec((9, PP), lambda i: (0, 0)),
        ],
        out_specs=pl.BlockSpec((C3, PP), lambda i: (0, 0)),
        scratch_shapes=[
            pltpu.VMEM((C2, PP), jnp.float32),        # padded y2 slab
        ],
        compiler_params=pltpu.CompilerParams(
            dimension_semantics=("arbitrary",)),
    )(x_cm, g1, b1, w1m, g2, b2, ws, masks)

    # Valid columns -> NCHW (pure slice + reshape, no transpose).
    return out_pp[:, :P].reshape(N, C3, H, W)


def reference_forward(x, params):
    # Pure-JAX NCHW reference with the same training-mode BN semantics.
    def bn(v, g, b):
        mean = jnp.mean(v, axis=(0, 2, 3), keepdims=True)
        var = jnp.mean((v - mean) ** 2, axis=(0, 2, 3), keepdims=True)
        return (v - mean) * lax.rsqrt(var + EPS) * g.reshape(1, -1, 1, 1) \
            + b.reshape(1, -1, 1, 1)

    y = jnp.maximum(bn(x, params["gamma1"], params["beta1"]), 0.0)
    y = lax.conv_general_dilated(y, params["w1"], (1, 1), "VALID",
                                 dimension_numbers=("NCHW", "OIHW", "NCHW"))
    y = jnp.maximum(bn(y, params["gamma2"], params["beta2"]), 0.0)
    y = lax.conv_general_dilated(y, params["w2"], (1, 1), ((1, 1), (1, 1)),
                                 dimension_numbers=("NCHW", "OIHW", "NCHW"))
    return y


if __name__ == "__main__":
    key = jax.random.PRNGKey(0)
    kx, kw1, kw2, kg1, kb1, kg2, kb2 = jax.random.split(key, 7)

    N, C1, H, W = 1, 528, 14, 14
    C2, C3 = 192, 48

    x = jax.random.normal(kx, (N, C1, H, W), dtype=jnp.float32)
    params = {
        "w1": 0.05 * jax.random.normal(kw1, (C2, C1, 1, 1), dtype=jnp.float32),
        "w2": 0.05 * jax.random.normal(kw2, (C3, C2, 3, 3), dtype=jnp.float32),
        "gamma1": 1.0 + 0.1 * jax.random.normal(kg1, (C1,), dtype=jnp.float32),
        "beta1": 0.1 * jax.random.normal(kb1, (C1,), dtype=jnp.float32),
        "gamma2": 1.0 + 0.1 * jax.random.normal(kg2, (C2,), dtype=jnp.float32),
        "beta2": 0.1 * jax.random.normal(kb2, (C2,), dtype=jnp.float32),
    }

    out = jax.block_until_ready(model_forward(x, params))
    ref = jax.block_until_ready(reference_forward(x, params))

    assert out.shape == (N, C3, H, W), out.shape
    np.testing.assert_allclose(np.asarray(out), np.asarray(ref),
                               rtol=1e-3, atol=1e-3)
    print("KERNEL_OK")
</pallas_src>

<mosaic_0001>
module attributes {stable_mosaic.version = 11 : i64} {
  func.func @fused_kernel(%arg0: i32, %arg1: memref<528x196xf32, #tpu.memory_space<vmem>>, %arg2: memref<528x1xf32, #tpu.memory_space<vmem>>, %arg3: memref<528x1xf32, #tpu.memory_space<vmem>>, %arg4: memref<192x528xf32, #tpu.memory_space<vmem>>, %arg5: memref<192x1xf32, #tpu.memory_space<vmem>>, %arg6: memref<192x1xf32, #tpu.memory_space<vmem>>, %arg7: memref<432x192xf32, #tpu.memory_space<vmem>>, %arg8: memref<9x256xf32, #tpu.memory_space<vmem>>, %arg9: memref<48x256xf32, #tpu.memory_space<vmem>>, %arg10: memref<192x256xf32, #tpu.memory_space<vmem>>) attributes {dimension_semantics = [#tpu.dimension_semantics<arbitrary>], iteration_bounds = array<i64: 1>, scalar_prefetch = 0 : i64, scratch_operands = 1 : i64, tpu.core_type = #tpu.core_type<tc>, window_params = [{pipeline_mode = #tpu.pipeline_mode<synchronous>, transform_indices = @transform_0, window_bounds = array<i64: 528, 196>}, {pipeline_mode = #tpu.pipeline_mode<synchronous>, transform_indices = @transform_1, window_bounds = array<i64: 528, 1>}, {pipeline_mode = #tpu.pipeline_mode<synchronous>, transform_indices = @transform_2, window_bounds = array<i64: 528, 1>}, {pipeline_mode = #tpu.pipeline_mode<synchronous>, transform_indices = @transform_3, window_bounds = array<i64: 192, 528>}, {pipeline_mode = #tpu.pipeline_mode<synchronous>, transform_indices = @transform_4, window_bounds = array<i64: 192, 1>}, {pipeline_mode = #tpu.pipeline_mode<synchronous>, transform_indices = @transform_5, window_bounds = array<i64: 192, 1>}, {pipeline_mode = #tpu.pipeline_mode<synchronous>, transform_indices = @transform_6, window_bounds = array<i64: 432, 192>}, {pipeline_mode = #tpu.pipeline_mode<synchronous>, transform_indices = @transform_7, window_bounds = array<i64: 9, 256>}, {pipeline_mode = #tpu.pipeline_mode<synchronous>, transform_indices = @transform_8, window_bounds = array<i64: 48, 256>}]} {
    %c0 = arith.constant 0 : index
    %c0_0 = arith.constant 0 : index
    %0 = vector.load %arg1[%c0, %c0_0] : memref<528x196xf32, #tpu.memory_space<vmem>>, vector<528x196xf32>
    %cst = arith.constant dense<0.000000e+00> : vector<528xf32>
    %1 = vector.multi_reduction <add>, %0, %cst [1] : vector<528x196xf32> to vector<528xf32>
    %2 = vector.shape_cast %1 : vector<528xf32> to vector<528x1xf32>
    %3 = arith.mulf %0, %0 : vector<528x196xf32>
    %cst_1 = arith.constant dense<0.000000e+00> : vector<528xf32>
    %4 = vector.multi_reduction <add>, %3, %cst_1 [1] : vector<528x196xf32> to vector<528xf32>
    %5 = vector.shape_cast %4 : vector<528xf32> to vector<528x1xf32>
    %cst_2 = arith.constant 0.00510204071 : f32
    %6 = vector.broadcast %cst_2 : f32 to vector<528x1xf32>
    %7 = arith.mulf %2, %6 : vector<528x1xf32>
    %cst_3 = arith.constant 0.00510204071 : f32
    %8 = vector.broadcast %cst_3 : f32 to vector<528x1xf32>
    %9 = arith.mulf %5, %8 : vector<528x1xf32>
    %10 = arith.mulf %7, %7 : vector<528x1xf32>
    %11 = arith.subf %9, %10 : vector<528x1xf32>
    %c0_4 = arith.constant 0 : index
    %c0_5 = arith.constant 0 : index
    %12 = vector.load %arg2[%c0_4, %c0_5] : memref<528x1xf32, #tpu.memory_space<vmem>>, vector<528x1xf32>
    %cst_6 = arith.constant 9.99999974E-6 : f32
    %13 = vector.broadcast %cst_6 : f32 to vector<528x1xf32>
    %14 = arith.addf %11, %13 : vector<528x1xf32>
    %15 = math.rsqrt %14 : vector<528x1xf32>
    %16 = arith.mulf %12, %15 : vector<528x1xf32>
    %c0_7 = arith.constant 0 : index
    %c0_8 = arith.constant 0 : index
    %17 = vector.load %arg3[%c0_7, %c0_8] : memref<528x1xf32, #tpu.memory_space<vmem>>, vector<528x1xf32>
    %18 = arith.mulf %7, %16 : vector<528x1xf32>
    %19 = arith.subf %17, %18 : vector<528x1xf32>
    %20 = vector.broadcast %16 : vector<528x1xf32> to vector<528x196xf32>
    %21 = arith.mulf %0, %20 : vector<528x196xf32>
    %22 = vector.broadcast %19 : vector<528x1xf32> to vector<528x196xf32>
    %23 = arith.addf %21, %22 : vector<528x196xf32>
    %cst_9 = arith.constant 0.000000e+00 : f32
    %24 = vector.broadcast %cst_9 : f32 to vector<528x196xf32>
    %25 = arith.maximumf %23, %24 : vector<528x196xf32>
    %c0_10 = arith.constant 0 : index
    %c0_11 = arith.constant 0 : index
    %26 = vector.load %arg4[%c0_10, %c0_11] : memref<192x528xf32, #tpu.memory_space<vmem>>, vector<192x528xf32>
    %cst_12 = arith.constant dense<0.000000e+00> : vector<192x196xf32>
    %27 = tpu.matmul %26, %25, %cst_12 {dimension_numbers = #tpu.dot_dimension_numbers<[1], [0], [0], [1], [0, 0, 1, 1], [], []>} : vector<192x528xf32>, vector<528x196xf32>, vector<192x196xf32> -> vector<192x196xf32>
    %cst_13 = arith.constant dense<0.000000e+00> : vector<192xf32>
    %28 = vector.multi_reduction <add>, %27, %cst_13 [1] : vector<192x196xf32> to vector<192xf32>
    %29 = vector.shape_cast %28 : vector<192xf32> to vector<192x1xf32>
    %30 = arith.mulf %27, %27 : vector<192x196xf32>
    %cst_14 = arith.constant dense<0.000000e+00> : vector<192xf32>
    %31 = vector.multi_reduction <add>, %30, %cst_14 [1] : vector<192x196xf32> to vector<192xf32>
    %32 = vector.shape_cast %31 : vector<192xf32> to vector<192x1xf32>
    %cst_15 = arith.constant 0.00510204071 : f32
    %33 = vector.broadcast %cst_15 : f32 to vector<192x1xf32>
    %34 = arith.mulf %29, %33 : vector<192x1xf32>
    %cst_16 = arith.constant 0.00510204071 : f32
    %35 = vector.broadcast %cst_16 : f32 to vector<192x1xf32>
    %36 = arith.mulf %32, %35 : vector<192x1xf32>
    %37 = arith.mulf %34, %34 : vector<192x1xf32>
    %38 = arith.subf %36, %37 : vector<192x1xf32>
    %c0_17 = arith.constant 0 : index
    %c0_18 = arith.constant 0 : index
    %39 = vector.load %arg5[%c0_17, %c0_18] : memref<192x1xf32, #tpu.memory_space<vmem>>, vector<192x1xf32>
    %cst_19 = arith.constant 9.99999974E-6 : f32
    %40 = vector.broadcast %cst_19 : f32 to vector<192x1xf32>
    %41 = arith.addf %38, %40 : vector<192x1xf32>
    %42 = math.rsqrt %41 : vector<192x1xf32>
    %43 = arith.mulf %39, %42 : vector<192x1xf32>
    %c0_20 = arith.constant 0 : index
    %c0_21 = arith.constant 0 : index
    %44 = vector.load %arg6[%c0_20, %c0_21] : memref<192x1xf32, #tpu.memory_space<vmem>>, vector<192x1xf32>
    %45 = arith.mulf %34, %43 : vector<192x1xf32>
    %46 = arith.subf %44, %45 : vector<192x1xf32>
    %47 = vector.broadcast %43 : vector<192x1xf32> to vector<192x196xf32>
    %48 = arith.mulf %27, %47 : vector<192x196xf32>
    %49 = vector.broadcast %46 : vector<192x1xf32> to vector<192x196xf32>
    %50 = arith.addf %48, %49 : vector<192x196xf32>
    %cst_22 = arith.constant 0.000000e+00 : f32
    %51 = vector.broadcast %cst_22 : f32 to vector<192x196xf32>
    %52 = arith.maximumf %50, %51 : vector<192x196xf32>
    %cst_23 = arith.constant 0.000000e+00 : f32
    %53 = vector.broadcast %cst_23 : f32 to vector<192x256xf32>
    %c0_24 = arith.constant 0 : index
    %c0_25 = arith.constant 0 : index
    %54 = vector.load %arg10[%c0_24, %c0_25] : memref<192x256xf32, #tpu.memory_space<vmem>>, vector<192x256xf32>
    tpu.vector_store %arg10[%c0_24, %c0_25], %53 {strides = array<i32>} : memref<192x256xf32, #tpu.memory_space<vmem>>, vector<192x256xf32>,
    %c0_26 = arith.constant 0 : index
    %c0_27 = arith.constant 0 : index
    %55 = vector.load %arg10[%c0_26, %c0_27] : memref<192x256xf32, #tpu.memory_space<vmem>>, vector<192x196xf32>
    tpu.vector_store %arg10[%c0_26, %c0_27], %52 {strides = array<i32>} : memref<192x256xf32, #tpu.memory_space<vmem>>, vector<192x196xf32>,
    %c0_28 = arith.constant 0 : index
    %c0_29 = arith.constant 0 : index
    %56 = vector.load %arg7[%c0_28, %c0_29] : memref<432x192xf32, #tpu.memory_space<vmem>>, vector<432x192xf32>
    %c0_30 = arith.constant 0 : index
    %c0_31 = arith.constant 0 : index
    %57 = vector.load %arg10[%c0_30, %c0_31] : memref<192x256xf32, #tpu.memory_space<vmem>>, vector<192x256xf32>
    %cst_32 = arith.constant dense<0.000000e+00> : vector<432x256xf32>
    %58 = tpu.matmul %56, %57, %cst_32 {dimension_numbers = #tpu.dot_dimension_numbers<[1], [0], [0], [1], [0, 0, 1, 1], [], []>} : vector<432x192xf32>, vector<192x256xf32>, vector<432x256xf32> -> vector<432x256xf32>
    %c0_33 = arith.constant 0 : index
    %c0_34 = arith.constant 0 : index
    %59 = vector.load %arg8[%c0_33, %c0_34] : memref<9x256xf32, #tpu.memory_space<vmem>>, vector<9x256xf32>
    %60 = vector.extract_strided_slice %58 {offsets = [192, 0], sizes = [48, 256], strides = [1, 1]} : vector<432x256xf32> to vector<48x256xf32>
    %61 = vector.extract_strided_slice %58 {offsets = [0, 0], sizes = [48, 256], strides = [1, 1]} : vector<432x256xf32> to vector<48x256xf32>
    %c15_i32 = arith.constant 15 : i32
    %62 = tpu.dynamic_rotate %61 by %c15_i32 dim 1 : vector<48x256xf32>, i32 -> vector<48x256xf32>
    %63 = vector.extract_strided_slice %59 {offsets = [0, 0], sizes = [1, 256], strides = [1, 1]} : vector<9x256xf32> to vector<1x256xf32>
    %64 = vector.broadcast %63 : vector<1x256xf32> to vector<48x256xf32>
    %65 = arith.mulf %62, %64 : vector<48x256xf32>
    %66 = arith.addf %60, %65 : vector<48x256xf32>
    %67 = vector.extract_strided_slice %58 {offsets = [48, 0], sizes = [48, 256], strides = [1, 1]} : vector<432x256xf32> to vector<48x256xf32>
    %c14_i32 = arith.constant 14 : i32
    %68 = tpu.dynamic_rotate %67 by %c14_i32 dim 1 : vector<48x256xf32>, i32 -> vector<48x256xf32>
    %69 = vector.extract_strided_slice %59 {offsets = [1, 0], sizes = [1, 256], strides = [1, 1]} : vector<9x256xf32> to vector<1x256xf32>
    %70 = vector.broadcast %69 : vector<1x256xf32> to vector<48x256xf32>
    %71 = arith.mulf %68, %70 : vector<48x256xf32>
    %72 = arith.addf %66, %71 : vector<48x256xf32>
    %73 = vector.extract_strided_slice %58 {offsets = [96, 0], sizes = [48, 256], strides = [1, 1]} : vector<432x256xf32> to vector<48x256xf32>
    %c13_i32 = arith.constant 13 : i32
    %74 = tpu.dynamic_rotate %73 by %c13_i32 dim 1 : vector<48x256xf32>, i32 -> vector<48x256xf32>
    %75 = vector.extract_strided_slice %59 {offsets = [2, 0], sizes = [1, 256], strides = [1, 1]} : vector<9x256xf32> to vector<1x256xf32>
    %76 = vector.broadcast %75 : vector<1x256xf32> to vector<48x256xf32>
    %77 = arith.mulf %74, %76 : vector<48x256xf32>
    %78 = arith.addf %72, %77 : vector<48x256xf32>
    %79 = vector.extract_strided_slice %58 {offsets = [144, 0], sizes = [48, 256], strides = [1, 1]} : vector<432x256xf32> to vector<48x256xf32>
    %c1_i32 = arith.constant 1 : i32
    %80 = tpu.dynamic_rotate %79 by %c1_i32 dim 1 : vector<48x256xf32>, i32 -> vector<48x256xf32>
    %81 = vector.extract_strided_slice %59 {offsets = [3, 0], sizes = [1, 256], strides = [1, 1]} : vector<9x256xf32> to vector<1x256xf32>
    %82 = vector.broadcast %81 : vector<1x256xf32> to vector<48x256xf32>
    %83 = arith.mulf %80, %82 : vector<48x256xf32>
    %84 = arith.addf %78, %83 : vector<48x256xf32>
    %85 = vector.extract_strided_slice %58 {offsets = [240, 0], sizes = [48, 256], strides = [1, 1]} : vector<432x256xf32> to vector<48x256xf32>
    %c255_i32 = arith.constant 255 : i32
    %86 = tpu.dynamic_rotate %85 by %c255_i32 dim 1 : vector<48x256xf32>, i32 -> vector<48x256xf32>
    %87 = vector.extract_strided_slice %59 {offsets = [5, 0], sizes = [1, 256], strides = [1, 1]} : vector<9x256xf32> to vector<1x256xf32>
    %88 = vector.broadcast %87 : vector<1x256xf32> to vector<48x256xf32>
    %89 = arith.mulf %86, %88 : vector<48x256xf32>
    %90 = arith.addf %84, %89 : vector<48x256xf32>
    %91 = vector.extract_strided_slice %58 {offsets = [288, 0], sizes = [48, 256], strides = [1, 1]} : vector<432x256xf32> to vector<48x256xf32>
    %c243_i32 = arith.constant 243 : i32
    %92 = tpu.dynamic_rotate %91 by %c243_i32 dim 1 : vector<48x256xf32>, i32 -> vector<48x256xf32>
    %93 = vector.extract_strided_slice %59 {offsets = [6, 0], sizes = [1, 256], strides = [1, 1]} : vector<9x256xf32> to vector<1x256xf32>
    %94 = vector.broadcast %93 : vector<1x256xf32> to vector<48x256xf32>
    %95 = arith.mulf %92, %94 : vector<48x256xf32>
    %96 = arith.addf %90, %95 : vector<48x256xf32>
    %97 = vector.extract_strided_slice %58 {offsets = [336, 0], sizes = [48, 256], strides = [1, 1]} : vector<432x256xf32> to vector<48x256xf32>
    %c242_i32 = arith.constant 242 : i32
    %98 = tpu.dynamic_rotate %97 by %c242_i32 dim 1 : vector<48x256xf32>, i32 -> vector<48x256xf32>
    %99 = vector.extract_strided_slice %59 {offsets = [7, 0], sizes = [1, 256], strides = [1, 1]} : vector<9x256xf32> to vector<1x256xf32>
    %100 = vector.broadcast %99 : vector<1x256xf32> to vector<48x256xf32>
    %101 = arith.mulf %98, %100 : vector<48x256xf32>
    %102 = arith.addf %96, %101 : vector<48x256xf32>
    %103 = vector.extract_strided_slice %58 {offsets = [384, 0], sizes = [48, 256], strides = [1, 1]} : vector<432x256xf32> to vector<48x256xf32>
    %c241_i32 = arith.constant 241 : i32
    %104 = tpu.dynamic_rotate %103 by %c241_i32 dim 1 : vector<48x256xf32>, i32 -> vector<48x256xf32>
    %105 = vector.extract_strided_slice %59 {offsets = [8, 0], sizes = [1, 256], strides = [1, 1]} : vector<9x256xf32> to vector<1x256xf32>
    %106 = vector.broadcast %105 : vector<1x256xf32> to vector<48x256xf32>
    %107 = arith.mulf %104, %106 : vector<48x256xf32>
    %108 = arith.addf %102, %107 : vector<48x256xf32>
    %c0_35 = arith.constant 0 : index
    %c0_36 = arith.constant 0 : index
    %109 = vector.load %arg9[%c0_35, %c0_36] : memref<48x256xf32, #tpu.memory_space<vmem>>, vector<48x256xf32>
    tpu.vector_store %arg9[%c0_35, %c0_36], %108 {strides = array<i32>} : memref<48x256xf32, #tpu.memory_space<vmem>>, vector<48x256xf32>,
    return
  }
  func.func @transform_0(%arg0: i32) -> (i32, i32) {
    %c0_i32 = arith.constant 0 : i32
    %c0_i32_0 = arith.constant 0 : i32
    %c0_i32_1 = arith.constant 0 : i32
    return %c0_i32, %c0_i32_0 : i32, i32
  }
  func.func @transform_1(%arg0: i32) -> (i32, i32) {
    %c0_i32 = arith.constant 0 : i32
    %c0_i32_0 = arith.constant 0 : i32
    %c0_i32_1 = arith.constant 0 : i32
    return %c0_i32, %c0_i32_0 : i32, i32
  }
  func.func @transform_2(%arg0: i32) -> (i32, i32) {
    %c0_i32 = arith.constant 0 : i32
    %c0_i32_0 = arith.constant 0 : i32
    %c0_i32_1 = arith.constant 0 : i32
    return %c0_i32, %c0_i32_0 : i32, i32
  }
  func.func @transform_3(%arg0: i32) -> (i32, i32) {
    %c0_i32 = arith.constant 0 : i32
    %c0_i32_0 = arith.constant 0 : i32
    %c0_i32_1 = arith.constant 0 : i32
    return %c0_i32, %c0_i32_0 : i32, i32
  }
  func.func @transform_4(%arg0: i32) -> (i32, i32) {
    %c0_i32 = arith.constant 0 : i32
    %c0_i32_0 = arith.constant 0 : i32
    %c0_i32_1 = arith.constant 0 : i32
    return %c0_i32, %c0_i32_0 : i32, i32
  }
  func.func @transform_5(%arg0: i32) -> (i32, i32) {
    %c0_i32 = arith.constant 0 : i32
    %c0_i32_0 = arith.constant 0 : i32
    %c0_i32_1 = arith.constant 0 : i32
    return %c0_i32, %c0_i32_0 : i32, i32
  }
  func.func @transform_6(%arg0: i32) -> (i32, i32) {
    %c0_i32 = arith.constant 0 : i32
    %c0_i32_0 = arith.constant 0 : i32
    %c0_i32_1 = arith.constant 0 : i32
    return %c0_i32, %c0_i32_0 : i32, i32
  }
  func.func @transform_7(%arg0: i32) -> (i32, i32) {
    %c0_i32 = arith.constant 0 : i32
    %c0_i32_0 = arith.constant 0 : i32
    %c0_i32_1 = arith.constant 0 : i32
    return %c0_i32, %c0_i32_0 : i32, i32
  }
  func.func @transform_8(%arg0: i32) -> (i32, i32) {
    %c0_i32 = arith.constant 0 : i32
    %c0_i32_0 = arith.constant 0 : i32
    %c0_i32_1 = arith.constant 0 : i32
    return %c0_i32, %c0_i32_0 : i32, i32
  }
}

</mosaic_0001>

<llo_original>
// kernel: model_forward.1
$region0: #{model_forward.1}
  #allocation0 [shape = 'u32[]', space=smem, size = 0x4, offset = 0x4, fixed_abs, tag = 'smem constant byte address 0x4 - core index']
  #allocation1 [shape = 'u32[144,128]{1,0:T(1,128)}', space=vmem, size = 0x12000, scoped, tag = 'internal scratch']
  #allocation2 [shape = 'f32[192,256]{1,0:T(8,128)}', space=vmem, size = 0x30000, scoped, tag = 'scratch operand']
  %s0 = inlined_call_operand.vmem [shape: f32[528,196], index: 0, kind: input, shape index: {}]
  %s1 = inlined_call_operand.vmem [shape: f32[528,1], index: 1, kind: input, shape index: {}]
  %s2 = inlined_call_operand.vmem [shape: f32[528,1], index: 2, kind: input, shape index: {}]
  %s3 = inlined_call_operand.vmem [shape: f32[192,528], index: 3, kind: input, shape index: {}]
  %s4 = inlined_call_operand.vmem [shape: f32[192,1], index: 4, kind: input, shape index: {}]
  %s5 = inlined_call_operand.vmem [shape: f32[192,1], index: 5, kind: input, shape index: {}]
  %s6 = inlined_call_operand.vmem [shape: f32[432,192], index: 6, kind: input, shape index: {}]
  %s7 = inlined_call_operand.vmem [shape: f32[9,256], index: 7, kind: input, shape index: {}]
  %s8 = inlined_call_operand.vmem [shape: f32[48,256], index: 8, kind: output, shape index: {}]
  %s9 = sld [smem:[#allocation0]]
  $region42: #{model_forward.1} parent=0
    _
  %s11 = ssub.s32 1, %s9
  %s12 = scalar_select 0, %s11, %s9
  // Predicated region
  $region2: #{model_forward.1} parent=0 // pred_check
    _
  $region3: #{model_forward.1} parent=0 // pred_check_branch
    %14 = sbr.rel (0) target = $region5
  $region4: #{model_forward.1} parent=0 // pred_region
    _
  $region5: #{model_forward.1} parent=0 // pred_fallthru
    _
  // Predicated region
  $region6: #{model_forward.1} parent=0 // pred_check
    _
  $region7: #{model_forward.1} parent=0 // pred_check_branch
    %16 = sbr.rel (0) target = $region9
  $region8: #{model_forward.1} parent=0 // pred_region
    _
  $region9: #{model_forward.1} parent=0 // pred_fallthru
    _
  // Predicated region
  $region10: #{model_forward.1} parent=0 // pred_check
    _
  $region11: #{model_forward.1} parent=0 // pred_check_branch
    %18 = sbr.rel (0) target = $region13
  $region12: #{model_forward.1} parent=0 // pred_region
    _
  $region13: #{model_forward.1} parent=0 // pred_fallthru
    _
  // Predicated region
  $region14: #{model_forward.1} parent=0 // pred_check
    _
  $region15: #{model_forward.1} parent=0 // pred_check_branch
    %20 = sbr.rel (0) target = $region17
  $region16: #{model_forward.1} parent=0 // pred_region
    _
  $region17: #{model_forward.1} parent=0 // pred_fallthru
    _
  // Predicated region
  $region18: #{model_forward.1} parent=0 // pred_check
    _
  $region19: #{model_forward.1} parent=0 // pred_check_branch
    %22 = sbr.rel (0) target = $region21
  $region20: #{model_forward.1} parent=0 // pred_region
    _
  $region21: #{model_forward.1} parent=0 // pred_fallthru
    _
  // Predicated region
  $region22: #{model_forward.1} parent=0 // pred_check
    _
  $region23: #{model_forward.1} parent=0 // pred_check_branch
    %24 = sbr.rel (0) target = $region25
  $region24: #{model_forward.1} parent=0 // pred_region
    _
  $region25: #{model_forward.1} parent=0 // pred_fallthru
    _
  // Predicated region
  $region26: #{model_forward.1} parent=0 // pred_check
    _
  $region27: #{model_forward.1} parent=0 // pred_check_branch
    %26 = sbr.rel (0) target = $region29
  $region28: #{model_forward.1} parent=0 // pred_region
    _
  $region29: #{model_forward.1} parent=0 // pred_fallthru
    _
  // Predicated region
  $region30: #{model_forward.1} parent=0 // pred_check
    _
  $region31: #{model_forward.1} parent=0 // pred_check_branch
    %28 = sbr.rel (0) target = $region33
  $region32: #{model_forward.1} parent=0 // pred_region
    _
  $region33: #{model_forward.1} parent=0 // pred_fallthru
    _
  %v29 = vld [vmem:[%s0] sm:$0xff]
  %v30 = vld [vmem:[%s0 + $0x8] sm:$0xff]
  %v31 = vld [vmem:[%s0 + $0x10] sm:$0xff]
  %v32 = vld [vmem:[%s0 + $0x18] sm:$0xff]
  %v33 = vld [vmem:[%s0 + $0x20] sm:$0xff]
  %v34 = vld [vmem:[%s0 + $0x28] sm:$0xff]
  %v35 = vld [vmem:[%s0 + $0x30] sm:$0xff]
  %v36 = vld [vmem:[%s0 + $0x38] sm:$0xff]
  %v37 = vld [vmem:[%s0 + $0x40] sm:$0xff]
  %v38 = vld [vmem:[%s0 + $0x48] sm:$0xff]
  %v39 = vld [vmem:[%s0 + $0x50] sm:$0xff]
  %v40 = vld [vmem:[%s0 + $0x58] sm:$0xff]
  %v41 = vld [vmem:[%s0 + $0x60] sm:$0xff]
  %v42 = vld [vmem:[%s0 + $0x68] sm:$0xff]
  %v43 = vld [vmem:[%s0 + $0x70] sm:$0xff]
  %v44 = vld [vmem:[%s0 + $0x78] sm:$0xff]
  %v45 = vld [vmem:[%s0 + $0x80] sm:$0xff]
  %v46 = vld [vmem:[%s0 + $0x88] sm:$0xff]
  %v47 = vld [vmem:[%s0 + $0x90] sm:$0xff]
  %v48 = vld [vmem:[%s0 + $0x98] sm:$0xff]
  %v49 = vld [vmem:[%s0 + $0xa0] sm:$0xff]
  %v50 = vld [vmem:[%s0 + $0xa8] sm:$0xff]
  %v51 = vld [vmem:[%s0 + $0xb0] sm:$0xff]
  %v52 = vld [vmem:[%s0 + $0xb8] sm:$0xff]
  %v53 = vld [vmem:[%s0 + $0xc0] sm:$0xff]
  %v54 = vld [vmem:[%s0 + $0xc8] sm:$0xff]
  %v55 = vld [vmem:[%s0 + $0xd0] sm:$0xff]
  %v56 = vld [vmem:[%s0 + $0xd8] sm:$0xff]
  %v57 = vld [vmem:[%s0 + $0xe0] sm:$0xff]
  %v58 = vld [vmem:[%s0 + $0xe8] sm:$0xff]
  %v59 = vld [vmem:[%s0 + $0xf0] sm:$0xff]
  %v60 = vld [vmem:[%s0 + $0xf8] sm:$0xff]
  %v61 = vld [vmem:[%s0 + $0x100] sm:$0xff]
  %v62 = vld [vmem:[%s0 + $0x108] sm:$0xff]
  %v63 = vld [vmem:[%s0 + $0x110] sm:$0xff]
  %v64 = vld [vmem:[%s0 + $0x118] sm:$0xff]
  %v65 = vld [vmem:[%s0 + $0x120] sm:$0xff]
  %v66 = vld [vmem:[%s0 + $0x128] sm:$0xff]
  %v67 = vld [vmem:[%s0 + $0x130] sm:$0xff]
  %v68 = vld [vmem:[%s0 + $0x138] sm:$0xff]
  %v69 = vld [vmem:[%s0 + $0x140] sm:$0xff]
  %v70 = vld [vmem:[%s0 + $0x148] sm:$0xff]
  %v71 = vld [vmem:[%s0 + $0x150] sm:$0xff]
  %v72 = vld [vmem:[%s0 + $0x158] sm:$0xff]
  %v73 = vld [vmem:[%s0 + $0x160] sm:$0xff]
  %v74 = vld [vmem:[%s0 + $0x168] sm:$0xff]
  %v75 = vld [vmem:[%s0 + $0x170] sm:$0xff]
  %v76 = vld [vmem:[%s0 + $0x178] sm:$0xff]
  %v77 = vld [vmem:[%s0 + $0x180] sm:$0xff]
  %v78 = vld [vmem:[%s0 + $0x188] sm:$0xff]
  %v79 = vld [vmem:[%s0 + $0x190] sm:$0xff]
  %v80 = vld [vmem:[%s0 + $0x198] sm:$0xff]
  %v81 = vld [vmem:[%s0 + $0x1a0] sm:$0xff]
  %v82 = vld [vmem:[%s0 + $0x1a8] sm:$0xff]
  %v83 = vld [vmem:[%s0 + $0x1b0] sm:$0xff]
  %v84 = vld [vmem:[%s0 + $0x1b8] sm:$0xff]
  %v85 = vld [vmem:[%s0 + $0x1c0] sm:$0xff]
  %v86 = vld [vmem:[%s0 + $0x1c8] sm:$0xff]
  %v87 = vld [vmem:[%s0 + $0x1d0] sm:$0xff]
  %v88 = vld [vmem:[%s0 + $0x1d8] sm:$0xff]
  %v89 = vld [vmem:[%s0 + $0x1e0] sm:$0xff]
  %v90 = vld [vmem:[%s0 + $0x1e8] sm:$0xff]
  %v91 = vld [vmem:[%s0 + $0x1f0] sm:$0xff]
  %v92 = vld [vmem:[%s0 + $0x1f8] sm:$0xff]
  %v93 = vld [vmem:[%s0 + $0x200] sm:$0xff]
  %v94 = vld [vmem:[%s0 + $0x208] sm:$0xff]
  %v95 = vld [vmem:[%s0 + $0x210] sm:$0xff]
  %v96 = vld [vmem:[%s0 + $0x218] sm:$0xff]
  %v97 = vld [vmem:[%s0 + $0x220] sm:$0xff]
  %v98 = vld [vmem:[%s0 + $0x228] sm:$0xff]
  %v99 = vld [vmem:[%s0 + $0x230] sm:$0xff]
  %v100 = vld [vmem:[%s0 + $0x238] sm:$0xff]
  %v101 = vld [vmem:[%s0 + $0x240] sm:$0xff]
  %v102 = vld [vmem:[%s0 + $0x248] sm:$0xff]
  %v103 = vld [vmem:[%s0 + $0x250] sm:$0xff]
  %v104 = vld [vmem:[%s0 + $0x258] sm:$0xff]
  %v105 = vld [vmem:[%s0 + $0x260] sm:$0xff]
  %v106 = vld [vmem:[%s0 + $0x268] sm:$0xff]
  %v107 = vld [vmem:[%s0 + $0x270] sm:$0xff]
  %v108 = vld [vmem:[%s0 + $0x278] sm:$0xff]
  %v109 = vld [vmem:[%s0 + $0x280] sm:$0xff]
  %v110 = vld [vmem:[%s0 + $0x288] sm:$0xff]
  %v111 = vld [vmem:[%s0 + $0x290] sm:$0xff]
  %v112 = vld [vmem:[%s0 + $0x298] sm:$0xff]
  %v113 = vld [vmem:[%s0 + $0x2a0] sm:$0xff]
  %v114 = vld [vmem:[%s0 + $0x2a8] sm:$0xff]
  %v115 = vld [vmem:[%s0 + $0x2b0] sm:$0xff]
  %v116 = vld [vmem:[%s0 + $0x2b8] sm:$0xff]
  %v117 = vld [vmem:[%s0 + $0x2c0] sm:$0xff]
  %v118 = vld [vmem:[%s0 + $0x2c8] sm:$0xff]
  %v119 = vld [vmem:[%s0 + $0x2d0] sm:$0xff]
  %v120 = vld [vmem:[%s0 + $0x2d8] sm:$0xff]
  %v121 = vld [vmem:[%s0 + $0x2e0] sm:$0xff]
  %v122 = vld [vmem:[%s0 + $0x2e8] sm:$0xff]
  %v123 = vld [vmem:[%s0 + $0x2f0] sm:$0xff]
  %v124 = vld [vmem:[%s0 + $0x2f8] sm:$0xff]
  %v125 = vld [vmem:[%s0 + $0x300] sm:$0xff]
  %v126 = vld [vmem:[%s0 + $0x308] sm:$0xff]
  %v127 = vld [vmem:[%s0 + $0x310] sm:$0xff]
  %v128 = vld [vmem:[%s0 + $0x318] sm:$0xff]
  %v129 = vld [vmem:[%s0 + $0x320] sm:$0xff]
  %v130 = vld [vmem:[%s0 + $0x328] sm:$0xff]
  %v131 = vld [vmem:[%s0 + $0x330] sm:$0xff]
  %v132 = vld [vmem:[%s0 + $0x338] sm:$0xff]
  %v133 = vld [vmem:[%s0 + $0x340] sm:$0xff]
  %v134 = vld [vmem:[%s0 + $0x348] sm:$0xff]
  %v135 = vld [vmem:[%s0 + $0x350] sm:$0xff]
  %v136 = vld [vmem:[%s0 + $0x358] sm:$0xff]
  %v137 = vld [vmem:[%s0 + $0x360] sm:$0xff]
  %v138 = vld [vmem:[%s0 + $0x368] sm:$0xff]
  %v139 = vld [vmem:[%s0 + $0x370] sm:$0xff]
  %v140 = vld [vmem:[%s0 + $0x378] sm:$0xff]
  %v141 = vld [vmem:[%s0 + $0x380] sm:$0xff]
  %v142 = vld [vmem:[%s0 + $0x388] sm:$0xff]
  %v143 = vld [vmem:[%s0 + $0x390] sm:$0xff]
  %v144 = vld [vmem:[%s0 + $0x398] sm:$0xff]
  %v145 = vld [vmem:[%s0 + $0x3a0] sm:$0xff]
  %v146 = vld [vmem:[%s0 + $0x3a8] sm:$0xff]
  %v147 = vld [vmem:[%s0 + $0x3b0] sm:$0xff]
  %v148 = vld [vmem:[%s0 + $0x3b8] sm:$0xff]
  %v149 = vld [vmem:[%s0 + $0x3c0] sm:$0xff]
  %v150 = vld [vmem:[%s0 + $0x3c8] sm:$0xff]
  %v151 = vld [vmem:[%s0 + $0x3d0] sm:$0xff]
  %v152 = vld [vmem:[%s0 + $0x3d8] sm:$0xff]
  %v153 = vld [vmem:[%s0 + $0x3e0] sm:$0xff]
  %v154 = vld [vmem:[%s0 + $0x3e8] sm:$0xff]
  %v155 = vld [vmem:[%s0 + $0x3f0] sm:$0xff]
  %v156 = vld [vmem:[%s0 + $0x3f8] sm:$0xff]
  %v157 = vld [vmem:[%s0 + $0x400] sm:$0xff]
  %v158 = vld [vmem:[%s0 + $0x408] sm:$0xff]
  %v159 = vld [vmem:[%s0 + $0x410] sm:$0xff]
  %v160 = vld [vmem:[%s0 + $0x418] sm:$0xff]
  %vm161 = vcmask 556032
  %v162 = vsel %vm161, %v30, 0.0
  %v163 = vadd.f32 %v29, %v162
  %164 = vadd.xlane.f32.xlu0 %v163
  %v165 = vpop.xlane.xlu0 %164
  %v166 = vsel %vm161, %v32, 0.0
  %v167 = vadd.f32 %v31, %v166
  %168 = vadd.xlane.f32.xlu0 %v167
  %v169 = vpop.xlane.xlu0 %168
  %v170 = vsel %vm161, %v34, 0.0
  %v171 = vadd.f32 %v33, %v170
  %172 = vadd.xlane.f32.xlu0 %v171
  %v173 = vpop.xlane.xlu0 %172
  %v174 = vsel %vm161, %v36, 0.0
  %v175 = vadd.f32 %v35, %v174
  %176 = vadd.xlane.f32.xlu0 %v175
  %v177 = vpop.xlane.xlu0 %176
  %v178 = vsel %vm161, %v38, 0.0
  %v179 = vadd.f32 %v37, %v178
  %180 = vadd.xlane.f32.xlu0 %v179
  %v181 = vpop.xlane.xlu0 %180
  %v182 = vsel %vm161, %v40, 0.0
  %v183 = vadd.f32 %v39, %v182
  %184 = vadd.xlane.f32.xlu0 %v183
  %v185 = vpop.xlane.xlu0 %184
  %v186 = vsel %vm161, %v42, 0.0
  %v187 = vadd.f32 %v41, %v186
  %188 = vadd.xlane.f32.xlu0 %v187
  %v189 = vpop.xlane.xlu0 %188
  %v190 = vsel %vm161, %v44, 0.0
  %v191 = vadd.f32 %v43, %v190
  %192 = vadd.xlane.f32.xlu0 %v191
  %v193 = vpop.xlane.xlu0 %192
  %v194 = vsel %vm161, %v46, 0.0
  %v195 = vadd.f32 %v45, %v194
  %196 = vadd.xlane.f32.xlu0 %v195
  %v197 = vpop.xlane.xlu0 %196
  %v198 = vsel %vm161, %v48, 0.0
  %v199 = vadd.f32 %v47, %v198
  %200 = vadd.xlane.f32.xlu0 %v199
  %v201 = vpop.xlane.xlu0 %200
  %v202 = vsel %vm161, %v50, 0.0
  %v203 = vadd.f32 %v49, %v202
  %204 = vadd.xlane.f32.xlu0 %v203
  %v205 = vpop.xlane.xlu0 %204
  %v206 = vsel %vm161, %v52, 0.0
  %v207 = vadd.f32 %v51, %v206
  %208 = vadd.xlane.f32.xlu0 %v207
  %v209 = vpop.xlane.xlu0 %208
  %v210 = vsel %vm161, %v54, 0.0
  %v211 = vadd.f32 %v53, %v210
  %212 = vadd.xlane.f32.xlu0 %v211
  %v213 = vpop.xlane.xlu0 %212
  %v214 = vsel %vm161, %v56, 0.0
  %v215 = vadd.f32 %v55, %v214
  %216 = vadd.xlane.f32.xlu0 %v215
  %v217 = vpop.xlane.xlu0 %216
  %v218 = vsel %vm161, %v58, 0.0
  %v219 = vadd.f32 %v57, %v218
  %220 = vadd.xlane.f32.xlu0 %v219
  %v221 = vpop.xlane.xlu0 %220
  %v222 = vsel %vm161, %v60, 0.0
  %v223 = vadd.f32 %v59, %v222
  %224 = vadd.xlane.f32.xlu0 %v223
  %v225 = vpop.xlane.xlu0 %224
  %v226 = vsel %vm161, %v62, 0.0
  %v227 = vadd.f32 %v61, %v226
  %228 = vadd.xlane.f32.xlu0 %v227
  %v229 = vpop.xlane.xlu0 %228
  %v230 = vsel %vm161, %v64, 0.0
  %v231 = vadd.f32 %v63, %v230
  %232 = vadd.xlane.f32.xlu0 %v231
  %v233 = vpop.xlane.xlu0 %232
  %v234 = vsel %vm161, %v66, 0.0
  %v235 = vadd.f32 %v65, %v234
  %236 = vadd.xlane.f32.xlu0 %v235
  %v237 = vpop.xlane.xlu0 %236
  %v238 = vsel %vm161, %v68, 0.0
  %v239 = vadd.f32 %v67, %v238
  %240 = vadd.xlane.f32.xlu0 %v239
  %v241 = vpop.xlane.xlu0 %240
  %v242 = vsel %vm161, %v70, 0.0
  %v243 = vadd.f32 %v69, %v242
  %244 = vadd.xlane.f32.xlu0 %v243
  %v245 = vpop.xlane.xlu0 %244
  %v246 = vsel %vm161, %v72, 0.0
  %v247 = vadd.f32 %v71, %v246
  %248 = vadd.xlane.f32.xlu0 %v247
  %v249 = vpop.xlane.xlu0 %248
  %v250 = vsel %vm161, %v74, 0.0
  %v251 = vadd.f32 %v73, %v250
  %252 = vadd.xlane.f32.xlu0 %v251
  %v253 = vpop.xlane.xlu0 %252
  %v254 = vsel %vm161, %v76, 0.0
  %v255 = vadd.f32 %v75, %v254
  %256 = vadd.xlane.f32.xlu0 %v255
  %v257 = vpop.xlane.xlu0 %256
  %v258 = vsel %vm161, %v78, 0.0
  %v259 = vadd.f32 %v77, %v258
  %260 = vadd.xlane.f32.xlu0 %v259
  %v261 = vpop.xlane.xlu0 %260
  %v262 = vsel %vm161, %v80, 0.0
  %v263 = vadd.f32 %v79, %v262
  %264 = vadd.xlane.f32.xlu0 %v263
  %v265 = vpop.xlane.xlu0 %264
  %v266 = vsel %vm161, %v82, 0.0
  %v267 = vadd.f32 %v81, %v266
  %268 = vadd.xlane.f32.xlu0 %v267
  %v269 = vpop.xlane.xlu0 %268
  %v270 = vsel %vm161, %v84, 0.0
  %v271 = vadd.f32 %v83, %v270
  %272 = vadd.xlane.f32.xlu0 %v271
  %v273 = vpop.xlane.xlu0 %272
  %v274 = vsel %vm161, %v86, 0.0
  %v275 = vadd.f32 %v85, %v274
  %276 = vadd.xlane.f32.xlu0 %v275
  %v277 = vpop.xlane.xlu0 %276
  %v278 = vsel %vm161, %v88, 0.0
  %v279 = vadd.f32 %v87, %v278
  %280 = vadd.xlane.f32.xlu0 %v279
  %v281 = vpop.xlane.xlu0 %280
  %v282 = vsel %vm161, %v90, 0.0
  %v283 = vadd.f32 %v89, %v282
  %284 = vadd.xlane.f32.xlu0 %v283
  %v285 = vpop.xlane.xlu0 %284
  %v286 = vsel %vm161, %v92, 0.0
  %v287 = vadd.f32 %v91, %v286
  %288 = vadd.xlane.f32.xlu0 %v287
  %v289 = vpop.xlane.xlu0 %288
  %v290 = vsel %vm161, %v94, 0.0
  %v291 = vadd.f32 %v93, %v290
  %292 = vadd.xlane.f32.xlu0 %v291
  %v293 = vpop.xlane.xlu0 %292
  %v294 = vsel %vm161, %v96, 0.0
  %v295 = vadd.f32 %v95, %v294
  %296 = vadd.xlane.f32.xlu0 %v295
  %v297 = vpop.xlane.xlu0 %296
  %v298 = vsel %vm161, %v98, 0.0
  %v299 = vadd.f32 %v97, %v298
  %300 = vadd.xlane.f32.xlu0 %v299
  %v301 = vpop.xlane.xlu0 %300
  %v302 = vsel %vm161, %v100, 0.0
  %v303 = vadd.f32 %v99, %v302
  %304 = vadd.xlane.f32.xlu0 %v303
  %v305 = vpop.xlane.xlu0 %304
  %v306 = vsel %vm161, %v102, 0.0
  %v307 = vadd.f32 %v101, %v306
  %308 = vadd.xlane.f32.xlu0 %v307
  %v309 = vpop.xlane.xlu0 %308
  %v310 = vsel %vm161, %v104, 0.0
  %v311 = vadd.f32 %v103, %v310
  %312 = vadd.xlane.f32.xlu0 %v311
  %v313 = vpop.xlane.xlu0 %312
  %v314 = vsel %vm161, %v106, 0.0
  %v315 = vadd.f32 %v105, %v314
  %316 = vadd.xlane.f32.xlu0 %v315
  %v317 = vpop.xlane.xlu0 %316
  %v318 = vsel %vm161, %v108, 0.0
  %v319 = vadd.f32 %v107, %v318
  %320 = vadd.xlane.f32.xlu0 %v319
  %v321 = vpop.xlane.xlu0 %320
  %v322 = vsel %vm161, %v110, 0.0
  %v323 = vadd.f32 %v109, %v322
  %324 = vadd.xlane.f32.xlu0 %v323
  %v325 = vpop.xlane.xlu0 %324
  %v326 = vsel %vm161, %v112, 0.0
  %v327 = vadd.f32 %v111, %v326
  %328 = vadd.xlane.f32.xlu0 %v327
  %v329 = vpop.xlane.xlu0 %328
  %v330 = vsel %vm161, %v114, 0.0
  %v331 = vadd.f32 %v113, %v330
  %332 = vadd.xlane.f32.xlu0 %v331
  %v333 = vpop.xlane.xlu0 %332
  %v334 = vsel %vm161, %v116, 0.0
  %v335 = vadd.f32 %v115, %v334
  %336 = vadd.xlane.f32.xlu0 %v335
  %v337 = vpop.xlane.xlu0 %336
  %v338 = vsel %vm161, %v118, 0.0
  %v339 = vadd.f32 %v117, %v338
  %340 = vadd.xlane.f32.xlu0 %v339
  %v341 = vpop.xlane.xlu0 %340
  %v342 = vsel %vm161, %v120, 0.0
  %v343 = vadd.f32 %v119, %v342
  %344 = vadd.xlane.f32.xlu0 %v343
  %v345 = vpop.xlane.xlu0 %344
  %v346 = vsel %vm161, %v122, 0.0
  %v347 = vadd.f32 %v121, %v346
  %348 = vadd.xlane.f32.xlu0 %v347
  %v349 = vpop.xlane.xlu0 %348
  %v350 = vsel %vm161, %v124, 0.0
  %v351 = vadd.f32 %v123, %v350
  %352 = vadd.xlane.f32.xlu0 %v351
  %v353 = vpop.xlane.xlu0 %352
  %v354 = vsel %vm161, %v126, 0.0
  %v355 = vadd.f32 %v125, %v354
  %356 = vadd.xlane.f32.xlu0 %v355
  %v357 = vpop.xlane.xlu0 %356
  %v358 = vsel %vm161, %v128, 0.0
  %v359 = vadd.f32 %v127, %v358
  %360 = vadd.xlane.f32.xlu0 %v359
  %v361 = vpop.xlane.xlu0 %360
  %v362 = vsel %vm161, %v130, 0.0
  %v363 = vadd.f32 %v129, %v362
  %364 = vadd.xlane.f32.xlu0 %v363
  %v365 = vpop.xlane.xlu0 %364
  %v366 = vsel %vm161, %v132, 0.0
  %v367 = vadd.f32 %v131, %v366
  %368 = vadd.xlane.f32.xlu0 %v367
  %v369 = vpop.xlane.xlu0 %368
  %v370 = vsel %vm161, %v134, 0.0
  %v371 = vadd.f32 %v133, %v370
  %372 = vadd.xlane.f32.xlu0 %v371
  %v373 = vpop.xlane.xlu0 %372
  %v374 = vsel %vm161, %v136, 0.0
  %v375 = vadd.f32 %v135, %v374
  %376 = vadd.xlane.f32.xlu0 %v375
  %v377 = vpop.xlane.xlu0 %376
  %v378 = vsel %vm161, %v138, 0.0
  %v379 = vadd.f32 %v137, %v378
  %380 = vadd.xlane.f32.xlu0 %v379
  %v381 = vpop.xlane.xlu0 %380
  %v382 = vsel %vm161, %v140, 0.0
  %v383 = vadd.f32 %v139, %v382
  %384 = vadd.xlane.f32.xlu0 %v383
  %v385 = vpop.xlane.xlu0 %384
  %v386 = vsel %vm161, %v142, 0.0
  %v387 = vadd.f32 %v141, %v386
  %388 = vadd.xlane.f32.xlu0 %v387
  %v389 = vpop.xlane.xlu0 %388
  %v390 = vsel %vm161, %v144, 0.0
  %v391 = vadd.f32 %v143, %v390
  %392 = vadd.xlane.f32.xlu0 %v391
  %v393 = vpop.xlane.xlu0 %392
  %v394 = vsel %vm161, %v146, 0.0
  %v395 = vadd.f32 %v145, %v394
  %396 = vadd.xlane.f32.xlu0 %v395
  %v397 = vpop.xlane.xlu0 %396
  %v398 = vsel %vm161, %v148, 0.0
  %v399 = vadd.f32 %v147, %v398
  %400 = vadd.xlane.f32.xlu0 %v399
  %v401 = vpop.xlane.xlu0 %400
  %v402 = vsel %vm161, %v150, 0.0
  %v403 = vadd.f32 %v149, %v402
  %404 = vadd.xlane.f32.xlu0 %v403
  %v405 = vpop.xlane.xlu0 %404
  %v406 = vsel %vm161, %v152, 0.0
  %v407 = vadd.f32 %v151, %v406
  %408 = vadd.xlane.f32.xlu0 %v407
  %v409 = vpop.xlane.xlu0 %408
  %v410 = vsel %vm161, %v154, 0.0
  %v411 = vadd.f32 %v153, %v410
  %412 = vadd.xlane.f32.xlu0 %v411
  %v413 = vpop.xlane.xlu0 %412
  %v414 = vsel %vm161, %v156, 0.0
  %v415 = vadd.f32 %v155, %v414
  %416 = vadd.xlane.f32.xlu0 %v415
  %v417 = vpop.xlane.xlu0 %416
  %v418 = vsel %vm161, %v158, 0.0
  %v419 = vadd.f32 %v157, %v418
  %420 = vadd.xlane.f32.xlu0 %v419
  %v421 = vpop.xlane.xlu0 %420
  %v422 = vsel %vm161, %v160, 0.0
  %v423 = vadd.f32 %v159, %v422
  %424 = vadd.xlane.f32.xlu0 %v423
  %v425 = vpop.xlane.xlu0 %424
  %v426 = vmul.f32 %v29, %v29
  %v427 = vmul.f32 %v30, %v30
  %v428 = vmul.f32 %v31, %v31
  %v429 = vmul.f32 %v32, %v32
  %v430 = vmul.f32 %v33, %v33
  %v431 = vmul.f32 %v34, %v34
  %v432 = vmul.f32 %v35, %v35
  %v433 = vmul.f32 %v36, %v36
  %v434 = vmul.f32 %v37, %v37
  %v435 = vmul.f32 %v38, %v38
  %v436 = vmul.f32 %v39, %v39
  %v437 = vmul.f32 %v40, %v40
  %v438 = vmul.f32 %v41, %v41
  %v439 = vmul.f32 %v42, %v42
  %v440 = vmul.f32 %v43, %v43
  %v441 = vmul.f32 %v44, %v44
  %v442 = vmul.f32 %v45, %v45
  %v443 = vmul.f32 %v46, %v46
  %v444 = vmul.f32 %v47, %v47
  %v445 = vmul.f32 %v48, %v48
  %v446 = vmul.f32 %v49, %v49
  %v447 = vmul.f32 %v50, %v50
  %v448 = vmul.f32 %v51, %v51
  %v449 = vmul.f32 %v52, %v52
  %v450 = vmul.f32 %v53, %v53
  %v451 = vmul.f32 %v54, %v54
  %v452 = vmul.f32 %v55, %v55
  %v453 = vmul.f32 %v56, %v56
  %v454 = vmul.f32 %v57, %v57
  %v455 = vmul.f32 %v58, %v58
  %v456 = vmul.f32 %v59, %v59
  %v457 = vmul.f32 %v60, %v60
  %v458 = vmul.f32 %v61, %v61
  %v459 = vmul.f32 %v62, %v62
  %v460 = vmul.f32 %v63, %v63
  %v461 = vmul.f32 %v64, %v64
  %v462 = vmul.f32 %v65, %v65
  %v463 = vmul.f32 %v66, %v66
  %v464 = vmul.f32 %v67, %v67
  %v465 = vmul.f32 %v68, %v68
  %v466 = vmul.f32 %v69, %v69
  %v467 = vmul.f32 %v70, %v70
  %v468 = vmul.f32 %v71, %v71
  %v469 = vmul.f32 %v72, %v72
  %v470 = vmul.f32 %v73, %v73
  %v471 = vmul.f32 %v74, %v74
  %v472 = vmul.f32 %v75, %v75
  %v473 = vmul.f32 %v76, %v76
  %v474 = vmul.f32 %v77, %v77
  %v475 = vmul.f32 %v78, %v78
  %v476 = vmul.f32 %v79, %v79
  %v477 = vmul.f32 %v80, %v80
  %v478 = vmul.f32 %v81, %v81
  %v479 = vmul.f32 %v82, %v82
  %v480 = vmul.f32 %v83, %v83
  %v481 = vmul.f32 %v84, %v84
  %v482 = vmul.f32 %v85, %v85
  %v483 = vmul.f32 %v86, %v86
  %v484 = vmul.f32 %v87, %v87
  %v485 = vmul.f32 %v88, %v88
  %v486 = vmul.f32 %v89, %v89
  %v487 = vmul.f32 %v90, %v90
  %v488 = vmul.f32 %v91, %v91
  %v489 = vmul.f32 %v92, %v92
  %v490 = vmul.f32 %v93, %v93
  %v491 = vmul.f32 %v94, %v94
  %v492 = vmul.f32 %v95, %v95
  %v493 = vmul.f32 %v96, %v96
  %v494 = vmul.f32 %v97, %v97
  %v495 = vmul.f32 %v98, %v98
  %v496 = vmul.f32 %v99, %v99
  %v497 = vmul.f32 %v100, %v100
  %v498 = vmul.f32 %v101, %v101
  %v499 = vmul.f32 %v102, %v102
  %v500 = vmul.f32 %v103, %v103
  %v501 = vmul.f32 %v104, %v104
  %v502 = vmul.f32 %v105, %v105
  %v503 = vmul.f32 %v106, %v106
  %v504 = vmul.f32 %v107, %v107
  %v505 = vmul.f32 %v108, %v108
  %v506 = vmul.f32 %v109, %v109
  %v507 = vmul.f32 %v110, %v110
  %v508 = vmul.f32 %v111, %v111
  %v509 = vmul.f32 %v112, %v112
  %v510 = vmul.f32 %v113, %v113
  %v511 = vmul.f32 %v114, %v114
  %v512 = vmul.f32 %v115, %v115
  %v513 = vmul.f32 %v116, %v116
  %v514 = vmul.f32 %v117, %v117
  %v515 = vmul.f32 %v118, %v118
  %v516 = vmul.f32 %v119, %v119
  %v517 = vmul.f32 %v120, %v120
  %v518 = vmul.f32 %v121, %v121
  %v519 = vmul.f32 %v122, %v122
  %v520 = vmul.f32 %v123, %v123
  %v521 = vmul.f32 %v124, %v124
  %v522 = vmul.f32 %v125, %v125
  %v523 = vmul.f32 %v126, %v126
  %v524 = vmul.f32 %v127, %v127
  %v525 = vmul.f32 %v128, %v128
  %v526 = vmul.f32 %v129, %v129
  %v527 = vmul.f32 %v130, %v130
  %v528 = vmul.f32 %v131, %v131
  %v529 = vmul.f32 %v132, %v132
  %v530 = vmul.f32 %v133, %v133
  %v531 = vmul.f32 %v134, %v134
  %v532 = vmul.f32 %v135, %v135
  %v533 = vmul.f32 %v136, %v136
  %v534 = vmul.f32 %v137, %v137
  %v535 = vmul.f32 %v138, %v138
  %v536 = vmul.f32 %v139, %v139
  %v537 = vmul.f32 %v140, %v140
  %v538 = vmul.f32 %v141, %v141
  %v539 = vmul.f32 %v142, %v142
  %v540 = vmul.f32 %v143, %v143
  %v541 = vmul.f32 %v144, %v144
  %v542 = vmul.f32 %v145, %v145
  %v543 = vmul.f32 %v146, %v146
  %v544 = vmul.f32 %v147, %v147
  %v545 = vmul.f32 %v148, %v148
  %v546 = vmul.f32 %v149, %v149
  %v547 = vmul.f32 %v150, %v150
  %v548 = vmul.f32 %v151, %v151
  %v549 = vmul.f32 %v152, %v152
  %v550 = vmul.f32 %v153, %v153
  %v551 = vmul.f32 %v154, %v154
  %v552 = vmul.f32 %v155, %v155
  %v553 = vmul.f32 %v156, %v156
  %v554 = vmul.f32 %v157, %v157
  %v555 = vmul.f32 %v158, %v158
  %v556 = vmul.f32 %v159, %v159
  %v557 = vmul.f32 %v160, %v160
  %v558 = vsel %vm161, %v427, 0.0
  %v559 = vadd.f32 %v426, %v558
  %560 = vadd.xlane.f32.xlu0 %v559
  %v561 = vpop.xlane.xlu0 %560
  %v562 = vsel %vm161, %v429, 0.0
  %v563 = vadd.f32 %v428, %v562
  %564 = vadd.xlane.f32.xlu0 %v563
  %v565 = vpop.xlane.xlu0 %564
  %v566 = vsel %vm161, %v431, 0.0
  %v567 = vadd.f32 %v430, %v566
  %568 = vadd.xlane.f32.xlu0 %v567
  %v569 = vpop.xlane.xlu0 %568
  %v570 = vsel %vm161, %v433, 0.0
  %v571 = vadd.f32 %v432, %v570
  %572 = vadd.xlane.f32.xlu0 %v571
  %v573 = vpop.xlane.xlu0 %572
  %v574 = vsel %vm161, %v435, 0.0
  %v575 = vadd.f32 %v434, %v574
  %576 = vadd.xlane.f32.xlu0 %v575
  %v577 = vpop.xlane.xlu0 %576
  %v578 = vsel %vm161, %v437, 0.0
  %v579 = vadd.f32 %v436, %v578
  %580 = vadd.xlane.f32.xlu0 %v579
  %v581 = vpop.xlane.xlu0 %580
  %v582 = vsel %vm161, %v439, 0.0
  %v583 = vadd.f32 %v438, %v582
  %584 = vadd.xlane.f32.xlu0 %v583
  %v585 = vpop.xlane.xlu0 %584
  %v586 = vsel %vm161, %v441, 0.0
  %v587 = vadd.f32 %v440, %v586
  %588 = vadd.xlane.f32.xlu0 %v587
  %v589 = vpop.xlane.xlu0 %588
  %v590 = vsel %vm161, %v443, 0.0
  %v591 = vadd.f32 %v442, %v590
  %592 = vadd.xlane.f32.xlu0 %v591
  %v593 = vpop.xlane.xlu0 %592
  %v594 = vsel %vm161, %v445, 0.0
  %v595 = vadd.f32 %v444, %v594
  %596 = vadd.xlane.f32.xlu0 %v595
  %v597 = vpop.xlane.xlu0 %596
  %v598 = vsel %vm161, %v447, 0.0
  %v599 = vadd.f32 %v446, %v598
  %600 = vadd.xlane.f32.xlu0 %v599
  %v601 = vpop.xlane.xlu0 %600
  %v602 = vsel %vm161, %v449, 0.0
  %v603 = vadd.f32 %v448, %v602
  %604 = vadd.xlane.f32.xlu0 %v603
  %v605 = vpop.xlane.xlu0 %604
  %v606 = vsel %vm161, %v451, 0.0
  %v607 = vadd.f32 %v450, %v606
  %608 = vadd.xlane.f32.xlu0 %v607
  %v609 = vpop.xlane.xlu0 %608
  %v610 = vsel %vm161, %v453, 0.0
  %v611 = vadd.f32 %v452, %v610
  %612 = vadd.xlane.f32.xlu0 %v611
  %v613 = vpop.xlane.xlu0 %612
  %v614 = vsel %vm161, %v455, 0.0
  %v615 = vadd.f32 %v454, %v614
  %616 = vadd.xlane.f32.xlu0 %v615
  %v617 = vpop.xlane.xlu0 %616
  %v618 = vsel %vm161, %v457, 0.0
  %v619 = vadd.f32 %v456, %v618
  %620 = vadd.xlane.f32.xlu0 %v619
  %v621 = vpop.xlane.xlu0 %620
  %v622 = vsel %vm161, %v459, 0.0
  %v623 = vadd.f32 %v458, %v622
  %624 = vadd.xlane.f32.xlu0 %v623
  %v625 = vpop.xlane.xlu0 %624
  %v626 = vsel %vm161, %v461, 0.0
  %v627 = vadd.f32 %v460, %v626
  %628 = vadd.xlane.f32.xlu0 %v627
  %v629 = vpop.xlane.xlu0 %628
  %v630 = vsel %vm161, %v463, 0.0
  %v631 = vadd.f32 %v462, %v630
  %632 = vadd.xlane.f32.xlu0 %v631
  %v633 = vpop.xlane.xlu0 %632
  %v634 = vsel %vm161, %v465, 0.0
  %v635 = vadd.f32 %v464, %v634
  %636 = vadd.xlane.f32.xlu0 %v635
  %v637 = vpop.xlane.xlu0 %636
  %v638 = vsel %vm161, %v467, 0.0
  %v639 = vadd.f32 %v466, %v638
  %640 = vadd.xlane.f32.xlu0 %v639
  %v641 = vpop.xlane.xlu0 %640
  %v642 = vsel %vm161, %v469, 0.0
  %v643 = vadd.f32 %v468, %v642
  %644 = vadd.xlane.f32.xlu0 %v643
  %v645 = vpop.xlane.xlu0 %644
  %v646 = vsel %vm161, %v471, 0.0
  %v647 = vadd.f32 %v470, %v646
  %648 = vadd.xlane.f32.xlu0 %v647
  %v649 = vpop.xlane.xlu0 %648
  %v650 = vsel %vm161, %v473, 0.0
  %v651 = vadd.f32 %v472, %v650
  %652 = vadd.xlane.f32.xlu0 %v651
  %v653 = vpop.xlane.xlu0 %652
  %v654 = vsel %vm161, %v475, 0.0
  %v655 = vadd.f32 %v474, %v654
  %656 = vadd.xlane.f32.xlu0 %v655
  %v657 = vpop.xlane.xlu0 %656
  %v658 = vsel %vm161, %v477, 0.0
  %v659 = vadd.f32 %v476, %v658
  %660 = vadd.xlane.f32.xlu0 %v659
  %v661 = vpop.xlane.xlu0 %660
  %v662 = vsel %vm161, %v479, 0.0
  %v663 = vadd.f32 %v478, %v662
  %664 = vadd.xlane.f32.xlu0 %v663
  %v665 = vpop.xlane.xlu0 %664
  %v666 = vsel %vm161, %v481, 0.0
  %v667 = vadd.f32 %v480, %v666
  %668 = vadd.xlane.f32.xlu0 %v667
  %v669 = vpop.xlane.xlu0 %668
  %v670 = vsel %vm161, %v483, 0.0
  %v671 = vadd.f32 %v482, %v670
  %672 = vadd.xlane.f32.xlu0 %v671
  %v673 = vpop.xlane.xlu0 %672
  %v674 = vsel %vm161, %v485, 0.0
  %v675 = vadd.f32 %v484, %v674
  %676 = vadd.xlane.f32.xlu0 %v675
  %v677 = vpop.xlane.xlu0 %676
  %v678 = vsel %vm161, %v487, 0.0
  %v679 = vadd.f32 %v486, %v678
  %680 = vadd.xlane.f32.xlu0 %v679
  %v681 = vpop.xlane.xlu0 %680
  %v682 = vsel %vm161, %v489, 0.0
  %v683 = vadd.f32 %v488, %v682
  %684 = vadd.xlane.f32.xlu0 %v683
  %v685 = vpop.xlane.xlu0 %684
  %v686 = vsel %vm161, %v491, 0.0
  %v687 = vadd.f32 %v490, %v686
  %688 = vadd.xlane.f32.xlu0 %v687
  %v689 = vpop.xlane.xlu0 %688
  %v690 = vsel %vm161, %v493, 0.0
  %v691 = vadd.f32 %v492, %v690
  %692 = vadd.xlane.f32.xlu0 %v691
  %v693 = vpop.xlane.xlu0 %692
  %v694 = vsel %vm161, %v495, 0.0
  %v695 = vadd.f32 %v494, %v694
  %696 = vadd.xlane.f32.xlu0 %v695
  %v697 = vpop.xlane.xlu0 %696
  %v698 = vsel %vm161, %v497, 0.0
  %v699 = vadd.f32 %v496, %v698
  %700 = vadd.xlane.f32.xlu0 %v699
  %v701 = vpop.xlane.xlu0 %700
  %v702 = vsel %vm161, %v499, 0.0
  %v703 = vadd.f32 %v498, %v702
  %704 = vadd.xlane.f32.xlu0 %v703
  %v705 = vpop.xlane.xlu0 %704
  %v706 = vsel %vm161, %v501, 0.0
  %v707 = vadd.f32 %v500, %v706
  %708 = vadd.xlane.f32.xlu0 %v707
  %v709 = vpop.xlane.xlu0 %708
  %v710 = vsel %vm161, %v503, 0.0
  %v711 = vadd.f32 %v502, %v710
  %712 = vadd.xlane.f32.xlu0 %v711
  %v713 = vpop.xlane.xlu0 %712
  %v714 = vsel %vm161, %v505, 0.0
  %v715 = vadd.f32 %v504, %v714
  %716 = vadd.xlane.f32.xlu0 %v715
  %v717 = vpop.xlane.xlu0 %716
  %v718 = vsel %vm161, %v507, 0.0
  %v719 = vadd.f32 %v506, %v718
  %720 = vadd.xlane.f32.xlu0 %v719
  %v721 = vpop.xlane.xlu0 %720
  %v722 = vsel %vm161, %v509, 0.0
  %v723 = vadd.f32 %v508, %v722
  %724 = vadd.xlane.f32.xlu0 %v723
  %v725 = vpop.xlane.xlu0 %724
  %v726 = vsel %vm161, %v511, 0.0
  %v727 = vadd.f32 %v510, %v726
  %728 = vadd.xlane.f32.xlu0 %v727
  %v729 = vpop.xlane.xlu0 %728
  %v730 = vsel %vm161, %v513, 0.0
  %v731 = vadd.f32 %v512, %v730
  %732 = vadd.xlane.f32.xlu0 %v731
  %v733 = vpop.xlane.xlu0 %732
  %v734 = vsel %vm161, %v515, 0.0
  %v735 = vadd.f32 %v514, %v734
  %736 = vadd.xlane.f32.xlu0 %v735
  %v737 = vpop.xlane.xlu0 %736
  %v738 = vsel %vm161, %v517, 0.0
  %v739 = vadd.f32 %v516, %v738
  %740 = vadd.xlane.f32.xlu0 %v739
  %v741 = vpop.xlane.xlu0 %740
  %v742 = vsel %vm161, %v519, 0.0
  %v743 = vadd.f32 %v518, %v742
  %744 = vadd.xlane.f32.xlu0 %v743
  %v745 = vpop.xlane.xlu0 %744
  %v746 = vsel %vm161, %v521, 0.0
  %v747 = vadd.f32 %v520, %v746
  %748 = vadd.xlane.f32.xlu0 %v747
  %v749 = vpop.xlane.xlu0 %748
  %v750 = vsel %vm161, %v523, 0.0
  %v751 = vadd.f32 %v522, %v750
  %752 = vadd.xlane.f32.xlu0 %v751
  %v753 = vpop.xlane.xlu0 %752
  %v754 = vsel %vm161, %v525, 0.0
  %v755 = vadd.f32 %v524, %v754
  %756 = vadd.xlane.f32.xlu0 %v755
  %v757 = vpop.xlane.xlu0 %756
  %v758 = vsel %vm161, %v527, 0.0
  %v759 = vadd.f32 %v526, %v758
  %760 = vadd.xlane.f32.xlu0 %v759
  %v761 = vpop.xlane.xlu0 %760
  %v762 = vsel %vm161, %v529, 0.0
  %v763 = vadd.f32 %v528, %v762
  %764 = vadd.xlane.f32.xlu0 %v763
  %v765 = vpop.xlane.xlu0 %764
  %v766 = vsel %vm161, %v531, 0.0
  %v767 = vadd.f32 %v530, %v766
  %768 = vadd.xlane.f32.xlu0 %v767
  %v769 = vpop.xlane.xlu0 %768
  %v770 = vsel %vm161, %v533, 0.0
  %v771 = vadd.f32 %v532, %v770
  %772 = vadd.xlane.f32.xlu0 %v771
  %v773 = vpop.xlane.xlu0 %772
  %v774 = vsel %vm161, %v535, 0.0
  %v775 = vadd.f32 %v534, %v774
  %776 = vadd.xlane.f32.xlu0 %v775
  %v777 = vpop.xlane.xlu0 %776
  %v778 = vsel %vm161, %v537, 0.0
  %v779 = vadd.f32 %v536, %v778
  %780 = vadd.xlane.f32.xlu0 %v779
  %v781 = vpop.xlane.xlu0 %780
  %v782 = vsel %vm161, %v539, 0.0
  %v783 = vadd.f32 %v538, %v782
  %784 = vadd.xlane.f32.xlu0 %v783
  %v785 = vpop.xlane.xlu0 %784
  %v786 = vsel %vm161, %v541, 0.0
  %v787 = vadd.f32 %v540, %v786
  %788 = vadd.xlane.f32.xlu0 %v787
  %v789 = vpop.xlane.xlu0 %788
  %v790 = vsel %vm161, %v543, 0.0
  %v791 = vadd.f32 %v542, %v790
  %792 = vadd.xlane.f32.xlu0 %v791
  %v793 = vpop.xlane.xlu0 %792
  %v794 = vsel %vm161, %v545, 0.0
  %v795 = vadd.f32 %v544, %v794
  %796 = vadd.xlane.f32.xlu0 %v795
  %v797 = vpop.xlane.xlu0 %796
  %v798 = vsel %vm161, %v547, 0.0
  %v799 = vadd.f32 %v546, %v798
  %800 = vadd.xlane.f32.xlu0 %v799
  %v801 = vpop.xlane.xlu0 %800
  %v802 = vsel %vm161, %v549, 0.0
  %v803 = vadd.f32 %v548, %v802
  %804 = vadd.xlane.f32.xlu0 %v803
  %v805 = vpop.xlane.xlu0 %804
  %v806 = vsel %vm161, %v551, 0.0
  %v807 = vadd.f32 %v550, %v806
  %808 = vadd.xlane.f32.xlu0 %v807
  %v809 = vpop.xlane.xlu0 %808
  %v810 = vsel %vm161, %v553, 0.0
  %v811 = vadd.f32 %v552, %v810
  %812 = vadd.xlane.f32.xlu0 %v811
  %v813 = vpop.xlane.xlu0 %812
  %v814 = vsel %vm161, %v555, 0.0
  %v815 = vadd.f32 %v554, %v814
  %816 = vadd.xlane.f32.xlu0 %v815
  %v817 = vpop.xlane.xlu0 %816
  %v818 = vsel %vm161, %v557, 0.0
  %v819 = vadd.f32 %v556, %v818
  %820 = vadd.xlane.f32.xlu0 %v819
  %v821 = vpop.xlane.xlu0 %820
  %v822 = vmul.f32 %v165, 0.0051020407
  %v823 = vmul.f32 %v169, 0.0051020407
  %v824 = vmul.f32 %v173, 0.0051020407
  %v825 = vmul.f32 %v177, 0.0051020407
  %v826 = vmul.f32 %v181, 0.0051020407
  %v827 = vmul.f32 %v185, 0.0051020407
  %v828 = vmul.f32 %v189, 0.0051020407
  %v829 = vmul.f32 %v193, 0.0051020407
  %v830 = vmul.f32 %v197, 0.0051020407
  %v831 = vmul.f32 %v201, 0.0051020407
  %v832 = vmul.f32 %v205, 0.0051020407
  %v833 = vmul.f32 %v209, 0.0051020407
  %v834 = vmul.f32 %v213, 0.0051020407
  %v835 = vmul.f32 %v217, 0.0051020407
  %v836 = vmul.f32 %v221, 0.0051020407
  %v837 = vmul.f32 %v225, 0.0051020407
  %v838 = vmul.f32 %v229, 0.0051020407
  %v839 = vmul.f32 %v233, 0.0051020407
  %v840 = vmul.f32 %v237, 0.0051020407
  %v841 = vmul.f32 %v241, 0.0051020407
  %v842 = vmul.f32 %v245, 0.0051020407
  %v843 = vmul.f32 %v249, 0.0051020407
  %v844 = vmul.f32 %v253, 0.0051020407
  %v845 = vmul.f32 %v257, 0.0051020407
  %v846 = vmul.f32 %v261, 0.0051020407
  %v847 = vmul.f32 %v265, 0.0051020407
  %v848 = vmul.f32 %v269, 0.0051020407
  %v849 = vmul.f32 %v273, 0.0051020407
  %v850 = vmul.f32 %v277, 0.0051020407
  %v851 = vmul.f32 %v281, 0.0051020407
  %v852 = vmul.f32 %v285, 0.0051020407
  %v853 = vmul.f32 %v289, 0.0051020407
  %v854 = vmul.f32 %v293, 0.0051020407
  %v855 = vmul.f32 %v297, 0.0051020407
  %v856 = vmul.f32 %v301, 0.0051020407
  %v857 = vmul.f32 %v305, 0.0051020407
  %v858 = vmul.f32 %v309, 0.0051020407
  %v859 = vmul.f32 %v313, 0.0051020407
  %v860 = vmul.f32 %v317, 0.0051020407
  %v861 = vmul.f32 %v321, 0.0051020407
  %v862 = vmul.f32 %v325, 0.0051020407
  %v863 = vmul.f32 %v329, 0.0051020407
  %v864 = vmul.f32 %v333, 0.0051020407
  %v865 = vmul.f32 %v337, 0.0051020407
  %v866 = vmul.f32 %v341, 0.0051020407
  %v867 = vmul.f32 %v345, 0.0051020407
  %v868 = vmul.f32 %v349, 0.0051020407
  %v869 = vmul.f32 %v353, 0.0051020407
  %v870 = vmul.f32 %v357, 0.0051020407
  %v871 = vmul.f32 %v361, 0.0051020407
  %v872 = vmul.f32 %v365, 0.0051020407
  %v873 = vmul.f32 %v369, 0.0051020407
  %v874 = vmul.f32 %v373, 0.0051020407
  %v875 = vmul.f32 %v377, 0.0051020407
  %v876 = vmul.f32 %v381, 0.0051020407
  %v877 = vmul.f32 %v385, 0.0051020407
  %v878 = vmul.f32 %v389, 0.0051020407
  %v879 = vmul.f32 %v393, 0.0051020407
  %v880 = vmul.f32 %v397, 0.0051020407
  %v881 = vmul.f32 %v401, 0.0051020407
  %v882 = vmul.f32 %v405, 0.0051020407
  %v883 = vmul.f32 %v409, 0.0051020407
  %v884 = vmul.f32 %v413, 0.0051020407
  %v885 = vmul.f32 %v417, 0.0051020407
  %v886 = vmul.f32 %v421, 0.0051020407
  %v887 = vmul.f32 %v425, 0.0051020407
  %v888 = vmul.f32 %v561, 0.0051020407
  %v889 = vmul.f32 %v565, 0.0051020407
  %v890 = vmul.f32 %v569, 0.0051020407
  %v891 = vmul.f32 %v573, 0.0051020407
  %v892 = vmul.f32 %v577, 0.0051020407
  %v893 = vmul.f32 %v581, 0.0051020407
  %v894 = vmul.f32 %v585, 0.0051020407
  %v895 = vmul.f32 %v589, 0.0051020407
  %v896 = vmul.f32 %v593, 0.0051020407
  %v897 = vmul.f32 %v597, 0.0051020407
  %v898 = vmul.f32 %v601, 0.0051020407
  %v899 = vmul.f32 %v605, 0.0051020407
  %v900 = vmul.f32 %v609, 0.0051020407
  %v901 = vmul.f32 %v613, 0.0051020407
  %v902 = vmul.f32 %v617, 0.0051020407
  %v903 = vmul.f32 %v621, 0.0051020407
  %v904 = vmul.f32 %v625, 0.0051020407
  %v905 = vmul.f32 %v629, 0.0051020407
  %v906 = vmul.f32 %v633, 0.0051020407
  %v907 = vmul.f32 %v637, 0.0051020407
  %v908 = vmul.f32 %v641, 0.0051020407
  %v909 = vmul.f32 %v645, 0.0051020407
  %v910 = vmul.f32 %v649, 0.0051020407
  %v911 = vmul.f32 %v653, 0.0051020407
  %v912 = vmul.f32 %v657, 0.0051020407
  %v913 = vmul.f32 %v661, 0.0051020407
  %v914 = vmul.f32 %v665, 0.0051020407
  %v915 = vmul.f32 %v669, 0.0051020407
  %v916 = vmul.f32 %v673, 0.0051020407
  %v917 = vmul.f32 %v677, 0.0051020407
  %v918 = vmul.f32 %v681, 0.0051020407
  %v919 = vmul.f32 %v685, 0.0051020407
  %v920 = vmul.f32 %v689, 0.0051020407
  %v921 = vmul.f32 %v693, 0.0051020407
  %v922 = vmul.f32 %v697, 0.0051020407
  %v923 = vmul.f32 %v701, 0.0051020407
  %v924 = vmul.f32 %v705, 0.0051020407
  %v925 = vmul.f32 %v709, 0.0051020407
  %v926 = vmul.f32 %v713, 0.0051020407
  %v927 = vmul.f32 %v717, 0.0051020407
  %v928 = vmul.f32 %v721, 0.0051020407
  %v929 = vmul.f32 %v725, 0.0051020407
  %v930 = vmul.f32 %v729, 0.0051020407
  %v931 = vmul.f32 %v733, 0.0051020407
  %v932 = vmul.f32 %v737, 0.0051020407
  %v933 = vmul.f32 %v741, 0.0051020407
  %v934 = vmul.f32 %v745, 0.0051020407
  %v935 = vmul.f32 %v749, 0.0051020407
  %v936 = vmul.f32 %v753, 0.0051020407
  %v937 = vmul.f32 %v757, 0.0051020407
  %v938 = vmul.f32 %v761, 0.0051020407
  %v939 = vmul.f32 %v765, 0.0051020407
  %v940 = vmul.f32 %v769, 0.0051020407
  %v941 = vmul.f32 %v773, 0.0051020407
  %v942 = vmul.f32 %v777, 0.0051020407
  %v943 = vmul.f32 %v781, 0.0051020407
  %v944 = vmul.f32 %v785, 0.0051020407
  %v945 = vmul.f32 %v789, 0.0051020407
  %v946 = vmul.f32 %v793, 0.0051020407
  %v947 = vmul.f32 %v797, 0.0051020407
  %v948 = vmul.f32 %v801, 0.0051020407
  %v949 = vmul.f32 %v805, 0.0051020407
  %v950 = vmul.f32 %v809, 0.0051020407
  %v951 = vmul.f32 %v813, 0.0051020407
  %v952 = vmul.f32 %v817, 0.0051020407
  %v953 = vmul.f32 %v821, 0.0051020407
  %v954 = vmul.f32 %v822, %v822
  %v955 = vmul.f32 %v823, %v823
  %v956 = vmul.f32 %v824, %v824
  %v957 = vmul.f32 %v825, %v825
  %v958 = vmul.f32 %v826, %v826
  %v959 = vmul.f32 %v827, %v827
  %v960 = vmul.f32 %v828, %v828
  %v961 = vmul.f32 %v829, %v829
  %v962 = vmul.f32 %v830, %v830
  %v963 = vmul.f32 %v831, %v831
  %v964 = vmul.f32 %v832, %v832
  %v965 = vmul.f32 %v833, %v833
  %v966 = vmul.f32 %v834, %v834
  %v967 = vmul.f32 %v835, %v835
  %v968 = vmul.f32 %v836, %v836
  %v969 = vmul.f32 %v837, %v837
  %v970 = vmul.f32 %v838, %v838
  %v971 = vmul.f32 %v839, %v839
  %v972 = vmul.f32 %v840, %v840
  %v973 = vmul.f32 %v841, %v841
  %v974 = vmul.f32 %v842, %v842
  %v975 = vmul.f32 %v843, %v843
  %v976 = vmul.f32 %v844, %v844
  %v977 = vmul.f32 %v845, %v845
  %v978 = vmul.f32 %v846, %v846
  %v979 = vmul.f32 %v847, %v847
  %v980 = vmul.f32 %v848, %v848
  %v981 = vmul.f32 %v849, %v849
  %v982 = vmul.f32 %v850, %v850
  %v983 = vmul.f32 %v851, %v851
  %v984 = vmul.f32 %v852, %v852
  %v985 = vmul.f32 %v853, %v853
  %v986 = vmul.f32 %v854, %v854
  %v987 = vmul.f32 %v855, %v855
  %v988 = vmul.f32 %v856, %v856
  %v989 = vmul.f32 %v857, %v857
  %v990 = vmul.f32 %v858, %v858
  %v991 = vmul.f32 %v859, %v859
  %v992 = vmul.f32 %v860, %v860
  %v993 = vmul.f32 %v861, %v861
  %v994 = vmul.f32 %v862, %v862
  %v995 = vmul.f32 %v863, %v863
  %v996 = vmul.f32 %v864, %v864
  %v997 = vmul.f32 %v865, %v865
  %v998 = vmul.f32 %v866, %v866
  %v999 = vmul.f32 %v867, %v867
  %v1000 = vmul.f32 %v868, %v868
  %v1001 = vmul.f32 %v869, %v869
  %v1002 = vmul.f32 %v870, %v870
  %v1003 = vmul.f32 %v871, %v871
  %v1004 = vmul.f32 %v872, %v872
  %v1005 = vmul.f32 %v873, %v873
  %v1006 = vmul.f32 %v874, %v874
  %v1007 = vmul.f32 %v875, %v875
  %v1008 = vmul.f32 %v876, %v876
  %v1009 = vmul.f32 %v877, %v877
  %v1010 = vmul.f32 %v878, %v878
  %v1011 = vmul.f32 %v879, %v879
  %v1012 = vmul.f32 %v880, %v880
  %v1013 = vmul.f32 %v881, %v881
  %v1014 = vmul.f32 %v882, %v882
  %v1015 = vmul.f32 %v883, %v883
  %v1016 = vmul.f32 %v884, %v884
  %v1017 = vmul.f32 %v885, %v885
  %v1018 = vmul.f32 %v886, %v886
  %v1019 = vmul.f32 %v887, %v887
  %v1020 = vsub.f32 %v888, %v954
  %v1021 = vsub.f32 %v889, %v955
  %v1022 = vsub.f32 %v890, %v956
  %v1023 = vsub.f32 %v891, %v957
  %v1024 = vsub.f32 %v892, %v958
  %v1025 = vsub.f32 %v893, %v959
  %v1026 = vsub.f32 %v894, %v960
  %v1027 = vsub.f32 %v895, %v961
  %v1028 = vsub.f32 %v896, %v962
  %v1029 = vsub.f32 %v897, %v963
  %v1030 = vsub.f32 %v898, %v964
  %v1031 = vsub.f32 %v899, %v965
  %v1032 = vsub.f32 %v900, %v966
  %v1033 = vsub.f32 %v901, %v967
  %v1034 = vsub.f32 %v902, %v968
  %v1035 = vsub.f32 %v903, %v969
  %v1036 = vsub.f32 %v904, %v970
  %v1037 = vsub.f32 %v905, %v971
  %v1038 = vsub.f32 %v906, %v972
  %v1039 = vsub.f32 %v907, %v973
  %v1040 = vsub.f32 %v908, %v974
  %v1041 = vsub.f32 %v909, %v975
  %v1042 = vsub.f32 %v910, %v976
  %v1043 = vsub.f32 %v911, %v977
  %v1044 = vsub.f32 %v912, %v978
  %v1045 = vsub.f32 %v913, %v979
  %v1046 = vsub.f32 %v914, %v980
  %v1047 = vsub.f32 %v915, %v981
  %v1048 = vsub.f32 %v916, %v982
  %v1049 = vsub.f32 %v917, %v983
  %v1050 = vsub.f32 %v918, %v984
  %v1051 = vsub.f32 %v919, %v985
  %v1052 = vsub.f32 %v920, %v986
  %v1053 = vsub.f32 %v921, %v987
  %v1054 = vsub.f32 %v922, %v988
  %v1055 = vsub.f32 %v923, %v989
  %v1056 = vsub.f32 %v924, %v990
  %v1057 = vsub.f32 %v925, %v991
  %v1058 = vsub.f32 %v926, %v992
  %v1059 = vsub.f32 %v927, %v993
  %v1060 = vsub.f32 %v928, %v994
  %v1061 = vsub.f32 %v929, %v995
  %v1062 = vsub.f32 %v930, %v996
  %v1063 = vsub.f32 %v931, %v997
  %v1064 = vsub.f32 %v932, %v998
  %v1065 = vsub.f32 %v933, %v999
  %v1066 = vsub.f32 %v934, %v1000
  %v1067 = vsub.f32 %v935, %v1001
  %v1068 = vsub.f32 %v936, %v1002
  %v1069 = vsub.f32 %v937, %v1003
  %v1070 = vsub.f32 %v938, %v1004
  %v1071 = vsub.f32 %v939, %v1005
  %v1072 = vsub.f32 %v940, %v1006
  %v1073 = vsub.f32 %v941, %v1007
  %v1074 = vsub.f32 %v942, %v1008
  %v1075 = vsub.f32 %v943, %v1009
  %v1076 = vsub.f32 %v944, %v1010
  %v1077 = vsub.f32 %v945, %v1011
  %v1078 = vsub.f32 %v946, %v1012
  %v1079 = vsub.f32 %v947, %v1013
  %v1080 = vsub.f32 %v948, %v1014
  %v1081 = vsub.f32 %v949, %v1015
  %v1082 = vsub.f32 %v950, %v1016
  %v1083 = vsub.f32 %v951, %v1017
  %v1084 = vsub.f32 %v952, %v1018
  %v1085 = vsub.f32 %v953, %v1019
  %v1086 = vld [vmem:[%s1] sm:$0xff]
  %v1087 = vld [vmem:[%s1 + $0x8] sm:$0xff]
  %v1088 = vld [vmem:[%s1 + $0x10] sm:$0xff]
  %v1089 = vld [vmem:[%s1 + $0x18] sm:$0xff]
  %v1090 = vld [vmem:[%s1 + $0x20] sm:$0xff]
  %v1091 = vld [vmem:[%s1 + $0x28] sm:$0xff]
  %v1092 = vld [vmem:[%s1 + $0x30] sm:$0xff]
  %v1093 = vld [vmem:[%s1 + $0x38] sm:$0xff]
  %v1094 = vld [vmem:[%s1 + $0x40] sm:$0xff]
  %v1095 = vld [vmem:[%s1 + $0x48] sm:$0xff]
  %v1096 = vld [vmem:[%s1 + $0x50] sm:$0xff]
  %v1097 = vld [vmem:[%s1 + $0x58] sm:$0xff]
  %v1098 = vld [vmem:[%s1 + $0x60] sm:$0xff]
  %v1099 = vld [vmem:[%s1 + $0x68] sm:$0xff]
  %v1100 = vld [vmem:[%s1 + $0x70] sm:$0xff]
  %v1101 = vld [vmem:[%s1 + $0x78] sm:$0xff]
  %v1102 = vld [vmem:[%s1 + $0x80] sm:$0xff]
  %v1103 = vld [vmem:[%s1 + $0x88] sm:$0xff]
  %v1104 = vld [vmem:[%s1 + $0x90] sm:$0xff]
  %v1105 = vld [vmem:[%s1 + $0x98] sm:$0xff]
  %v1106 = vld [vmem:[%s1 + $0xa0] sm:$0xff]
  %v1107 = vld [vmem:[%s1 + $0xa8] sm:$0xff]
  %v1108 = vld [vmem:[%s1 + $0xb0] sm:$0xff]
  %v1109 = vld [vmem:[%s1 + $0xb8] sm:$0xff]
  %v1110 = vld [vmem:[%s1 + $0xc0] sm:$0xff]
  %v1111 = vld [vmem:[%s1 + $0xc8] sm:$0xff]
  %v1112 = vld [vmem:[%s1 + $0xd0] sm:$0xff]
  %v1113 = vld [vmem:[%s1 + $0xd8] sm:$0xff]
  %v1114 = vld [vmem:[%s1 + $0xe0] sm:$0xff]
  %v1115 = vld [vmem:[%s1 + $0xe8] sm:$0xff]
  %v1116 = vld [vmem:[%s1 + $0xf0] sm:$0xff]
  %v1117 = vld [vmem:[%s1 + $0xf8] sm:$0xff]
  %v1118 = vld [vmem:[%s1 + $0x100] sm:$0xff]
  %v1119 = vld [vmem:[%s1 + $0x108] sm:$0xff]
  %v1120 = vld [vmem:[%s1 + $0x110] sm:$0xff]
  %v1121 = vld [vmem:[%s1 + $0x118] sm:$0xff]
  %v1122 = vld [vmem:[%s1 + $0x120] sm:$0xff]
  %v1123 = vld [vmem:[%s1 + $0x128] sm:$0xff]
  %v1124 = vld [vmem:[%s1 + $0x130] sm:$0xff]
  %v1125 = vld [vmem:[%s1 + $0x138] sm:$0xff]
  %v1126 = vld [vmem:[%s1 + $0x140] sm:$0xff]
  %v1127 = vld [vmem:[%s1 + $0x148] sm:$0xff]
  %v1128 = vld [vmem:[%s1 + $0x150] sm:$0xff]
  %v1129 = vld [vmem:[%s1 + $0x158] sm:$0xff]
  %v1130 = vld [vmem:[%s1 + $0x160] sm:$0xff]
  %v1131 = vld [vmem:[%s1 + $0x168] sm:$0xff]
  %v1132 = vld [vmem:[%s1 + $0x170] sm:$0xff]
  %v1133 = vld [vmem:[%s1 + $0x178] sm:$0xff]
  %v1134 = vld [vmem:[%s1 + $0x180] sm:$0xff]
  %v1135 = vld [vmem:[%s1 + $0x188] sm:$0xff]
  %v1136 = vld [vmem:[%s1 + $0x190] sm:$0xff]
  %v1137 = vld [vmem:[%s1 + $0x198] sm:$0xff]
  %v1138 = vld [vmem:[%s1 + $0x1a0] sm:$0xff]
  %v1139 = vld [vmem:[%s1 + $0x1a8] sm:$0xff]
  %v1140 = vld [vmem:[%s1 + $0x1b0] sm:$0xff]
  %v1141 = vld [vmem:[%s1 + $0x1b8] sm:$0xff]
  %v1142 = vld [vmem:[%s1 + $0x1c0] sm:$0xff]
  %v1143 = vld [vmem:[%s1 + $0x1c8] sm:$0xff]
  %v1144 = vld [vmem:[%s1 + $0x1d0] sm:$0xff]
  %v1145 = vld [vmem:[%s1 + $0x1d8] sm:$0xff]
  %v1146 = vld [vmem:[%s1 + $0x1e0] sm:$0xff]
  %v1147 = vld [vmem:[%s1 + $0x1e8] sm:$0xff]
  %v1148 = vld [vmem:[%s1 + $0x1f0] sm:$0xff]
  %v1149 = vld [vmem:[%s1 + $0x1f8] sm:$0xff]
  %v1150 = vld [vmem:[%s1 + $0x200] sm:$0xff]
  %v1151 = vld [vmem:[%s1 + $0x208] sm:$0xff]
  %v1152 = vadd.f32 %v1020, 1e-05
  %v1153 = vadd.f32 %v1021, 1e-05
  %v1154 = vadd.f32 %v1022, 1e-05
  %v1155 = vadd.f32 %v1023, 1e-05
  %v1156 = vadd.f32 %v1024, 1e-05
  %v1157 = vadd.f32 %v1025, 1e-05
  %v1158 = vadd.f32 %v1026, 1e-05
  %v1159 = vadd.f32 %v1027, 1e-05
  %v1160 = vadd.f32 %v1028, 1e-05
  %v1161 = vadd.f32 %v1029, 1e-05
  %v1162 = vadd.f32 %v1030, 1e-05
  %v1163 = vadd.f32 %v1031, 1e-05
  %v1164 = vadd.f32 %v1032, 1e-05
  %v1165 = vadd.f32 %v1033, 1e-05
  %v1166 = vadd.f32 %v1034, 1e-05
  %v1167 = vadd.f32 %v1035, 1e-05
  %v1168 = vadd.f32 %v1036, 1e-05
  %v1169 = vadd.f32 %v1037, 1e-05
  %v1170 = vadd.f32 %v1038, 1e-05
  %v1171 = vadd.f32 %v1039, 1e-05
  %v1172 = vadd.f32 %v1040, 1e-05
  %v1173 = vadd.f32 %v1041, 1e-05
  %v1174 = vadd.f32 %v1042, 1e-05
  %v1175 = vadd.f32 %v1043, 1e-05
  %v1176 = vadd.f32 %v1044, 1e-05
  %v1177 = vadd.f32 %v1045, 1e-05
  %v1178 = vadd.f32 %v1046, 1e-05
  %v1179 = vadd.f32 %v1047, 1e-05
  %v1180 = vadd.f32 %v1048, 1e-05
  %v1181 = vadd.f32 %v1049, 1e-05
  %v1182 = vadd.f32 %v1050, 1e-05
  %v1183 = vadd.f32 %v1051, 1e-05
  %v1184 = vadd.f32 %v1052, 1e-05
  %v1185 = vadd.f32 %v1053, 1e-05
  %v1186 = vadd.f32 %v1054, 1e-05
  %v1187 = vadd.f32 %v1055, 1e-05
  %v1188 = vadd.f32 %v1056, 1e-05
  %v1189 = vadd.f32 %v1057, 1e-05
  %v1190 = vadd.f32 %v1058, 1e-05
  %v1191 = vadd.f32 %v1059, 1e-05
  %v1192 = vadd.f32 %v1060, 1e-05
  %v1193 = vadd.f32 %v1061, 1e-05
  %v1194 = vadd.f32 %v1062, 1e-05
  %v1195 = vadd.f32 %v1063, 1e-05
  %v1196 = vadd.f32 %v1064, 1e-05
  %v1197 = vadd.f32 %v1065, 1e-05
  %v1198 = vadd.f32 %v1066, 1e-05
  %v1199 = vadd.f32 %v1067, 1e-05
  %v1200 = vadd.f32 %v1068, 1e-05
  %v1201 = vadd.f32 %v1069, 1e-05
  %v1202 = vadd.f32 %v1070, 1e-05
  %v1203 = vadd.f32 %v1071, 1e-05
  %v1204 = vadd.f32 %v1072, 1e-05
  %v1205 = vadd.f32 %v1073, 1e-05
  %v1206 = vadd.f32 %v1074, 1e-05
  %v1207 = vadd.f32 %v1075, 1e-05
  %v1208 = vadd.f32 %v1076, 1e-05
  %v1209 = vadd.f32 %v1077, 1e-05
  %v1210 = vadd.f32 %v1078, 1e-05
  %v1211 = vadd.f32 %v1079, 1e-05
  %v1212 = vadd.f32 %v1080, 1e-05
  %v1213 = vadd.f32 %v1081, 1e-05
  %v1214 = vadd.f32 %v1082, 1e-05
  %v1215 = vadd.f32 %v1083, 1e-05
  %v1216 = vadd.f32 %v1084, 1e-05
  %v1217 = vadd.f32 %v1085, 1e-05
  %v1218 = vrsqrt.pop %v1152
  %v1219 = vrsqrt.pop %v1153
  %v1220 = vrsqrt.pop %v1154
  %v1221 = vrsqrt.pop %v1155
  %v1222 = vrsqrt.pop %v1156
  %v1223 = vrsqrt.pop %v1157
  %v1224 = vrsqrt.pop %v1158
  %v1225 = vrsqrt.pop %v1159
  %v1226 = vrsqrt.pop %v1160
  %v1227 = vrsqrt.pop %v1161
  %v1228 = vrsqrt.pop %v1162
  %v1229 = vrsqrt.pop %v1163
  %v1230 = vrsqrt.pop %v1164
  %v1231 = vrsqrt.pop %v1165
  %v1232 = vrsqrt.pop %v1166
  %v1233 = vrsqrt.pop %v1167
  %v1234 = vrsqrt.pop %v1168
  %v1235 = vrsqrt.pop %v1169
  %v1236 = vrsqrt.pop %v1170
  %v1237 = vrsqrt.pop %v1171
  %v1238 = vrsqrt.pop %v1172
  %v1239 = vrsqrt.pop %v1173
  %v1240 = vrsqrt.pop %v1174
  %v1241 = vrsqrt.pop %v1175
  %v1242 = vrsqrt.pop %v1176
  %v1243 = vrsqrt.pop %v1177
  %v1244 = vrsqrt.pop %v1178
  %v1245 = vrsqrt.pop %v1179
  %v1246 = vrsqrt.pop %v1180
  %v1247 = vrsqrt.pop %v1181
  %v1248 = vrsqrt.pop %v1182
  %v1249 = vrsqrt.pop %v1183
  %v1250 = vrsqrt.pop %v1184
  %v1251 = vrsqrt.pop %v1185
  %v1252 = vrsqrt.pop %v1186
  %v1253 = vrsqrt.pop %v1187
  %v1254 = vrsqrt.pop %v1188
  %v1255 = vrsqrt.pop %v1189
  %v1256 = vrsqrt.pop %v1190
  %v1257 = vrsqrt.pop %v1191
  %v1258 = vrsqrt.pop %v1192
  %v1259 = vrsqrt.pop %v1193
  %v1260 = vrsqrt.pop %v1194
  %v1261 = vrsqrt.pop %v1195
  %v1262 = vrsqrt.pop %v1196
  %v1263 = vrsqrt.pop %v1197
  %v1264 = vrsqrt.pop %v1198
  %v1265 = vrsqrt.pop %v1199
  %v1266 = vrsqrt.pop %v1200
  %v1267 = vrsqrt.pop %v1201
  %v1268 = vrsqrt.pop %v1202
  %v1269 = vrsqrt.pop %v1203
  %v1270 = vrsqrt.pop %v1204
  %v1271 = vrsqrt.pop %v1205
  %v1272 = vrsqrt.pop %v1206
  %v1273 = vrsqrt.pop %v1207
  %v1274 = vrsqrt.pop %v1208
  %v1275 = vrsqrt.pop %v1209
  %v1276 = vrsqrt.pop %v1210
  %v1277 = vrsqrt.pop %v1211
  %v1278 = vrsqrt.pop %v1212
  %v1279 = vrsqrt.pop %v1213
  %v1280 = vrsqrt.pop %v1214
  %v1281 = vrsqrt.pop %v1215
  %v1282 = vrsqrt.pop %v1216
  %v1283 = vrsqrt.pop %v1217
  %v1284 = vmul.f32 %v1086, %v1218
  %v1285 = vmul.f32 %v1087, %v1219
  %v1286 = vmul.f32 %v1088, %v1220
  %v1287 = vmul.f32 %v1089, %v1221
  %v1288 = vmul.f32 %v1090, %v1222
  %v1289 = vmul.f32 %v1091, %v1223
  %v1290 = vmul.f32 %v1092, %v1224
  %v1291 = vmul.f32 %v1093, %v1225
  %v1292 = vmul.f32 %v1094, %v1226
  %v1293 = vmul.f32 %v1095, %v1227
  %v1294 = vmul.f32 %v1096, %v1228
  %v1295 = vmul.f32 %v1097, %v1229
  %v1296 = vmul.f32 %v1098, %v1230
  %v1297 = vmul.f32 %v1099, %v1231
  %v1298 = vmul.f32 %v1100, %v1232
  %v1299 = vmul.f32 %v1101, %v1233
  %v1300 = vmul.f32 %v1102, %v1234
  %v1301 = vmul.f32 %v1103, %v1235
  %v1302 = vmul.f32 %v1104, %v1236
  %v1303 = vmul.f32 %v1105, %v1237
  %v1304 = vmul.f32 %v1106, %v1238
  %v1305 = vmul.f32 %v1107, %v1239
  %v1306 = vmul.f32 %v1108, %v1240
  %v1307 = vmul.f32 %v1109, %v1241
  %v1308 = vmul.f32 %v1110, %v1242
  %v1309 = vmul.f32 %v1111, %v1243
  %v1310 = vmul.f32 %v1112, %v1244
  %v1311 = vmul.f32 %v1113, %v1245
  %v1312 = vmul.f32 %v1114, %v1246
  %v1313 = vmul.f32 %v1115, %v1247
  %v1314 = vmul.f32 %v1116, %v1248
  %v1315 = vmul.f32 %v1117, %v1249
  %v1316 = vmul.f32 %v1118, %v1250
  %v1317 = vmul.f32 %v1119, %v1251
  %v1318 = vmul.f32 %v1120, %v1252
  %v1319 = vmul.f32 %v1121, %v1253
  %v1320 = vmul.f32 %v1122, %v1254
  %v1321 = vmul.f32 %v1123, %v1255
  %v1322 = vmul.f32 %v1124, %v1256
  %v1323 = vmul.f32 %v1125, %v1257
  %v1324 = vmul.f32 %v1126, %v1258
  %v1325 = vmul.f32 %v1127, %v1259
  %v1326 = vmul.f32 %v1128, %v1260
  %v1327 = vmul.f32 %v1129, %v1261
  %v1328 = vmul.f32 %v1130, %v1262
  %v1329 = vmul.f32 %v1131, %v1263
  %v1330 = vmul.f32 %v1132, %v1264
  %v1331 = vmul.f32 %v1133, %v1265
  %v1332 = vmul.f32 %v1134, %v1266
  %v1333 = vmul.f32 %v1135, %v1267
  %v1334 = vmul.f32 %v1136, %v1268
  %v1335 = vmul.f32 %v1137, %v1269
  %v1336 = vmul.f32 %v1138, %v1270
  %v1337 = vmul.f32 %v1139, %v1271
  %v1338 = vmul.f32 %v1140, %v1272
  %v1339 = vmul.f32 %v1141, %v1273
  %v1340 = vmul.f32 %v1142, %v1274
  %v1341 = vmul.f32 %v1143, %v1275
  %v1342 = vmul.f32 %v1144, %v1276
  %v1343 = vmul.f32 %v1145, %v1277
  %v1344 = vmul.f32 %v1146, %v1278
  %v1345 = vmul.f32 %v1147, %v1279
  %v1346 = vmul.f32 %v1148, %v1280
  %v1347 = vmul.f32 %v1149, %v1281
  %v1348 = vmul.f32 %v1150, %v1282
  %v1349 = vmul.f32 %v1151, %v1283
  %v1350 = vld [vmem:[%s2] sm:$0xff]
  %v1351 = vld [vmem:[%s2 + $0x8] sm:$0xff]
  %v1352 = vld [vmem:[%s2 + $0x10] sm:$0xff]
  %v1353 = vld [vmem:[%s2 + $0x18] sm:$0xff]
  %v1354 = vld [vmem:[%s2 + $0x20] sm:$0xff]
  %v1355 = vld [vmem:[%s2 + $0x28] sm:$0xff]
  %v1356 = vld [vmem:[%s2 + $0x30] sm:$0xff]
  %v1357 = vld [vmem:[%s2 + $0x38] sm:$0xff]
  %v1358 = vld [vmem:[%s2 + $0x40] sm:$0xff]
  %v1359 = vld [vmem:[%s2 + $0x48] sm:$0xff]
  %v1360 = vld [vmem:[%s2 + $0x50] sm:$0xff]
  %v1361 = vld [vmem:[%s2 + $0x58] sm:$0xff]
  %v1362 = vld [vmem:[%s2 + $0x60] sm:$0xff]
  %v1363 = vld [vmem:[%s2 + $0x68] sm:$0xff]
  %v1364 = vld [vmem:[%s2 + $0x70] sm:$0xff]
  %v1365 = vld [vmem:[%s2 + $0x78] sm:$0xff]
  %v1366 = vld [vmem:[%s2 + $0x80] sm:$0xff]
  %v1367 = vld [vmem:[%s2 + $0x88] sm:$0xff]
  %v1368 = vld [vmem:[%s2 + $0x90] sm:$0xff]
  %v1369 = vld [vmem:[%s2 + $0x98] sm:$0xff]
  %v1370 = vld [vmem:[%s2 + $0xa0] sm:$0xff]
  %v1371 = vld [vmem:[%s2 + $0xa8] sm:$0xff]
  %v1372 = vld [vmem:[%s2 + $0xb0] sm:$0xff]
  %v1373 = vld [vmem:[%s2 + $0xb8] sm:$0xff]
  %v1374 = vld [vmem:[%s2 + $0xc0] sm:$0xff]
  %v1375 = vld [vmem:[%s2 + $0xc8] sm:$0xff]
  %v1376 = vld [vmem:[%s2 + $0xd0] sm:$0xff]
  %v1377 = vld [vmem:[%s2 + $0xd8] sm:$0xff]
  %v1378 = vld [vmem:[%s2 + $0xe0] sm:$0xff]
  %v1379 = vld [vmem:[%s2 + $0xe8] sm:$0xff]
  %v1380 = vld [vmem:[%s2 + $0xf0] sm:$0xff]
  %v1381 = vld [vmem:[%s2 + $0xf8] sm:$0xff]
  %v1382 = vld [vmem:[%s2 + $0x100] sm:$0xff]
  %v1383 = vld [vmem:[%s2 + $0x108] sm:$0xff]
  %v1384 = vld [vmem:[%s2 + $0x110] sm:$0xff]
  %v1385 = vld [vmem:[%s2 + $0x118] sm:$0xff]
  %v1386 = vld [vmem:[%s2 + $0x120] sm:$0xff]
  %v1387 = vld [vmem:[%s2 + $0x128] sm:$0xff]
  %v1388 = vld [vmem:[%s2 + $0x130] sm:$0xff]
  %v1389 = vld [vmem:[%s2 + $0x138] sm:$0xff]
  %v1390 = vld [vmem:[%s2 + $0x140] sm:$0xff]
  %v1391 = vld [vmem:[%s2 + $0x148] sm:$0xff]
  %v1392 = vld [vmem:[%s2 + $0x150] sm:$0xff]
  %v1393 = vld [vmem:[%s2 + $0x158] sm:$0xff]
  %v1394 = vld [vmem:[%s2 + $0x160] sm:$0xff]
  %v1395 = vld [vmem:[%s2 + $0x168] sm:$0xff]
  %v1396 = vld [vmem:[%s2 + $0x170] sm:$0xff]
  %v1397 = vld [vmem:[%s2 + $0x178] sm:$0xff]
  %v1398 = vld [vmem:[%s2 + $0x180] sm:$0xff]
  %v1399 = vld [vmem:[%s2 + $0x188] sm:$0xff]
  %v1400 = vld [vmem:[%s2 + $0x190] sm:$0xff]
  %v1401 = vld [vmem:[%s2 + $0x198] sm:$0xff]
  %v1402 = vld [vmem:[%s2 + $0x1a0] sm:$0xff]
  %v1403 = vld [vmem:[%s2 + $0x1a8] sm:$0xff]
  %v1404 = vld [vmem:[%s2 + $0x1b0] sm:$0xff]
  %v1405 = vld [vmem:[%s2 + $0x1b8] sm:$0xff]
  %v1406 = vld [vmem:[%s2 + $0x1c0] sm:$0xff]
  %v1407 = vld [vmem:[%s2 + $0x1c8] sm:$0xff]
  %v1408 = vld [vmem:[%s2 + $0x1d0] sm:$0xff]
  %v1409 = vld [vmem:[%s2 + $0x1d8] sm:$0xff]
  %v1410 = vld [vmem:[%s2 + $0x1e0] sm:$0xff]
  %v1411 = vld [vmem:[%s2 + $0x1e8] sm:$0xff]
  %v1412 = vld [vmem:[%s2 + $0x1f0] sm:$0xff]
  %v1413 = vld [vmem:[%s2 + $0x1f8] sm:$0xff]
  %v1414 = vld [vmem:[%s2 + $0x200] sm:$0xff]
  %v1415 = vld [vmem:[%s2 + $0x208] sm:$0xff]
  %v1416 = vmul.f32 %v822, %v1284
  %v1417 = vmul.f32 %v823, %v1285
  %v1418 = vmul.f32 %v824, %v1286
  %v1419 = vmul.f32 %v825, %v1287
  %v1420 = vmul.f32 %v826, %v1288
  %v1421 = vmul.f32 %v827, %v1289
  %v1422 = vmul.f32 %v828, %v1290
  %v1423 = vmul.f32 %v829, %v1291
  %v1424 = vmul.f32 %v830, %v1292
  %v1425 = vmul.f32 %v831, %v1293
  %v1426 = vmul.f32 %v832, %v1294
  %v1427 = vmul.f32 %v833, %v1295
  %v1428 = vmul.f32 %v834, %v1296
  %v1429 = vmul.f32 %v835, %v1297
  %v1430 = vmul.f32 %v836, %v1298
  %v1431 = vmul.f32 %v837, %v1299
  %v1432 = vmul.f32 %v838, %v1300
  %v1433 = vmul.f32 %v839, %v1301
  %v1434 = vmul.f32 %v840, %v1302
  %v1435 = vmul.f32 %v841, %v1303
  %v1436 = vmul.f32 %v842, %v1304
  %v1437 = vmul.f32 %v843, %v1305
  %v1438 = vmul.f32 %v844, %v1306
  %v1439 = vmul.f32 %v845, %v1307
  %v1440 = vmul.f32 %v846, %v1308
  %v1441 = vmul.f32 %v847, %v1309
  %v1442 = vmul.f32 %v848, %v1310
  %v1443 = vmul.f32 %v849, %v1311
  %v1444 = vmul.f32 %v850, %v1312
  %v1445 = vmul.f32 %v851, %v1313
  %v1446 = vmul.f32 %v852, %v1314
  %v1447 = vmul.f32 %v853, %v1315
  %v1448 = vmul.f32 %v854, %v1316
  %v1449 = vmul.f32 %v855, %v1317
  %v1450 = vmul.f32 %v856, %v1318
  %v1451 = vmul.f32 %v857, %v1319
  %v1452 = vmul.f32 %v858, %v1320
  %v1453 = vmul.f32 %v859, %v1321
  %v1454 = vmul.f32 %v860, %v1322
  %v1455 = vmul.f32 %v861, %v1323
  %v1456 = vmul.f32 %v862, %v1324
  %v1457 = vmul.f32 %v863, %v1325
  %v1458 = vmul.f32 %v864, %v1326
  %v1459 = vmul.f32 %v865, %v1327
  %v1460 = vmul.f32 %v866, %v1328
  %v1461 = vmul.f32 %v867, %v1329
  %v1462 = vmul.f32 %v868, %v1330
  %v1463 = vmul.f32 %v869, %v1331
  %v1464 = vmul.f32 %v870, %v1332
  %v1465 = vmul.f32 %v871, %v1333
  %v1466 = vmul.f32 %v872, %v1334
  %v1467 = vmul.f32 %v873, %v1335
  %v1468 = vmul.f32 %v874, %v1336
  %v1469 = vmul.f32 %v875, %v1337
  %v1470 = vmul.f32 %v876, %v1338
  %v1471 = vmul.f32 %v877, %v1339
  %v1472 = vmul.f32 %v878, %v1340
  %v1473 = vmul.f32 %v879, %v1341
  %v1474 = vmul.f32 %v880, %v1342
  %v1475 = vmul.f32 %v881, %v1343
  %v1476 = vmul.f32 %v882, %v1344
  %v1477 = vmul.f32 %v883, %v1345
  %v1478 = vmul.f32 %v884, %v1346
  %v1479 = vmul.f32 %v885, %v1347
  %v1480 = vmul.f32 %v886, %v1348
  %v1481 = vmul.f32 %v887, %v1349
  %v1482 = vsub.f32 %v1350, %v1416
  %v1483 = vsub.f32 %v1351, %v1417
  %v1484 = vsub.f32 %v1352, %v1418
  %v1485 = vsub.f32 %v1353, %v1419
  %v1486 = vsub.f32 %v1354, %v1420
  %v1487 = vsub.f32 %v1355, %v1421
  %v1488 = vsub.f32 %v1356, %v1422
  %v1489 = vsub.f32 %v1357, %v1423
  %v1490 = vsub.f32 %v1358, %v1424
  %v1491 = vsub.f32 %v1359, %v1425
  %v1492 = vsub.f32 %v1360, %v1426
  %v1493 = vsub.f32 %v1361, %v1427
  %v1494 = vsub.f32 %v1362, %v1428
  %v1495 = vsub.f32 %v1363, %v1429
  %v1496 = vsub.f32 %v1364, %v1430
  %v1497 = vsub.f32 %v1365, %v1431
  %v1498 = vsub.f32 %v1366, %v1432
  %v1499 = vsub.f32 %v1367, %v1433
  %v1500 = vsub.f32 %v1368, %v1434
  %v1501 = vsub.f32 %v1369, %v1435
  %v1502 = vsub.f32 %v1370, %v1436
  %v1503 = vsub.f32 %v1371, %v1437
  %v1504 = vsub.f32 %v1372, %v1438
  %v1505 = vsub.f32 %v1373, %v1439
  %v1506 = vsub.f32 %v1374, %v1440
  %v1507 = vsub.f32 %v1375, %v1441
  %v1508 = vsub.f32 %v1376, %v1442
  %v1509 = vsub.f32 %v1377, %v1443
  %v1510 = vsub.f32 %v1378, %v1444
  %v1511 = vsub.f32 %v1379, %v1445
  %v1512 = vsub.f32 %v1380, %v1446
  %v1513 = vsub.f32 %v1381, %v1447
  %v1514 = vsub.f32 %v1382, %v1448
  %v1515 = vsub.f32 %v1383, %v1449
  %v1516 = vsub.f32 %v1384, %v1450
  %v1517 = vsub.f32 %v1385, %v1451
  %v1518 = vsub.f32 %v1386, %v1452
  %v1519 = vsub.f32 %v1387, %v1453
  %v1520 = vsub.f32 %v1388, %v1454
  %v1521 = vsub.f32 %v1389, %v1455
  %v1522 = vsub.f32 %v1390, %v1456
  %v1523 = vsub.f32 %v1391, %v1457
  %v1524 = vsub.f32 %v1392, %v1458
  %v1525 = vsub.f32 %v1393, %v1459
  %v1526 = vsub.f32 %v1394, %v1460
  %v1527 = vsub.f32 %v1395, %v1461
  %v1528 = vsub.f32 %v1396, %v1462
  %v1529 = vsub.f32 %v1397, %v1463
  %v1530 = vsub.f32 %v1398, %v1464
  %v1531 = vsub.f32 %v1399, %v1465
  %v1532 = vsub.f32 %v1400, %v1466
  %v1533 = vsub.f32 %v1401, %v1467
  %v1534 = vsub.f32 %v1402, %v1468
  %v1535 = vsub.f32 %v1403, %v1469
  %v1536 = vsub.f32 %v1404, %v1470
  %v1537 = vsub.f32 %v1405, %v1471
  %v1538 = vsub.f32 %v1406, %v1472
  %v1539 = vsub.f32 %v1407, %v1473
  %v1540 = vsub.f32 %v1408, %v1474
  %v1541 = vsub.f32 %v1409, %v1475
  %v1542 = vsub.f32 %v1410, %v1476
  %v1543 = vsub.f32 %v1411, %v1477
  %v1544 = vsub.f32 %v1412, %v1478
  %v1545 = vsub.f32 %v1413, %v1479
  %v1546 = vsub.f32 %v1414, %v1480
  %v1547 = vsub.f32 %v1415, %v1481
  %1549 = vset.pattern.permute.xlu0 0
  %1550 = vperm.xlu0 %1549, %v1284
  %v1551 = vpop.permute.xlu0 %1550
  %1554 = vset.pattern.permute.xlu0 0
  %1555 = vperm.xlu0 %1554, %v1285
  %v1556 = vpop.permute.xlu0 %1555
  %1559 = vset.pattern.permute.xlu0 0
  %1560 = vperm.xlu0 %1559, %v1286
  %v1561 = vpop.permute.xlu0 %1560
  %1564 = vset.pattern.permute.xlu0 0
  %1565 = vperm.xlu0 %1564, %v1287
  %v1566 = vpop.permute.xlu0 %1565
  %1569 = vset.pattern.permute.xlu0 0
  %1570 = vperm.xlu0 %1569, %v1288
  %v1571 = vpop.permute.xlu0 %1570
  %1574 = vset.pattern.permute.xlu0 0
  %1575 = vperm.xlu0 %1574, %v1289
  %v1576 = vpop.permute.xlu0 %1575
  %1579 = vset.pattern.permute.xlu0 0
  %1580 = vperm.xlu0 %1579, %v1290
  %v1581 = vpop.permute.xlu0 %1580
  %1584 = vset.pattern.permute.xlu0 0
  %1585 = vperm.xlu0 %1584, %v1291
  %v1586 = vpop.permute.xlu0 %1585
  %1589 = vset.pattern.permute.xlu0 0
  %1590 = vperm.xlu0 %1589, %v1292
  %v1591 = vpop.permute.xlu0 %1590
  %1594 = vset.pattern.permute.xlu0 0
  %1595 = vperm.xlu0 %1594, %v1293
  %v1596 = vpop.permute.xlu0 %1595
  %1599 = vset.pattern.permute.xlu0 0
  %1600 = vperm.xlu0 %1599, %v1294
  %v1601 = vpop.permute.xlu0 %1600
  %1604 = vset.pattern.permute.xlu0 0
  %1605 = vperm.xlu0 %1604, %v1295
  %v1606 = vpop.permute.xlu0 %1605
  %1609 = vset.pattern.permute.xlu0 0
  %1610 = vperm.xlu0 %1609, %v1296
  %v1611 = vpop.permute.xlu0 %1610
  %1614 = vset.pattern.permute.xlu0 0
  %1615 = vperm.xlu0 %1614, %v1297
  %v1616 = vpop.permute.xlu0 %1615
  %1619 = vset.pattern.permute.xlu0 0
  %1620 = vperm.xlu0 %1619, %v1298
  %v1621 = vpop.permute.xlu0 %1620
  %1624 = vset.pattern.permute.xlu0 0
  %1625 = vperm.xlu0 %1624, %v1299
  %v1626 = vpop.permute.xlu0 %1625
  %1629 = vset.pattern.permute.xlu0 0
  %1630 = vperm.xlu0 %1629, %v1300
  %v1631 = vpop.permute.xlu0 %1630
  %1634 = vset.pattern.permute.xlu0 0
  %1635 = vperm.xlu0 %1634, %v1301
  %v1636 = vpop.permute.xlu0 %1635
  %1639 = vset.pattern.permute.xlu0 0
  %1640 = vperm.xlu0 %1639, %v1302
  %v1641 = vpop.permute.xlu0 %1640
  %1644 = vset.pattern.permute.xlu0 0
  %1645 = vperm.xlu0 %1644, %v1303
  %v1646 = vpop.permute.xlu0 %1645
  %1649 = vset.pattern.permute.xlu0 0
  %1650 = vperm.xlu0 %1649, %v1304
  %v1651 = vpop.permute.xlu0 %1650
  %1654 = vset.pattern.permute.xlu0 0
  %1655 = vperm.xlu0 %1654, %v1305
  %v1656 = vpop.permute.xlu0 %1655
  %1659 = vset.pattern.permute.xlu0 0
  %1660 = vperm.xlu0 %1659, %v1306
  %v1661 = vpop.permute.xlu0 %1660
  %1664 = vset.pattern.permute.xlu0 0
  %1665 = vperm.xlu0 %1664, %v1307
  %v1666 = vpop.permute.xlu0 %1665
  %1669 = vset.pattern.permute.xlu0 0
  %1670 = vperm.xlu0 %1669, %v1308
  %v1671 = vpop.permute.xlu0 %1670
  %1674 = vset.pattern.permute.xlu0 0
  %1675 = vperm.xlu0 %1674, %v1309
  %v1676 = vpop.permute.xlu0 %1675
  %1679 = vset.pattern.permute.xlu0 0
  %1680 = vperm.xlu0 %1679, %v1310
  %v1681 = vpop.permute.xlu0 %1680
  %1684 = vset.pattern.permute.xlu0 0
  %1685 = vperm.xlu0 %1684, %v1311
  %v1686 = vpop.permute.xlu0 %1685
  %1689 = vset.pattern.permute.xlu0 0
  %1690 = vperm.xlu0 %1689, %v1312
  %v1691 = vpop.permute.xlu0 %1690
  %1694 = vset.pattern.permute.xlu0 0
  %1695 = vperm.xlu0 %1694, %v1313
  %v1696 = vpop.permute.xlu0 %1695
  %1699 = vset.pattern.permute.xlu0 0
  %1700 = vperm.xlu0 %1699, %v1314
  %v1701 = vpop.permute.xlu0 %1700
  %1704 = vset.pattern.permute.xlu0 0
  %1705 = vperm.xlu0 %1704, %v1315
  %v1706 = vpop.permute.xlu0 %1705
  %1709 = vset.pattern.permute.xlu0 0
  %1710 = vperm.xlu0 %1709, %v1316
  %v1711 = vpop.permute.xlu0 %1710
  %1714 = vset.pattern.permute.xlu0 0
  %1715 = vperm.xlu0 %1714, %v1317
  %v1716 = vpop.permute.xlu0 %1715
  %1719 = vset.pattern.permute.xlu0 0
  %1720 = vperm.xlu0 %1719, %v1318
  %v1721 = vpop.permute.xlu0 %1720
  %1724 = vset.pattern.permute.xlu0 0
  %1725 = vperm.xlu0 %1724, %v1319
  %v1726 = vpop.permute.xlu0 %1725
  %1729 = vset.pattern.permute.xlu0 0
  %1730 = vperm.xlu0 %1729, %v1320
  %v1731 = vpop.permute.xlu0 %1730
  %1734 = vset.pattern.permute.xlu0 0
  %1735 = vperm.xlu0 %1734, %v1321
  %v1736 = vpop.permute.xlu0 %1735
  %1739 = vset.pattern.permute.xlu0 0
  %1740 = vperm.xlu0 %1739, %v1322
  %v1741 = vpop.permute.xlu0 %1740
  %1744 = vset.pattern.permute.xlu0 0
  %1745 = vperm.xlu0 %1744, %v1323
  %v1746 = vpop.permute.xlu0 %1745
  %1749 = vset.pattern.permute.xlu0 0
  %1750 = vperm.xlu0 %1749, %v1324
  %v1751 = vpop.permute.xlu0 %1750
  %1754 = vset.pattern.permute.xlu0 0
  %1755 = vperm.xlu0 %1754, %v1325
  %v1756 = vpop.permute.xlu0 %1755
  %1759 = vset.pattern.permute.xlu0 0
  %1760 = vperm.xlu0 %1759, %v1326
  %v1761 = vpop.permute.xlu0 %1760
  %1764 = vset.pattern.permute.xlu0 0
  %1765 = vperm.xlu0 %1764, %v1327
  %v1766 = vpop.permute.xlu0 %1765
  %1769 = vset.pattern.permute.xlu0 0
  %1770 = vperm.xlu0 %1769, %v1328
  %v1771 = vpop.permute.xlu0 %1770
  %1774 = vset.pattern.permute.xlu0 0
  %1775 = vperm.xlu0 %1774, %v1329
  %v1776 = vpop.permute.xlu0 %1775
  %1779 = vset.pattern.permute.xlu0 0
  %1780 = vperm.xlu0 %1779, %v1330
  %v1781 = vpop.permute.xlu0 %1780
  %1784 = vset.pattern.permute.xlu0 0
  %1785 = vperm.xlu0 %1784, %v1331
  %v1786 = vpop.permute.xlu0 %1785
  %1789 = vset.pattern.permute.xlu0 0
  %1790 = vperm.xlu0 %1789, %v1332
  %v1791 = vpop.permute.xlu0 %1790
  %1794 = vset.pattern.permute.xlu0 0
  %1795 = vperm.xlu0 %1794, %v1333
  %v1796 = vpop.permute.xlu0 %1795
  %1799 = vset.pattern.permute.xlu0 0
  %1800 = vperm.xlu0 %1799, %v1334
  %v1801 = vpop.permute.xlu0 %1800
  %1804 = vset.pattern.permute.xlu0 0
  %1805 = vperm.xlu0 %1804, %v1335
  %v1806 = vpop.permute.xlu0 %1805
  %1809 = vset.pattern.permute.xlu0 0
  %1810 = vperm.xlu0 %1809, %v1336
  %v1811 = vpop.permute.xlu0 %1810
  %1814 = vset.pattern.permute.xlu0 0
  %1815 = vperm.xlu0 %1814, %v1337
  %v1816 = vpop.permute.xlu0 %1815
  %1819 = vset.pattern.permute.xlu0 0
  %1820 = vperm.xlu0 %1819, %v1338
  %v1821 = vpop.permute.xlu0 %1820
  %1824 = vset.pattern.permute.xlu0 0
  %1825 = vperm.xlu0 %1824, %v1339
  %v1826 = vpop.permute.xlu0 %1825
  %1829 = vset.pattern.permute.xlu0 0
  %1830 = vperm.xlu0 %1829, %v1340
  %v1831 = vpop.permute.xlu0 %1830
  %1834 = vset.pattern.permute.xlu0 0
  %1835 = vperm.xlu0 %1834, %v1341
  %v1836 = vpop.permute.xlu0 %1835
  %1839 = vset.pattern.permute.xlu0 0
  %1840 = vperm.xlu0 %1839, %v1342
  %v1841 = vpop.permute.xlu0 %1840
  %1844 = vset.pattern.permute.xlu0 0
  %1845 = vperm.xlu0 %1844, %v1343
  %v1846 = vpop.permute.xlu0 %1845
  %1849 = vset.pattern.permute.xlu0 0
  %1850 = vperm.xlu0 %1849, %v1344
  %v1851 = vpop.permute.xlu0 %1850
  %1854 = vset.pattern.permute.xlu0 0
  %1855 = vperm.xlu0 %1854, %v1345
  %v1856 = vpop.permute.xlu0 %1855
  %1859 = vset.pattern.permute.xlu0 0
  %1860 = vperm.xlu0 %1859, %v1346
  %v1861 = vpop.permute.xlu0 %1860
  %1864 = vset.pattern.permute.xlu0 0
  %1865 = vperm.xlu0 %1864, %v1347
  %v1866 = vpop.permute.xlu0 %1865
  %1869 = vset.pattern.permute.xlu0 0
  %1870 = vperm.xlu0 %1869, %v1348
  %v1871 = vpop.permute.xlu0 %1870
  %1874 = vset.pattern.permute.xlu0 0
  %1875 = vperm.xlu0 %1874, %v1349
  %v1876 = vpop.permute.xlu0 %1875
  %v1878 = vmul.f32 %v29, %v1551
  %v1879 = vmul.f32 %v30, %v1551
  %v1880 = vmul.f32 %v31, %v1556
  %v1881 = vmul.f32 %v32, %v1556
  %v1882 = vmul.f32 %v33, %v1561
  %v1883 = vmul.f32 %v34, %v1561
  %v1884 = vmul.f32 %v35, %v1566
  %v1885 = vmul.f32 %v36, %v1566
  %v1886 = vmul.f32 %v37, %v1571
  %v1887 = vmul.f32 %v38, %v1571
  %v1888 = vmul.f32 %v39, %v1576
  %v1889 = vmul.f32 %v40, %v1576
  %v1890 = vmul.f32 %v41, %v1581
  %v1891 = vmul.f32 %v42, %v1581
  %v1892 = vmul.f32 %v43, %v1586
  %v1893 = vmul.f32 %v44, %v1586
  %v1894 = vmul.f32 %v45, %v1591
  %v1895 = vmul.f32 %v46, %v1591
  %v1896 = vmul.f32 %v47, %v1596
  %v1897 = vmul.f32 %v48, %v1596
  %v1898 = vmul.f32 %v49, %v1601
  %v1899 = vmul.f32 %v50, %v1601
  %v1900 = vmul.f32 %v51, %v1606
  %v1901 = vmul.f32 %v52, %v1606
  %v1902 = vmul.f32 %v53, %v1611
  %v1903 = vmul.f32 %v54, %v1611
  %v1904 = vmul.f32 %v55, %v1616
  %v1905 = vmul.f32 %v56, %v1616
  %v1906 = vmul.f32 %v57, %v1621
  %v1907 = vmul.f32 %v58, %v1621
  %v1908 = vmul.f32 %v59, %v1626
  %v1909 = vmul.f32 %v60, %v1626
  %v1910 = vmul.f32 %v61, %v1631
  %v1911 = vmul.f32 %v62, %v1631
  %v1912 = vmul.f32 %v63, %v1636
  %v1913 = vmul.f32 %v64, %v1636
  %v1914 = vmul.f32 %v65, %v1641
  %v1915 = vmul.f32 %v66, %v1641
  %v1916 = vmul.f32 %v67, %v1646
  %v1917 = vmul.f32 %v68, %v1646
  %v1918 = vmul.f32 %v69, %v1651
  %v1919 = vmul.f32 %v70, %v1651
  %v1920 = vmul.f32 %v71, %v1656
  %v1921 = vmul.f32 %v72, %v1656
  %v1922 = vmul.f32 %v73, %v1661
  %v1923 = vmul.f32 %v74, %v1661
  %v1924 = vmul.f32 %v75, %v1666
  %v1925 = vmul.f32 %v76, %v1666
  %v1926 = vmul.f32 %v77, %v1671
  %v1927 = vmul.f32 %v78, %v1671
  %v1928 = vmul.f32 %v79, %v1676
  %v1929 = vmul.f32 %v80, %v1676
  %v1930 = vmul.f32 %v81, %v1681
  %v1931 = vmul.f32 %v82, %v1681
  %v1932 = vmul.f32 %v83, %v1686
  %v1933 = vmul.f32 %v84, %v1686
  %v1934 = vmul.f32 %v85, %v1691
  %v1935 = vmul.f32 %v86, %v1691
  %v1936 = vmul.f32 %v87, %v1696
  %v1937 = vmul.f32 %v88, %v1696
  %v1938 = vmul.f32 %v89, %v1701
  %v1939 = vmul.f32 %v90, %v1701
  %v1940 = vmul.f32 %v91, %v1706
  %v1941 = vmul.f32 %v92, %v1706
  %v1942 = vmul.f32 %v93, %v1711
  %v1943 = vmul.f32 %v94, %v1711
  %v1944 = vmul.f32 %v95, %v1716
  %v1945 = vmul.f32 %v96, %v1716
  %v1946 = vmul.f32 %v97, %v1721
  %v1947 = vmul.f32 %v98, %v1721
  %v1948 = vmul.f32 %v99, %v1726
  %v1949 = vmul.f32 %v100, %v1726
  %v1950 = vmul.f32 %v101, %v1731
  %v1951 = vmul.f32 %v102, %v1731
  %v1952 = vmul.f32 %v103, %v1736
  %v1953 = vmul.f32 %v104, %v1736
  %v1954 = vmul.f32 %v105, %v1741
  %v1955 = vmul.f32 %v106, %v1741
  %v1956 = vmul.f32 %v107, %v1746
  %v1957 = vmul.f32 %v108, %v1746
  %v1958 = vmul.f32 %v109, %v1751
  %v1959 = vmul.f32 %v110, %v1751
  %v1960 = vmul.f32 %v111, %v1756
  %v1961 = vmul.f32 %v112, %v1756
  %v1962 = vmul.f32 %v113, %v1761
  %v1963 = vmul.f32 %v114, %v1761
  %v1964 = vmul.f32 %v115, %v1766
  %v1965 = vmul.f32 %v116, %v1766
  %v1966 = vmul.f32 %v117, %v1771
  %v1967 = vmul.f32 %v118, %v1771
  %v1968 = vmul.f32 %v119, %v1776
  %v1969 = vmul.f32 %v120, %v1776
  %v1970 = vmul.f32 %v121, %v1781
  %v1971 = vmul.f32 %v122, %v1781
  %v1972 = vmul.f32 %v123, %v1786
  %v1973 = vmul.f32 %v124, %v1786
  %v1974 = vmul.f32 %v125, %v1791
  %v1975 = vmul.f32 %v126, %v1791
  %v1976 = vmul.f32 %v127, %v1796
  %v1977 = vmul.f32 %v128, %v1796
  %v1978 = vmul.f32 %v129, %v1801
  %v1979 = vmul.f32 %v130, %v1801
  %v1980 = vmul.f32 %v131, %v1806
  %v1981 = vmul.f32 %v132, %v1806
  %v1982 = vmul.f32 %v133, %v1811
  %v1983 = vmul.f32 %v134, %v1811
  %v1984 = vmul.f32 %v135, %v1816
  %v1985 = vmul.f32 %v136, %v1816
  %v1986 = vmul.f32 %v137, %v1821
  %v1987 = vmul.f32 %v138, %v1821
  %v1988 = vmul.f32 %v139, %v1826
  %v1989 = vmul.f32 %v140, %v1826
  %v1990 = vmul.f32 %v141, %v1831
  %v1991 = vmul.f32 %v142, %v1831
  %v1992 = vmul.f32 %v143, %v1836
  %v1993 = vmul.f32 %v144, %v1836
  %v1994 = vmul.f32 %v145, %v1841
  %v1995 = vmul.f32 %v146, %v1841
  %v1996 = vmul.f32 %v147, %v1846
  %v1997 = vmul.f32 %v148, %v1846
  %v1998 = vmul.f32 %v149, %v1851
  %v1999 = vmul.f32 %v150, %v1851
  %v2000 = vmul.f32 %v151, %v1856
  %v2001 = vmul.f32 %v152, %v1856
  %v2002 = vmul.f32 %v153, %v1861
  %v2003 = vmul.f32 %v154, %v1861
  %v2004 = vmul.f32 %v155, %v1866
  %v2005 = vmul.f32 %v156, %v1866
  %v2006 = vmul.f32 %v157, %v1871
  %v2007 = vmul.f32 %v158, %v1871
  %v2008 = vmul.f32 %v159, %v1876
  %v2009 = vmul.f32 %v160, %v1876
  %2011 = vset.pattern.permute.xlu0 0
  %2012 = vperm.xlu0 %2011, %v1482
  %v2013 = vpop.permute.xlu0 %2012
  %2016 = vset.pattern.permute.xlu0 0
  %2017 = vperm.xlu0 %2016, %v1483
  %v2018 = vpop.permute.xlu0 %2017
  %2021 = vset.pattern.permute.xlu0 0
  %2022 = vperm.xlu0 %2021, %v1484
  %v2023 = vpop.permute.xlu0 %2022
  %2026 = vset.pattern.permute.xlu0 0
  %2027 = vperm.xlu0 %2026, %v1485
  %v2028 = vpop.permute.xlu0 %2027
  %2031 = vset.pattern.permute.xlu0 0
  %2032 = vperm.xlu0 %2031, %v1486
  %v2033 = vpop.permute.xlu0 %2032
  %2036 = vset.pattern.permute.xlu0 0
  %2037 = vperm.xlu0 %2036, %v1487
  %v2038 = vpop.permute.xlu0 %2037
  %2041 = vset.pattern.permute.xlu0 0
  %2042 = vperm.xlu0 %2041, %v1488
  %v2043 = vpop.permute.xlu0 %2042
  %2046 = vset.pattern.permute.xlu0 0
  %2047 = vperm.xlu0 %2046, %v1489
  %v2048 = vpop.permute.xlu0 %2047
  %2051 = vset.pattern.permute.xlu0 0
  %2052 = vperm.xlu0 %2051, %v1490
  %v2053 = vpop.permute.xlu0 %2052
  %2056 = vset.pattern.permute.xlu0 0
  %2057 = vperm.xlu0 %2056, %v1491
  %v2058 = vpop.permute.xlu0 %2057
  %2061 = vset.pattern.permute.xlu0 0
  %2062 = vperm.xlu0 %2061, %v1492
  %v2063 = vpop.permute.xlu0 %2062
  %2066 = vset.pattern.permute.xlu0 0
  %2067 = vperm.xlu0 %2066, %v1493
  %v2068 = vpop.permute.xlu0 %2067
  %2071 = vset.pattern.permute.xlu0 0
  %2072 = vperm.xlu0 %2071, %v1494
  %v2073 = vpop.permute.xlu0 %2072
  %2076 = vset.pattern.permute.xlu0 0
  %2077 = vperm.xlu0 %2076, %v1495
  %v2078 = vpop.permute.xlu0 %2077
  %2081 = vset.pattern.permute.xlu0 0
  %2082 = vperm.xlu0 %2081, %v1496
  %v2083 = vpop.permute.xlu0 %2082
  %2086 = vset.pattern.permute.xlu0 0
  %2087 = vperm.xlu0 %2086, %v1497
  %v2088 = vpop.permute.xlu0 %2087
  %2091 = vset.pattern.permute.xlu0 0
  %2092 = vperm.xlu0 %2091, %v1498
  %v2093 = vpop.permute.xlu0 %2092
  %2096 = vset.pattern.permute.xlu0 0
  %2097 = vperm.xlu0 %2096, %v1499
  %v2098 = vpop.permute.xlu0 %2097
  %2101 = vset.pattern.permute.xlu0 0
  %2102 = vperm.xlu0 %2101, %v1500
  %v2103 = vpop.permute.xlu0 %2102
  %2106 = vset.pattern.permute.xlu0 0
  %2107 = vperm.xlu0 %2106, %v1501
  %v2108 = vpop.permute.xlu0 %2107
  %2111 = vset.pattern.permute.xlu0 0
  %2112 = vperm.xlu0 %2111, %v1502
  %v2113 = vpop.permute.xlu0 %2112
  %2116 = vset.pattern.permute.xlu0 0
  %2117 = vperm.xlu0 %2116, %v1503
  %v2118 = vpop.permute.xlu0 %2117
  %2121 = vset.pattern.permute.xlu0 0
  %2122 = vperm.xlu0 %2121, %v1504
  %v2123 = vpop.permute.xlu0 %2122
  %2126 = vset.pattern.permute.xlu0 0
  %2127 = vperm.xlu0 %2126, %v1505
  %v2128 = vpop.permute.xlu0 %2127
  %2131 = vset.pattern.permute.xlu0 0
  %2132 = vperm.xlu0 %2131, %v1506
  %v2133 = vpop.permute.xlu0 %2132
  %2136 = vset.pattern.permute.xlu0 0
  %2137 = vperm.xlu0 %2136, %v1507
  %v2138 = vpop.permute.xlu0 %2137
  %2141 = vset.pattern.permute.xlu0 0
  %2142 = vperm.xlu0 %2141, %v1508
  %v2143 = vpop.permute.xlu0 %2142
  %2146 = vset.pattern.permute.xlu0 0
  %2147 = vperm.xlu0 %2146, %v1509
  %v2148 = vpop.permute.xlu0 %2147
  %2151 = vset.pattern.permute.xlu0 0
  %2152 = vperm.xlu0 %2151, %v1510
  %v2153 = vpop.permute.xlu0 %2152
  %2156 = vset.pattern.permute.xlu0 0
  %2157 = vperm.xlu0 %2156, %v1511
  %v2158 = vpop.permute.xlu0 %2157
  %2161 = vset.pattern.permute.xlu0 0
  %2162 = vperm.xlu0 %2161, %v1512
  %v2163 = vpop.permute.xlu0 %2162
  %2166 = vset.pattern.permute.xlu0 0
  %2167 = vperm.xlu0 %2166, %v1513
  %v2168 = vpop.permute.xlu0 %2167
  %2171 = vset.pattern.permute.xlu0 0
  %2172 = vperm.xlu0 %2171, %v1514
  %v2173 = vpop.permute.xlu0 %2172
  %2176 = vset.pattern.permute.xlu0 0
  %2177 = vperm.xlu0 %2176, %v1515
  %v2178 = vpop.permute.xlu0 %2177
  %2181 = vset.pattern.permute.xlu0 0
  %2182 = vperm.xlu0 %2181, %v1516
  %v2183 = vpop.permute.xlu0 %2182
  %2186 = vset.pattern.permute.xlu0 0
  %2187 = vperm.xlu0 %2186, %v1517
  %v2188 = vpop.permute.xlu0 %2187
  %2191 = vset.pattern.permute.xlu0 0
  %2192 = vperm.xlu0 %2191, %v1518
  %v2193 = vpop.permute.xlu0 %2192
  %2196 = vset.pattern.permute.xlu0 0
  %2197 = vperm.xlu0 %2196, %v1519
  %v2198 = vpop.permute.xlu0 %2197
  %2201 = vset.pattern.permute.xlu0 0
  %2202 = vperm.xlu0 %2201, %v1520
  %v2203 = vpop.permute.xlu0 %2202
  %2206 = vset.pattern.permute.xlu0 0
  %2207 = vperm.xlu0 %2206, %v1521
  %v2208 = vpop.permute.xlu0 %2207
  %2211 = vset.pattern.permute.xlu0 0
  %2212 = vperm.xlu0 %2211, %v1522
  %v2213 = vpop.permute.xlu0 %2212
  %2216 = vset.pattern.permute.xlu0 0
  %2217 = vperm.xlu0 %2216, %v1523
  %v2218 = vpop.permute.xlu0 %2217
  %2221 = vset.pattern.permute.xlu0 0
  %2222 = vperm.xlu0 %2221, %v1524
  %v2223 = vpop.permute.xlu0 %2222
  %2226 = vset.pattern.permute.xlu0 0
  %2227 = vperm.xlu0 %2226, %v1525
  %v2228 = vpop.permute.xlu0 %2227
  %2231 = vset.pattern.permute.xlu0 0
  %2232 = vperm.xlu0 %2231, %v1526
  %v2233 = vpop.permute.xlu0 %2232
  %2236 = vset.pattern.permute.xlu0 0
  %2237 = vperm.xlu0 %2236, %v1527
  %v2238 = vpop.permute.xlu0 %2237
  %2241 = vset.pattern.permute.xlu0 0
  %2242 = vperm.xlu0 %2241, %v1528
  %v2243 = vpop.permute.xlu0 %2242
  %2246 = vset.pattern.permute.xlu0 0
  %2247 = vperm.xlu0 %2246, %v1529
  %v2248 = vpop.permute.xlu0 %2247
  %2251 = vset.pattern.permute.xlu0 0
  %2252 = vperm.xlu0 %2251, %v1530
  %v2253 = vpop.permute.xlu0 %2252
  %2256 = vset.pattern.permute.xlu0 0
  %2257 = vperm.xlu0 %2256, %v1531
  %v2258 = vpop.permute.xlu0 %2257
  %2261 = vset.pattern.permute.xlu0 0
  %2262 = vperm.xlu0 %2261, %v1532
  %v2263 = vpop.permute.xlu0 %2262
  %2266 = vset.pattern.permute.xlu0 0
  %2267 = vperm.xlu0 %2266, %v1533
  %v2268 = vpop.permute.xlu0 %2267
  %2271 = vset.pattern.permute.xlu0 0
  %2272 = vperm.xlu0 %2271, %v1534
  %v2273 = vpop.permute.xlu0 %2272
  %2276 = vset.pattern.permute.xlu0 0
  %2277 = vperm.xlu0 %2276, %v1535
  %v2278 = vpop.permute.xlu0 %2277
  %2281 = vset.pattern.permute.xlu0 0
  %2282 = vperm.xlu0 %2281, %v1536
  %v2283 = vpop.permute.xlu0 %2282
  %2286 = vset.pattern.permute.xlu0 0
  %2287 = vperm.xlu0 %2286, %v1537
  %v2288 = vpop.permute.xlu0 %2287
  %2291 = vset.pattern.permute.xlu0 0
  %2292 = vperm.xlu0 %2291, %v1538
  %v2293 = vpop.permute.xlu0 %2292
  %2296 = vset.pattern.permute.xlu0 0
  %2297 = vperm.xlu0 %2296, %v1539
  %v2298 = vpop.permute.xlu0 %2297
  %2301 = vset.pattern.permute.xlu0 0
  %2302 = vperm.xlu0 %2301, %v1540
  %v2303 = vpop.permute.xlu0 %2302
  %2306 = vset.pattern.permute.xlu0 0
  %2307 = vperm.xlu0 %2306, %v1541
  %v2308 = vpop.permute.xlu0 %2307
  %2311 = vset.pattern.permute.xlu0 0
  %2312 = vperm.xlu0 %2311, %v1542
  %v2313 = vpop.permute.xlu0 %2312
  %2316 = vset.pattern.permute.xlu0 0
  %2317 = vperm.xlu0 %2316, %v1543
  %v2318 = vpop.permute.xlu0 %2317
  %2321 = vset.pattern.permute.xlu0 0
  %2322 = vperm.xlu0 %2321, %v1544
  %v2323 = vpop.permute.xlu0 %2322
  %2326 = vset.pattern.permute.xlu0 0
  %2327 = vperm.xlu0 %2326, %v1545
  %v2328 = vpop.permute.xlu0 %2327
  %2331 = vset.pattern.permute.xlu0 0
  %2332 = vperm.xlu0 %2331, %v1546
  %v2333 = vpop.permute.xlu0 %2332
  %2336 = vset.pattern.permute.xlu0 0
  %2337 = vperm.xlu0 %2336, %v1547
  %v2338 = vpop.permute.xlu0 %2337
  %v2340 = vadd.f32 %v1878, %v2013
  %v2341 = vadd.f32 %v1879, %v2013
  %v2342 = vadd.f32 %v1880, %v2018
  %v2343 = vadd.f32 %v1881, %v2018
  %v2344 = vadd.f32 %v1882, %v2023
  %v2345 = vadd.f32 %v1883, %v2023
  %v2346 = vadd.f32 %v1884, %v2028
  %v2347 = vadd.f32 %v1885, %v2028
  %v2348 = vadd.f32 %v1886, %v2033
  %v2349 = vadd.f32 %v1887, %v2033
  %v2350 = vadd.f32 %v1888, %v2038
  %v2351 = vadd.f32 %v1889, %v2038
  %v2352 = vadd.f32 %v1890, %v2043
  %v2353 = vadd.f32 %v1891, %v2043
  %v2354 = vadd.f32 %v1892, %v2048
  %v2355 = vadd.f32 %v1893, %v2048
  %v2356 = vadd.f32 %v1894, %v2053
  %v2357 = vadd.f32 %v1895, %v2053
  %v2358 = vadd.f32 %v1896, %v2058
  %v2359 = vadd.f32 %v1897, %v2058
  %v2360 = vadd.f32 %v1898, %v2063
  %v2361 = vadd.f32 %v1899, %v2063
  %v2362 = vadd.f32 %v1900, %v2068
  %v2363 = vadd.f32 %v1901, %v2068
  %v2364 = vadd.f32 %v1902, %v2073
  %v2365 = vadd.f32 %v1903, %v2073
  %v2366 = vadd.f32 %v1904, %v2078
  %v2367 = vadd.f32 %v1905, %v2078
  %v2368 = vadd.f32 %v1906, %v2083
  %v2369 = vadd.f32 %v1907, %v2083
  %v2370 = vadd.f32 %v1908, %v2088
  %v2371 = vadd.f32 %v1909, %v2088
  %v2372 = vadd.f32 %v1910, %v2093
  %v2373 = vadd.f32 %v1911, %v2093
  %v2374 = vadd.f32 %v1912, %v2098
  %v2375 = vadd.f32 %v1913, %v2098
  %v2376 = vadd.f32 %v1914, %v2103
  %v2377 = vadd.f32 %v1915, %v2103
  %v2378 = vadd.f32 %v1916, %v2108
  %v2379 = vadd.f32 %v1917, %v2108
  %v2380 = vadd.f32 %v1918, %v2113
  %v2381 = vadd.f32 %v1919, %v2113
  %v2382 = vadd.f32 %v1920, %v2118
  %v2383 = vadd.f32 %v1921, %v2118
  %v2384 = vadd.f32 %v1922, %v2123
  %v2385 = vadd.f32 %v1923, %v2123
  %v2386 = vadd.f32 %v1924, %v2128
  %v2387 = vadd.f32 %v1925, %v2128
  %v2388 = vadd.f32 %v1926, %v2133
  %v2389 = vadd.f32 %v1927, %v2133
  %v2390 = vadd.f32 %v1928, %v2138
  %v2391 = vadd.f32 %v1929, %v2138
  %v2392 = vadd.f32 %v1930, %v2143
  %v2393 = vadd.f32 %v1931, %v2143
  %v2394 = vadd.f32 %v1932, %v2148
  %v2395 = vadd.f32 %v1933, %v2148
  %v2396 = vadd.f32 %v1934, %v2153
  %v2397 = vadd.f32 %v1935, %v2153
  %v2398 = vadd.f32 %v1936, %v2158
  %v2399 = vadd.f32 %v1937, %v2158
  %v2400 = vadd.f32 %v1938, %v2163
  %v2401 = vadd.f32 %v1939, %v2163
  %v2402 = vadd.f32 %v1940, %v2168
  %v2403 = vadd.f32 %v1941, %v2168
  %v2404 = vadd.f32 %v1942, %v2173
  %v2405 = vadd.f32 %v1943, %v2173
  %v2406 = vadd.f32 %v1944, %v2178
  %v2407 = vadd.f32 %v1945, %v2178
  %v2408 = vadd.f32 %v1946, %v2183
  %v2409 = vadd.f32 %v1947, %v2183
  %v2410 = vadd.f32 %v1948, %v2188
  %v2411 = vadd.f32 %v1949, %v2188
  %v2412 = vadd.f32 %v1950, %v2193
  %v2413 = vadd.f32 %v1951, %v2193
  %v2414 = vadd.f32 %v1952, %v2198
  %v2415 = vadd.f32 %v1953, %v2198
  %v2416 = vadd.f32 %v1954, %v2203
  %v2417 = vadd.f32 %v1955, %v2203
  %v2418 = vadd.f32 %v1956, %v2208
  %v2419 = vadd.f32 %v1957, %v2208
  %v2420 = vadd.f32 %v1958, %v2213
  %v2421 = vadd.f32 %v1959, %v2213
  %v2422 = vadd.f32 %v1960, %v2218
  %v2423 = vadd.f32 %v1961, %v2218
  %v2424 = vadd.f32 %v1962, %v2223
  %v2425 = vadd.f32 %v1963, %v2223
  %v2426 = vadd.f32 %v1964, %v2228
  %v2427 = vadd.f32 %v1965, %v2228
  %v2428 = vadd.f32 %v1966, %v2233
  %v2429 = vadd.f32 %v1967, %v2233
  %v2430 = vadd.f32 %v1968, %v2238
  %v2431 = vadd.f32 %v1969, %v2238
  %v2432 = vadd.f32 %v1970, %v2243
  %v2433 = vadd.f32 %v1971, %v2243
  %v2434 = vadd.f32 %v1972, %v2248
  %v2435 = vadd.f32 %v1973, %v2248
  %v2436 = vadd.f32 %v1974, %v2253
  %v2437 = vadd.f32 %v1975, %v2253
  %v2438 = vadd.f32 %v1976, %v2258
  %v2439 = vadd.f32 %v1977, %v2258
  %v2440 = vadd.f32 %v1978, %v2263
  %v2441 = vadd.f32 %v1979, %v2263
  %v2442 = vadd.f32 %v1980, %v2268
  %v2443 = vadd.f32 %v1981, %v2268
  %v2444 = vadd.f32 %v1982, %v2273
  %v2445 = vadd.f32 %v1983, %v2273
  %v2446 = vadd.f32 %v1984, %v2278
  %v2447 = vadd.f32 %v1985, %v2278
  %v2448 = vadd.f32 %v1986, %v2283
  %v2449 = vadd.f32 %v1987, %v2283
  %v2450 = vadd.f32 %v1988, %v2288
  %v2451 = vadd.f32 %v1989, %v2288
  %v2452 = vadd.f32 %v1990, %v2293
  %v2453 = vadd.f32 %v1991, %v2293
  %v2454 = vadd.f32 %v1992, %v2298
  %v2455 = vadd.f32 %v1993, %v2298
  %v2456 = vadd.f32 %v1994, %v2303
  %v2457 = vadd.f32 %v1995, %v2303
  %v2458 = vadd.f32 %v1996, %v2308
  %v2459 = vadd.f32 %v1997, %v2308
  %v2460 = vadd.f32 %v1998, %v2313
  %v2461 = vadd.f32 %v1999, %v2313
  %v2462 = vadd.f32 %v2000, %v2318
  %v2463 = vadd.f32 %v2001, %v2318
  %v2464 = vadd.f32 %v2002, %v2323
  %v2465 = vadd.f32 %v2003, %v2323
  %v2466 = vadd.f32 %v2004, %v2328
  %v2467 = vadd.f32 %v2005, %v2328
  %v2468 = vadd.f32 %v2006, %v2333
  %v2469 = vadd.f32 %v2007, %v2333
  %v2470 = vadd.f32 %v2008, %v2338
  %v2471 = vadd.f32 %v2009, %v2338
  %v2472 = vmax.f32 %v2340, 0.0
  %v2473 = vmax.f32 %v2341, 0.0
  %v2474 = vmax.f32 %v2342, 0.0
  %v2475 = vmax.f32 %v2343, 0.0
  %v2476 = vmax.f32 %v2344, 0.0
  %v2477 = vmax.f32 %v2345, 0.0
  %v2478 = vmax.f32 %v2346, 0.0
  %v2479 = vmax.f32 %v2347, 0.0
  %v2480 = vmax.f32 %v2348, 0.0
  %v2481 = vmax.f32 %v2349, 0.0
  %v2482 = vmax.f32 %v2350, 0.0
  %v2483 = vmax.f32 %v2351, 0.0
  %v2484 = vmax.f32 %v2352, 0.0
  %v2485 = vmax.f32 %v2353, 0.0
  %v2486 = vmax.f32 %v2354, 0.0
  %v2487 = vmax.f32 %v2355, 0.0
  %v2488 = vmax.f32 %v2356, 0.0
  %v2489 = vmax.f32 %v2357, 0.0
  %v2490 = vmax.f32 %v2358, 0.0
  %v2491 = vmax.f32 %v2359, 0.0
  %v2492 = vmax.f32 %v2360, 0.0
  %v2493 = vmax.f32 %v2361, 0.0
  %v2494 = vmax.f32 %v2362, 0.0
  %v2495 = vmax.f32 %v2363, 0.0
  %v2496 = vmax.f32 %v2364, 0.0
  %v2497 = vmax.f32 %v2365, 0.0
  %v2498 = vmax.f32 %v2366, 0.0
  %v2499 = vmax.f32 %v2367, 0.0
  %v2500 = vmax.f32 %v2368, 0.0
  %v2501 = vmax.f32 %v2369, 0.0
  %v2502 = vmax.f32 %v2370, 0.0
  %v2503 = vmax.f32 %v2371, 0.0
  %v2504 = vmax.f32 %v2372, 0.0
  %v2505 = vmax.f32 %v2373, 0.0
  %v2506 = vmax.f32 %v2374, 0.0
  %v2507 = vmax.f32 %v2375, 0.0
  %v2508 = vmax.f32 %v2376, 0.0
  %v2509 = vmax.f32 %v2377, 0.0
  %v2510 = vmax.f32 %v2378, 0.0
  %v2511 = vmax.f32 %v2379, 0.0
  %v2512 = vmax.f32 %v2380, 0.0
  %v2513 = vmax.f32 %v2381, 0.0
  %v2514 = vmax.f32 %v2382, 0.0
  %v2515 = vmax.f32 %v2383, 0.0
  %v2516 = vmax.f32 %v2384, 0.0
  %v2517 = vmax.f32 %v2385, 0.0
  %v2518 = vmax.f32 %v2386, 0.0
  %v2519 = vmax.f32 %v2387, 0.0
  %v2520 = vmax.f32 %v2388, 0.0
  %v2521 = vmax.f32 %v2389, 0.0
  %v2522 = vmax.f32 %v2390, 0.0
  %v2523 = vmax.f32 %v2391, 0.0
  %v2524 = vmax.f32 %v2392, 0.0
  %v2525 = vmax.f32 %v2393, 0.0
  %v2526 = vmax.f32 %v2394, 0.0
  %v2527 = vmax.f32 %v2395, 0.0
  %v2528 = vmax.f32 %v2396, 0.0
  %v2529 = vmax.f32 %v2397, 0.0
  %v2530 = vmax.f32 %v2398, 0.0
  %v2531 = vmax.f32 %v2399, 0.0
  %v2532 = vmax.f32 %v2400, 0.0
  %v2533 = vmax.f32 %v2401, 0.0
  %v2534 = vmax.f32 %v2402, 0.0
  %v2535 = vmax.f32 %v2403, 0.0
  %v2536 = vmax.f32 %v2404, 0.0
  %v2537 = vmax.f32 %v2405, 0.0
  %v2538 = vmax.f32 %v2406, 0.0
  %v2539 = vmax.f32 %v2407, 0.0
  %v2540 = vmax.f32 %v2408, 0.0
  %v2541 = vmax.f32 %v2409, 0.0
  %v2542 = vmax.f32 %v2410, 0.0
  %v2543 = vmax.f32 %v2411, 0.0
  %v2544 = vmax.f32 %v2412, 0.0
  %v2545 = vmax.f32 %v2413, 0.0
  %v2546 = vmax.f32 %v2414, 0.0
  %v2547 = vmax.f32 %v2415, 0.0
  %v2548 = vmax.f32 %v2416, 0.0
  %v2549 = vmax.f32 %v2417, 0.0
  %v2550 = vmax.f32 %v2418, 0.0
  %v2551 = vmax.f32 %v2419, 0.0
  %v2552 = vmax.f32 %v2420, 0.0
  %v2553 = vmax.f32 %v2421, 0.0
  %v2554 = vmax.f32 %v2422, 0.0
  %v2555 = vmax.f32 %v2423, 0.0
  %v2556 = vmax.f32 %v2424, 0.0
  %v2557 = vmax.f32 %v2425, 0.0
  %v2558 = vmax.f32 %v2426, 0.0
  %v2559 = vmax.f32 %v2427, 0.0
  %v2560 = vmax.f32 %v2428, 0.0
  %v2561 = vmax.f32 %v2429, 0.0
  %v2562 = vmax.f32 %v2430, 0.0
  %v2563 = vmax.f32 %v2431, 0.0
  %v2564 = vmax.f32 %v2432, 0.0
  %v2565 = vmax.f32 %v2433, 0.0
  %v2566 = vmax.f32 %v2434, 0.0
  %v2567 = vmax.f32 %v2435, 0.0
  %v2568 = vmax.f32 %v2436, 0.0
  %v2569 = vmax.f32 %v2437, 0.0
  %v2570 = vmax.f32 %v2438, 0.0
  %v2571 = vmax.f32 %v2439, 0.0
  %v2572 = vmax.f32 %v2440, 0.0
  %v2573 = vmax.f32 %v2441, 0.0
  %v2574 = vmax.f32 %v2442, 0.0
  %v2575 = vmax.f32 %v2443, 0.0
  %v2576 = vmax.f32 %v2444, 0.0
  %v2577 = vmax.f32 %v2445, 0.0
  %v2578 = vmax.f32 %v2446, 0.0
  %v2579 = vmax.f32 %v2447, 0.0
  %v2580 = vmax.f32 %v2448, 0.0
  %v2581 = vmax.f32 %v2449, 0.0
  %v2582 = vmax.f32 %v2450, 0.0
  %v2583 = vmax.f32 %v2451, 0.0
  %v2584 = vmax.f32 %v2452, 0.0
  %v2585 = vmax.f32 %v2453, 0.0
  %v2586 = vmax.f32 %v2454, 0.0
  %v2587 = vmax.f32 %v2455, 0.0
  %v2588 = vmax.f32 %v2456, 0.0
  %v2589 = vmax.f32 %v2457, 0.0
  %v2590 = vmax.f32 %v2458, 0.0
  %v2591 = vmax.f32 %v2459, 0.0
  %v2592 = vmax.f32 %v2460, 0.0
  %v2593 = vmax.f32 %v2461, 0.0
  %v2594 = vmax.f32 %v2462, 0.0
  %v2595 = vmax.f32 %v2463, 0.0
  %v2596 = vmax.f32 %v2464, 0.0
  %v2597 = vmax.f32 %v2465, 0.0
  %v2598 = vmax.f32 %v2466, 0.0
  %v2599 = vmax.f32 %v2467, 0.0
  %v2600 = vmax.f32 %v2468, 0.0
  %v2601 = vmax.f32 %v2469, 0.0
  %v2602 = vmax.f32 %v2470, 0.0
  %v2603 = vmax.f32 %v2471, 0.0
  %v2604 = vld [vmem:[%s3] sm:$0xff]
  %v2605 = vld [vmem:[%s3 + $0x8] sm:$0xff]
  %v2606 = vld [vmem:[%s3 + $0x10] sm:$0xff]
  %v2607 = vld [vmem:[%s3 + $0x18] sm:$0xff]
  %v2608 = vld [vmem:[%s3 + $0x20] sm:$0xff]
  %v2609 = vld [vmem:[%s3 + $0x28] sm:$0xff]
  %v2610 = vld [vmem:[%s3 + $0x30] sm:$0xff]
  %v2611 = vld [vmem:[%s3 + $0x38] sm:$0xff]
  %v2612 = vld [vmem:[%s3 + $0x40] sm:$0xff]
  %v2613 = vld [vmem:[%s3 + $0x48] sm:$0xff]
  %v2614 = vld [vmem:[%s3 + $0x50] sm:$0xff]
  %v2615 = vld [vmem:[%s3 + $0x58] sm:$0xff]
  %v2616 = vld [vmem:[%s3 + $0x60] sm:$0xff]
  %v2617 = vld [vmem:[%s3 + $0x68] sm:$0xff]
  %v2618 = vld [vmem:[%s3 + $0x70] sm:$0xff]
  %v2619 = vld [vmem:[%s3 + $0x78] sm:$0xff]
  %v2620 = vld [vmem:[%s3 + $0x80] sm:$0xff]
  %v2621 = vld [vmem:[%s3 + $0x88] sm:$0xff]
  %v2622 = vld [vmem:[%s3 + $0x90] sm:$0xff]
  %v2623 = vld [vmem:[%s3 + $0x98] sm:$0xff]
  %v2624 = vld [vmem:[%s3 + $0xa0] sm:$0xff]
  %v2625 = vld [vmem:[%s3 + $0xa8] sm:$0xff]
  %v2626 = vld [vmem:[%s3 + $0xb0] sm:$0xff]
  %v2627 = vld [vmem:[%s3 + $0xb8] sm:$0xff]
  %v2628 = vld [vmem:[%s3 + $0xc0] sm:$0xff]
  %v2629 = vld [vmem:[%s3 + $0xc8] sm:$0xff]
  %v2630 = vld [vmem:[%s3 + $0xd0] sm:$0xff]
  %v2631 = vld [vmem:[%s3 + $0xd8] sm:$0xff]
  %v2632 = vld [vmem:[%s3 + $0xe0] sm:$0xff]
  %v2633 = vld [vmem:[%s3 + $0xe8] sm:$0xff]
  %v2634 = vld [vmem:[%s3 + $0xf0] sm:$0xff]
  %v2635 = vld [vmem:[%s3 + $0xf8] sm:$0xff]
  %v2636 = vld [vmem:[%s3 + $0x100] sm:$0xff]
  %v2637 = vld [vmem:[%s3 + $0x108] sm:$0xff]
  %v2638 = vld [vmem:[%s3 + $0x110] sm:$0xff]
  %v2639 = vld [vmem:[%s3 + $0x118] sm:$0xff]
  %v2640 = vld [vmem:[%s3 + $0x120] sm:$0xff]
  %v2641 = vld [vmem:[%s3 + $0x128] sm:$0xff]
  %v2642 = vld [vmem:[%s3 + $0x130] sm:$0xff]
  %v2643 = vld [vmem:[%s3 + $0x138] sm:$0xff]
  %v2644 = vld [vmem:[%s3 + $0x140] sm:$0xff]
  %v2645 = vld [vmem:[%s3 + $0x148] sm:$0xff]
  %v2646 = vld [vmem:[%s3 + $0x150] sm:$0xff]
  %v2647 = vld [vmem:[%s3 + $0x158] sm:$0xff]
  %v2648 = vld [vmem:[%s3 + $0x160] sm:$0xff]
  %v2649 = vld [vmem:[%s3 + $0x168] sm:$0xff]
  %v2650 = vld [vmem:[%s3 + $0x170] sm:$0xff]
  %v2651 = vld [vmem:[%s3 + $0x178] sm:$0xff]
  %v2652 = vld [vmem:[%s3 + $0x180] sm:$0xff]
  %v2653 = vld [vmem:[%s3 + $0x188] sm:$0xff]
  %v2654 = vld [vmem:[%s3 + $0x190] sm:$0xff]
  %v2655 = vld [vmem:[%s3 + $0x198] sm:$0xff]
  %v2656 = vld [vmem:[%s3 + $0x1a0] sm:$0xff]
  %v2657 = vld [vmem:[%s3 + $0x1a8] sm:$0xff]
  %v2658 = vld [vmem:[%s3 + $0x1b0] sm:$0xff]
  %v2659 = vld [vmem:[%s3 + $0x1b8] sm:$0xff]
  %v2660 = vld [vmem:[%s3 + $0x1c0] sm:$0xff]
  %v2661 = vld [vmem:[%s3 + $0x1c8] sm:$0xff]
  %v2662 = vld [vmem:[%s3 + $0x1d0] sm:$0xff]
  %v2663 = vld [vmem:[%s3 + $0x1d8] sm:$0xff]
  %v2664 = vld [vmem:[%s3 + $0x1e0] sm:$0xff]
  %v2665 = vld [vmem:[%s3 + $0x1e8] sm:$0xff]
  %v2666 = vld [vmem:[%s3 + $0x1f0] sm:$0xff]
  %v2667 = vld [vmem:[%s3 + $0x1f8] sm:$0xff]
  %v2668 = vld [vmem:[%s3 + $0x200] sm:$0xff]
  %v2669 = vld [vmem:[%s3 + $0x208] sm:$0xff]
  %v2670 = vld [vmem:[%s3 + $0x210] sm:$0xff]
  %v2671 = vld [vmem:[%s3 + $0x218] sm:$0xff]
  %v2672 = vld [vmem:[%s3 + $0x220] sm:$0xff]
  %v2673 = vld [vmem:[%s3 + $0x228] sm:$0xff]
  %v2674 = vld [vmem:[%s3 + $0x230] sm:$0xff]
  %v2675 = vld [vmem:[%s3 + $0x238] sm:$0xff]
  %v2676 = vld [vmem:[%s3 + $0x240] sm:$0xff]
  %v2677 = vld [vmem:[%s3 + $0x248] sm:$0xff]
  %v2678 = vld [vmem:[%s3 + $0x250] sm:$0xff]
  %v2679 = vld [vmem:[%s3 + $0x258] sm:$0xff]
  %v2680 = vld [vmem:[%s3 + $0x260] sm:$0xff]
  %v2681 = vld [vmem:[%s3 + $0x268] sm:$0xff]
  %v2682 = vld [vmem:[%s3 + $0x270] sm:$0xff]
  %v2683 = vld [vmem:[%s3 + $0x278] sm:$0xff]
  %v2684 = vld [vmem:[%s3 + $0x280] sm:$0xff]
  %v2685 = vld [vmem:[%s3 + $0x288] sm:$0xff]
  %v2686 = vld [vmem:[%s3 + $0x290] sm:$0xff]
  %v2687 = vld [vmem:[%s3 + $0x298] sm:$0xff]
  %v2688 = vld [vmem:[%s3 + $0x2a0] sm:$0xff]
  %v2689 = vld [vmem:[%s3 + $0x2a8] sm:$0xff]
  %v2690 = vld [vmem:[%s3 + $0x2b0] sm:$0xff]
  %v2691 = vld [vmem:[%s3 + $0x2b8] sm:$0xff]
  %v2692 = vld [vmem:[%s3 + $0x2c0] sm:$0xff]
  %v2693 = vld [vmem:[%s3 + $0x2c8] sm:$0xff]
  %v2694 = vld [vmem:[%s3 + $0x2d0] sm:$0xff]
  %v2695 = vld [vmem:[%s3 + $0x2d8] sm:$0xff]
  %v2696 = vld [vmem:[%s3 + $0x2e0] sm:$0xff]
  %v2697 = vld [vmem:[%s3 + $0x2e8] sm:$0xff]
  %v2698 = vld [vmem:[%s3 + $0x2f0] sm:$0xff]
  %v2699 = vld [vmem:[%s3 + $0x2f8] sm:$0xff]
  %v2700 = vld [vmem:[%s3 + $0x300] sm:$0xff]
  %v2701 = vld [vmem:[%s3 + $0x308] sm:$0xff]
  %v2702 = vld [vmem:[%s3 + $0x310] sm:$0xff]
  %v2703 = vld [vmem:[%s3 + $0x318] sm:$0xff]
  %v2704 = vld [vmem:[%s3 + $0x320] sm:$0xff]
  %v2705 = vld [vmem:[%s3 + $0x328] sm:$0xff]
  %v2706 = vld [vmem:[%s3 + $0x330] sm:$0xff]
  %v2707 = vld [vmem:[%s3 + $0x338] sm:$0xff]
  %v2708 = vld [vmem:[%s3 + $0x340] sm:$0xff]
  %v2709 = vld [vmem:[%s3 + $0x348] sm:$0xff]
  %v2710 = vld [vmem:[%s3 + $0x350] sm:$0xff]
  %v2711 = vld [vmem:[%s3 + $0x358] sm:$0xff]
  %v2712 = vld [vmem:[%s3 + $0x360] sm:$0xff]
  %v2713 = vld [vmem:[%s3 + $0x368] sm:$0xff]
  %v2714 = vld [vmem:[%s3 + $0x370] sm:$0xff]
  %v2715 = vld [vmem:[%s3 + $0x378] sm:$0xff]
  %v2716 = vld [vmem:[%s3 + $0x380] sm:$0xff]
  %v2717 = vld [vmem:[%s3 + $0x388] sm:$0xff]
  %v2718 = vld [vmem:[%s3 + $0x390] sm:$0xff]
  %v2719 = vld [vmem:[%s3 + $0x398] sm:$0xff]
  %v2720 = vld [vmem:[%s3 + $0x3a0] sm:$0xff]
  %v2721 = vld [vmem:[%s3 + $0x3a8] sm:$0xff]
  %v2722 = vld [vmem:[%s3 + $0x3b0] sm:$0xff]
  %v2723 = vld [vmem:[%s3 + $0x3b8] sm:$0xff]
  %vm2724 = vcmask 130048
  %v2726 = vsel %vm2724, %v2608, 0
  %v2729 = vsel %vm2724, %v2613, 0
  %v2732 = vsel %vm2724, %v2618, 0
  %v2735 = vsel %vm2724, %v2623, 0
  %v2738 = vsel %vm2724, %v2628, 0
  %v2741 = vsel %vm2724, %v2633, 0
  %v2744 = vsel %vm2724, %v2638, 0
  %v2747 = vsel %vm2724, %v2643, 0
  %v2750 = vsel %vm2724, %v2648, 0
  %v2753 = vsel %vm2724, %v2653, 0
  %v2756 = vsel %vm2724, %v2658, 0
  %v2759 = vsel %vm2724, %v2663, 0
  %v2762 = vsel %vm2724, %v2668, 0
  %v2765 = vsel %vm2724, %v2673, 0
  %v2768 = vsel %vm2724, %v2678, 0
  %v2771 = vsel %vm2724, %v2683, 0
  %v2774 = vsel %vm2724, %v2688, 0
  %v2777 = vsel %vm2724, %v2693, 0
  %v2780 = vsel %vm2724, %v2698, 0
  %v2783 = vsel %vm2724, %v2703, 0
  %v2786 = vsel %vm2724, %v2708, 0
  %v2789 = vsel %vm2724, %v2713, 0
  %v2792 = vsel %vm2724, %v2718, 0
  %v2795 = vsel %vm2724, %v2723, 0
  %2797 = vmatprep.subr.mxu0 %v2503
  %2798 = vmatpush1.msra.mxu0 %v2502
  %2799 = vmatprep.subr.mxu0 %v2501
  %2800 = vmatpush1.msra.mxu0 %v2500
  %2801 = vmatprep.subr.mxu0 %v2499
  %2802 = vmatpush1.msra.mxu0 %v2498
  %2803 = vmatprep.subr.mxu0 %v2497
  %2804 = vmatpush1.msra.mxu0 %v2496
  %2805 = vmatprep.subr.mxu0 %v2495
  %2806 = vmatpush1.msra.mxu0 %v2494
  %2807 = vmatprep.subr.mxu0 %v2493
  %2808 = vmatpush1.msra.mxu0 %v2492
  %2809 = vmatprep.subr.mxu0 %v2491
  %2810 = vmatpush1.msra.mxu0 %v2490
  %2811 = vmatprep.subr.mxu0 %v2489
  %2812 = vmatpush1.msra.mxu0 %v2488
  %2813 = vmatprep.subr.mxu0 %v2487
  %2814 = vmatpush1.msra.mxu0 %v2486
  %2815 = vmatprep.subr.mxu0 %v2485
  %2816 = vmatpush1.msra.mxu0 %v2484
  %2817 = vmatprep.subr.mxu0 %v2483
  %2818 = vmatpush1.msra.mxu0 %v2482
  %2819 = vmatprep.subr.mxu0 %v2481
  %2820 = vmatpush1.msra.mxu0 %v2480
  %2821 = vmatprep.subr.mxu0 %v2479
  %2822 = vmatpush1.msra.mxu0 %v2478
  %2823 = vmatprep.subr.mxu0 %v2477
  %2824 = vmatpush1.msra.mxu0 %v2476
  %2825 = vmatprep.subr.mxu0 %v2475
  %2826 = vmatpush1.msra.mxu0 %v2474
  %2827 = vmatprep.subr.mxu0 %v2473
  %2828 = vmatpush1.msra.mxu0 %v2472
  %2829 = vmatprep.subr.mxu0 %v2535
  %2830 = vmatpush2.msra.mxu0 %v2534
  %2831 = vmatprep.subr.mxu0 %v2533
  %2832 = vmatpush2.msra.mxu0 %v2532
  %2833 = vmatprep.subr.mxu0 %v2531
  %2834 = vmatpush2.msra.mxu0 %v2530
  %2835 = vmatprep.subr.mxu0 %v2529
  %2836 = vmatpush2.msra.mxu0 %v2528
  %2837 = vmatprep.subr.mxu0 %v2527
  %2838 = vmatpush2.msra.mxu0 %v2526
  %2839 = vmatprep.subr.mxu0 %v2525
  %2840 = vmatpush2.msra.mxu0 %v2524
  %2841 = vmatprep.subr.mxu0 %v2523
  %2842 = vmatpush2.msra.mxu0 %v2522
  %2843 = vmatprep.subr.mxu0 %v2521
  %2844 = vmatpush2.msra.mxu0 %v2520
  %2845 = vmatprep.subr.mxu0 %v2519
  %2846 = vmatpush2.msra.mxu0 %v2518
  %2847 = vmatprep.subr.mxu0 %v2517
  %2848 = vmatpush2.msra.mxu0 %v2516
  %2849 = vmatprep.subr.mxu0 %v2515
  %2850 = vmatpush2.msra.mxu0 %v2514
  %2851 = vmatprep.subr.mxu0 %v2513
  %2852 = vmatpush2.msra.mxu0 %v2512
  %2853 = vmatprep.subr.mxu0 %v2511
  %2854 = vmatpush2.msra.mxu0 %v2510
  %2855 = vmatprep.subr.mxu0 %v2509
  %2856 = vmatpush2.msra.mxu0 %v2508
  %2857 = vmatprep.subr.mxu0 %v2507
  %2858 = vmatpush2.msra.mxu0 %v2506
  %2859 = vmatprep.subr.mxu0 %v2505
  %2860 = vmatpush2.msra.mxu0 %v2504
  %2861 = vmatprep.mubr.f32.mxu0 %v2605
  %2862 = vmatmul.mubr.f32.gmra.mxu0 %v2604
  %v2863 = vpop.f32.mrf.mxu0
  %v2864 = vadd.f32 0.0, %v2863
  %v2865 = vpop.f32.mrf.mxu0
  %v2866 = vadd.f32 0.0, %v2865
  %2867 = vmatprep.mubr.f32.mxu0 %v2610
  %2868 = vmatmul.mubr.f32.gmra.mxu0 %v2609
  %v2869 = vpop.f32.mrf.mxu0
  %v2870 = vadd.f32 0.0, %v2869
  %v2871 = vpop.f32.mrf.mxu0
  %v2872 = vadd.f32 0.0, %v2871
  %2873 = vmatprep.mubr.f32.mxu0 %v2615
  %2874 = vmatmul.mubr.f32.gmra.mxu0 %v2614
  %v2875 = vpop.f32.mrf.mxu0
  %v2876 = vadd.f32 0.0, %v2875
  %v2877 = vpop.f32.mrf.mxu0
  %v2878 = vadd.f32 0.0, %v2877
  %2879 = vmatprep.mubr.f32.mxu0 %v2620
  %2880 = vmatmul.mubr.f32.gmra.mxu0 %v2619
  %v2881 = vpop.f32.mrf.mxu0
  %v2882 = vadd.f32 0.0, %v2881
  %v2883 = vpop.f32.mrf.mxu0
  %v2884 = vadd.f32 0.0, %v2883
  %2885 = vmatprep.mubr.f32.mxu0 %v2625
  %2886 = vmatmul.mubr.f32.gmra.mxu0 %v2624
  %v2887 = vpop.f32.mrf.mxu0
  %v2888 = vadd.f32 0.0, %v2887
  %v2889 = vpop.f32.mrf.mxu0
  %v2890 = vadd.f32 0.0, %v2889
  %2891 = vmatprep.mubr.f32.mxu0 %v2630
  %2892 = vmatmul.mubr.f32.gmra.mxu0 %v2629
  %v2893 = vpop.f32.mrf.mxu0
  %v2894 = vadd.f32 0.0, %v2893
  %v2895 = vpop.f32.mrf.mxu0
  %v2896 = vadd.f32 0.0, %v2895
  %2897 = vmatprep.mubr.f32.mxu0 %v2635
  %2898 = vmatmul.mubr.f32.gmra.mxu0 %v2634
  %v2899 = vpop.f32.mrf.mxu0
  %v2900 = vadd.f32 0.0, %v2899
  %v2901 = vpop.f32.mrf.mxu0
  %v2902 = vadd.f32 0.0, %v2901
  %2903 = vmatprep.mubr.f32.mxu0 %v2640
  %2904 = vmatmul.mubr.f32.gmra.mxu0 %v2639
  %v2905 = vpop.f32.mrf.mxu0
  %v2906 = vadd.f32 0.0, %v2905
  %v2907 = vpop.f32.mrf.mxu0
  %v2908 = vadd.f32 0.0, %v2907
  %2909 = vmatprep.mubr.f32.mxu0 %v2645
  %2910 = vmatmul.mubr.f32.gmra.mxu0 %v2644
  %v2911 = vpop.f32.mrf.mxu0
  %v2912 = vadd.f32 0.0, %v2911
  %v2913 = vpop.f32.mrf.mxu0
  %v2914 = vadd.f32 0.0, %v2913
  %2915 = vmatprep.mubr.f32.mxu0 %v2650
  %2916 = vmatmul.mubr.f32.gmra.mxu0 %v2649
  %v2917 = vpop.f32.mrf.mxu0
  %v2918 = vadd.f32 0.0, %v2917
  %v2919 = vpop.f32.mrf.mxu0
  %v2920 = vadd.f32 0.0, %v2919
  %2921 = vmatprep.mubr.f32.mxu0 %v2655
  %2922 = vmatmul.mubr.f32.gmra.mxu0 %v2654
  %v2923 = vpop.f32.mrf.mxu0
  %v2924 = vadd.f32 0.0, %v2923
  %v2925 = vpop.f32.mrf.mxu0
  %v2926 = vadd.f32 0.0, %v2925
  %2927 = vmatprep.mubr.f32.mxu0 %v2660
  %2928 = vmatmul.mubr.f32.gmra.mxu0 %v2659
  %v2929 = vpop.f32.mrf.mxu0
  %v2930 = vadd.f32 0.0, %v2929
  %v2931 = vpop.f32.mrf.mxu0
  %v2932 = vadd.f32 0.0, %v2931
  %2933 = vmatprep.mubr.f32.mxu0 %v2665
  %2934 = vmatmul.mubr.f32.gmra.mxu0 %v2664
  %v2935 = vpop.f32.mrf.mxu0
  %v2936 = vadd.f32 0.0, %v2935
  %v2937 = vpop.f32.mrf.mxu0
  %v2938 = vadd.f32 0.0, %v2937
  %2939 = vmatprep.mubr.f32.mxu0 %v2670
  %2940 = vmatmul.mubr.f32.gmra.mxu0 %v2669
  %v2941 = vpop.f32.mrf.mxu0
  %v2942 = vadd.f32 0.0, %v2941
  %v2943 = vpop.f32.mrf.mxu0
  %v2944 = vadd.f32 0.0, %v2943
  %2945 = vmatprep.mubr.f32.mxu0 %v2675
  %2946 = vmatmul.mubr.f32.gmra.mxu0 %v2674
  %v2947 = vpop.f32.mrf.mxu0
  %v2948 = vadd.f32 0.0, %v2947
  %v2949 = vpop.f32.mrf.mxu0
  %v2950 = vadd.f32 0.0, %v2949
  %2951 = vmatprep.mubr.f32.mxu0 %v2680
  %2952 = vmatmul.mubr.f32.gmra.mxu0 %v2679
  %v2953 = vpop.f32.mrf.mxu0
  %v2954 = vadd.f32 0.0, %v2953
  %v2955 = vpop.f32.mrf.mxu0
  %v2956 = vadd.f32 0.0, %v2955
  %2957 = vmatprep.mubr.f32.mxu0 %v2685
  %2958 = vmatmul.mubr.f32.gmra.mxu0 %v2684
  %v2959 = vpop.f32.mrf.mxu0
  %v2960 = vadd.f32 0.0, %v2959
  %v2961 = vpop.f32.mrf.mxu0
  %v2962 = vadd.f32 0.0, %v2961
  %2963 = vmatprep.mubr.f32.mxu0 %v2690
  %2964 = vmatmul.mubr.f32.gmra.mxu0 %v2689
  %v2965 = vpop.f32.mrf.mxu0
  %v2966 = vadd.f32 0.0, %v2965
  %v2967 = vpop.f32.mrf.mxu0
  %v2968 = vadd.f32 0.0, %v2967
  %2969 = vmatprep.mubr.f32.mxu0 %v2695
  %2970 = vmatmul.mubr.f32.gmra.mxu0 %v2694
  %v2971 = vpop.f32.mrf.mxu0
  %v2972 = vadd.f32 0.0, %v2971
  %v2973 = vpop.f32.mrf.mxu0
  %v2974 = vadd.f32 0.0, %v2973
  %2975 = vmatprep.mubr.f32.mxu0 %v2700
  %2976 = vmatmul.mubr.f32.gmra.mxu0 %v2699
  %v2977 = vpop.f32.mrf.mxu0
  %v2978 = vadd.f32 0.0, %v2977
  %v2979 = vpop.f32.mrf.mxu0
  %v2980 = vadd.f32 0.0, %v2979
  %2981 = vmatprep.mubr.f32.mxu0 %v2705
  %2982 = vmatmul.mubr.f32.gmra.mxu0 %v2704
  %v2983 = vpop.f32.mrf.mxu0
  %v2984 = vadd.f32 0.0, %v2983
  %v2985 = vpop.f32.mrf.mxu0
  %v2986 = vadd.f32 0.0, %v2985
  %2987 = vmatprep.mubr.f32.mxu0 %v2710
  %2988 = vmatmul.mubr.f32.gmra.mxu0 %v2709
  %v2989 = vpop.f32.mrf.mxu0
  %v2990 = vadd.f32 0.0, %v2989
  %v2991 = vpop.f32.mrf.mxu0
  %v2992 = vadd.f32 0.0, %v2991
  %2993 = vmatprep.mubr.f32.mxu0 %v2715
  %2994 = vmatmul.mubr.f32.gmra.mxu0 %v2714
  %v2995 = vpop.f32.mrf.mxu0
  %v2996 = vadd.f32 0.0, %v2995
  %v2997 = vpop.f32.mrf.mxu0
  %v2998 = vadd.f32 0.0, %v2997
  %2999 = vmatprep.mubr.f32.mxu0 %v2720
  %3000 = vmatmul.mubr.f32.gmra.mxu0 %v2719
  %v3001 = vpop.f32.mrf.mxu0
  %v3002 = vadd.f32 0.0, %v3001
  %v3003 = vpop.f32.mrf.mxu0
  %v3004 = vadd.f32 0.0, %v3003
  %3005 = vdwg.mxu0
  %3006 = vmatprep.subr.mxu0 %v2567
  %3007 = vmatpush1.msra.mxu0 %v2566
  %3008 = vmatprep.subr.mxu0 %v2565
  %3009 = vmatpush1.msra.mxu0 %v2564
  %3010 = vmatprep.subr.mxu0 %v2563
  %3011 = vmatpush1.msra.mxu0 %v2562
  %3012 = vmatprep.subr.mxu0 %v2561
  %3013 = vmatpush1.msra.mxu0 %v2560
  %3014 = vmatprep.subr.mxu0 %v2559
  %3015 = vmatpush1.msra.mxu0 %v2558
  %3016 = vmatprep.subr.mxu0 %v2557
  %3017 = vmatpush1.msra.mxu0 %v2556
  %3018 = vmatprep.subr.mxu0 %v2555
  %3019 = vmatpush1.msra.mxu0 %v2554
  %3020 = vmatprep.subr.mxu0 %v2553
  %3021 = vmatpush1.msra.mxu0 %v2552
  %3022 = vmatprep.subr.mxu0 %v2551
  %3023 = vmatpush1.msra.mxu0 %v2550
  %3024 = vmatprep.subr.mxu0 %v2549
  %3025 = vmatpush1.msra.mxu0 %v2548
  %3026 = vmatprep.subr.mxu0 %v2547
  %3027 = vmatpush1.msra.mxu0 %v2546
  %3028 = vmatprep.subr.mxu0 %v2545
  %3029 = vmatpush1.msra.mxu0 %v2544
  %3030 = vmatprep.subr.mxu0 %v2543
  %3031 = vmatpush1.msra.mxu0 %v2542
  %3032 = vmatprep.subr.mxu0 %v2541
  %3033 = vmatpush1.msra.mxu0 %v2540
  %3034 = vmatprep.subr.mxu0 %v2539
  %3035 = vmatpush1.msra.mxu0 %v2538
  %3036 = vmatprep.subr.mxu0 %v2537
  %3037 = vmatpush1.msra.mxu0 %v2536
  %3038 = vmatprep.subr.mxu0 %v2599
  %3039 = vmatpush2.msra.mxu0 %v2598
  %3040 = vmatprep.subr.mxu0 %v2597
  %3041 = vmatpush2.msra.mxu0 %v2596
  %3042 = vmatprep.subr.mxu0 %v2595
  %3043 = vmatpush2.msra.mxu0 %v2594
  %3044 = vmatprep.subr.mxu0 %v2593
  %3045 = vmatpush2.msra.mxu0 %v2592
  %3046 = vmatprep.subr.mxu0 %v2591
  %3047 = vmatpush2.msra.mxu0 %v2590
  %3048 = vmatprep.subr.mxu0 %v2589
  %3049 = vmatpush2.msra.mxu0 %v2588
  %3050 = vmatprep.subr.mxu0 %v2587
  %3051 = vmatpush2.msra.mxu0 %v2586
  %3052 = vmatprep.subr.mxu0 %v2585
  %3053 = vmatpush2.msra.mxu0 %v2584
  %3054 = vmatprep.subr.mxu0 %v2583
  %3055 = vmatpush2.msra.mxu0 %v2582
  %3056 = vmatprep.subr.mxu0 %v2581
  %3057 = vmatpush2.msra.mxu0 %v2580
  %3058 = vmatprep.subr.mxu0 %v2579
  %3059 = vmatpush2.msra.mxu0 %v2578
  %3060 = vmatprep.subr.mxu0 %v2577
  %3061 = vmatpush2.msra.mxu0 %v2576
  %3062 = vmatprep.subr.mxu0 %v2575
  %3063 = vmatpush2.msra.mxu0 %v2574
  %3064 = vmatprep.subr.mxu0 %v2573
  %3065 = vmatpush2.msra.mxu0 %v2572
  %3066 = vmatprep.subr.mxu0 %v2571
  %3067 = vmatpush2.msra.mxu0 %v2570
  %3068 = vmatprep.subr.mxu0 %v2569
  %3069 = vmatpush2.msra.mxu0 %v2568
  %3070 = vmatprep.mubr.f32.mxu0 %v2607
  %3071 = vmatmul.mubr.f32.gmra.mxu0 %v2606
  %v3072 = vpop.f32.mrf.mxu0
  %v3073 = vadd.f32 %v2864, %v3072
  %v3074 = vpop.f32.mrf.mxu0
  %v3075 = vadd.f32 %v2866, %v3074
  %3076 = vmatprep.mubr.f32.mxu0 %v2612
  %3077 = vmatmul.mubr.f32.gmra.mxu0 %v2611
  %v3078 = vpop.f32.mrf.mxu0
  %v3079 = vadd.f32 %v2870, %v3078
  %v3080 = vpop.f32.mrf.mxu0
  %v3081 = vadd.f32 %v2872, %v3080
  %3082 = vmatprep.mubr.f32.mxu0 %v2617
  %3083 = vmatmul.mubr.f32.gmra.mxu0 %v2616
  %v3084 = vpop.f32.mrf.mxu0
  %v3085 = vadd.f32 %v2876, %v3084
  %v3086 = vpop.f32.mrf.mxu0
  %v3087 = vadd.f32 %v2878, %v3086
  %3088 = vmatprep.mubr.f32.mxu0 %v2622
  %3089 = vmatmul.mubr.f32.gmra.mxu0 %v2621
  %v3090 = vpop.f32.mrf.mxu0
  %v3091 = vadd.f32 %v2882, %v3090
  %v3092 = vpop.f32.mrf.mxu0
  %v3093 = vadd.f32 %v2884, %v3092
  %3094 = vmatprep.mubr.f32.mxu0 %v2627
  %3095 = vmatmul.mubr.f32.gmra.mxu0 %v2626
  %v3096 = vpop.f32.mrf.mxu0
  %v3097 = vadd.f32 %v2888, %v3096
  %v3098 = vpop.f32.mrf.mxu0
  %v3099 = vadd.f32 %v2890, %v3098
  %3100 = vmatprep.mubr.f32.mxu0 %v2632
  %3101 = vmatmul.mubr.f32.gmra.mxu0 %v2631
  %v3102 = vpop.f32.mrf.mxu0
  %v3103 = vadd.f32 %v2894, %v3102
  %v3104 = vpop.f32.mrf.mxu0
  %v3105 = vadd.f32 %v2896, %v3104
  %3106 = vmatprep.mubr.f32.mxu0 %v2637
  %3107 = vmatmul.mubr.f32.gmra.mxu0 %v2636
  %v3108 = vpop.f32.mrf.mxu0
  %v3109 = vadd.f32 %v2900, %v3108
  %v3110 = vpop.f32.mrf.mxu0
  %v3111 = vadd.f32 %v2902, %v3110
  %3112 = vmatprep.mubr.f32.mxu0 %v2642
  %3113 = vmatmul.mubr.f32.gmra.mxu0 %v2641
  %v3114 = vpop.f32.mrf.mxu0
  %v3115 = vadd.f32 %v2906, %v3114
  %v3116 = vpop.f32.mrf.mxu0
  %v3117 = vadd.f32 %v2908, %v3116
  %3118 = vmatprep.mubr.f32.mxu0 %v2647
  %3119 = vmatmul.mubr.f32.gmra.mxu0 %v2646
  %v3120 = vpop.f32.mrf.mxu0
  %v3121 = vadd.f32 %v2912, %v3120
  %v3122 = vpop.f32.mrf.mxu0
  %v3123 = vadd.f32 %v2914, %v3122
  %3124 = vmatprep.mubr.f32.mxu0 %v2652
  %3125 = vmatmul.mubr.f32.gmra.mxu0 %v2651
  %v3126 = vpop.f32.mrf.mxu0
  %v3127 = vadd.f32 %v2918, %v3126
  %v3128 = vpop.f32.mrf.mxu0
  %v3129 = vadd.f32 %v2920, %v3128
  %3130 = vmatprep.mubr.f32.mxu0 %v2657
  %3131 = vmatmul.mubr.f32.gmra.mxu0 %v2656
  %v3132 = vpop.f32.mrf.mxu0
  %v3133 = vadd.f32 %v2924, %v3132
  %v3134 = vpop.f32.mrf.mxu0
  %v3135 = vadd.f32 %v2926, %v3134
  %3136 = vmatprep.mubr.f32.mxu0 %v2662
  %3137 = vmatmul.mubr.f32.gmra.mxu0 %v2661
  %v3138 = vpop.f32.mrf.mxu0
  %v3139 = vadd.f32 %v2930, %v3138
  %v3140 = vpop.f32.mrf.mxu0
  %v3141 = vadd.f32 %v2932, %v3140
  %3142 = vmatprep.mubr.f32.mxu0 %v2667
  %3143 = vmatmul.mubr.f32.gmra.mxu0 %v2666
  %v3144 = vpop.f32.mrf.mxu0
  %v3145 = vadd.f32 %v2936, %v3144
  %v3146 = vpop.f32.mrf.mxu0
  %v3147 = vadd.f32 %v2938, %v3146
  %3148 = vmatprep.mubr.f32.mxu0 %v2672
  %3149 = vmatmul.mubr.f32.gmra.mxu0 %v2671
  %v3150 = vpop.f32.mrf.mxu0
  %v3151 = vadd.f32 %v2942, %v3150
  %v3152 = vpop.f32.mrf.mxu0
  %v3153 = vadd.f32 %v2944, %v3152
  %3154 = vmatprep.mubr.f32.mxu0 %v2677
  %3155 = vmatmul.mubr.f32.gmra.mxu0 %v2676
  %v3156 = vpop.f32.mrf.mxu0
  %v3157 = vadd.f32 %v2948, %v3156
  %v3158 = vpop.f32.mrf.mxu0
  %v3159 = vadd.f32 %v2950, %v3158
  %3160 = vmatprep.mubr.f32.mxu0 %v2682
  %3161 = vmatmul.mubr.f32.gmra.mxu0 %v2681
  %v3162 = vpop.f32.mrf.mxu0
  %v3163 = vadd.f32 %v2954, %v3162
  %v3164 = vpop.f32.mrf.mxu0
  %v3165 = vadd.f32 %v2956, %v3164
  %3166 = vmatprep.mubr.f32.mxu0 %v2687
  %3167 = vmatmul.mubr.f32.gmra.mxu0 %v2686
  %v3168 = vpop.f32.mrf.mxu0
  %v3169 = vadd.f32 %v2960, %v3168
  %v3170 = vpop.f32.mrf.mxu0
  %v3171 = vadd.f32 %v2962, %v3170
  %3172 = vmatprep.mubr.f32.mxu0 %v2692
  %3173 = vmatmul.mubr.f32.gmra.mxu0 %v2691
  %v3174 = vpop.f32.mrf.mxu0
  %v3175 = vadd.f32 %v2966, %v3174
  %v3176 = vpop.f32.mrf.mxu0
  %v3177 = vadd.f32 %v2968, %v3176
  %3178 = vmatprep.mubr.f32.mxu0 %v2697
  %3179 = vmatmul.mubr.f32.gmra.mxu0 %v2696
  %v3180 = vpop.f32.mrf.mxu0
  %v3181 = vadd.f32 %v2972, %v3180
  %v3182 = vpop.f32.mrf.mxu0
  %v3183 = vadd.f32 %v2974, %v3182
  %3184 = vmatprep.mubr.f32.mxu0 %v2702
  %3185 = vmatmul.mubr.f32.gmra.mxu0 %v2701
  %v3186 = vpop.f32.mrf.mxu0
  %v3187 = vadd.f32 %v2978, %v3186
  %v3188 = vpop.f32.mrf.mxu0
  %v3189 = vadd.f32 %v2980, %v3188
  %3190 = vmatprep.mubr.f32.mxu0 %v2707
  %3191 = vmatmul.mubr.f32.gmra.mxu0 %v2706
  %v3192 = vpop.f32.mrf.mxu0
  %v3193 = vadd.f32 %v2984, %v3192
  %v3194 = vpop.f32.mrf.mxu0
  %v3195 = vadd.f32 %v2986, %v3194
  %3196 = vmatprep.mubr.f32.mxu0 %v2712
  %3197 = vmatmul.mubr.f32.gmra.mxu0 %v2711
  %v3198 = vpop.f32.mrf.mxu0
  %v3199 = vadd.f32 %v2990, %v3198
  %v3200 = vpop.f32.mrf.mxu0
  %v3201 = vadd.f32 %v2992, %v3200
  %3202 = vmatprep.mubr.f32.mxu0 %v2717
  %3203 = vmatmul.mubr.f32.gmra.mxu0 %v2716
  %v3204 = vpop.f32.mrf.mxu0
  %v3205 = vadd.f32 %v2996, %v3204
  %v3206 = vpop.f32.mrf.mxu0
  %v3207 = vadd.f32 %v2998, %v3206
  %3208 = vmatprep.mubr.f32.mxu0 %v2722
  %3209 = vmatmul.mubr.f32.gmra.mxu0 %v2721
  %v3210 = vpop.f32.mrf.mxu0
  %v3211 = vadd.f32 %v3002, %v3210
  %v3212 = vpop.f32.mrf.mxu0
  %v3213 = vadd.f32 %v3004, %v3212
  %3214 = vdwg.mxu0
  %3215 = vmatprep.subr.mxu0 0.0
  %3216 = vmatpush1.msra.mxu0 0.0
  %3217 = vmatprep.subr.mxu0 0.0
  %3218 = vmatpush1.msra.mxu0 0.0
  %3219 = vmatprep.subr.mxu0 0.0
  %3220 = vmatpush1.msra.mxu0 0.0
  %3221 = vmatprep.subr.mxu0 0.0
  %3222 = vmatpush1.msra.mxu0 0.0
  %3223 = vmatprep.subr.mxu0 0.0
  %3224 = vmatpush1.msra.mxu0 0.0
  %3225 = vmatprep.subr.mxu0 0.0
  %3226 = vmatpush1.msra.mxu0 0.0
  %3227 = vmatprep.subr.mxu0 0.0
  %3228 = vmatpush1.msra.mxu0 0.0
  %3229 = vmatprep.subr.mxu0 0.0
  %3230 = vmatpush1.msra.mxu0 0.0
  %3231 = vmatprep.subr.mxu0 0.0
  %3232 = vmatpush1.msra.mxu0 0.0
  %3233 = vmatprep.subr.mxu0 0.0
  %3234 = vmatpush1.msra.mxu0 0.0
  %3235 = vmatprep.subr.mxu0 0.0
  %3236 = vmatpush1.msra.mxu0 0.0
  %3237 = vmatprep.subr.mxu0 0.0
  %3238 = vmatpush1.msra.mxu0 0.0
  %3239 = vmatprep.subr.mxu0 0.0
  %3240 = vmatpush1.msra.mxu0 0.0
  %3241 = vmatprep.subr.mxu0 0.0
  %3242 = vmatpush1.msra.mxu0 0.0
  %3243 = vmatprep.subr.mxu0 %v2603
  %3244 = vmatpush1.msra.mxu0 %v2602
  %3245 = vmatprep.subr.mxu0 %v2601
  %3246 = vmatpush1.msra.mxu0 %v2600
  %3247 = vmatprep.subr.mxu0 0.0
  %3248 = vmatpush2.msra.mxu0 0.0
  %3249 = vmatprep.subr.mxu0 0.0
  %3250 = vmatpush2.msra.mxu0 0.0
  %3251 = vmatprep.subr.mxu0 0.0
  %3252 = vmatpush2.msra.mxu0 0.0
  %3253 = vmatprep.subr.mxu0 0.0
  %3254 = vmatpush2.msra.mxu0 0.0
  %3255 = vmatprep.subr.mxu0 0.0
  %3256 = vmatpush2.msra.mxu0 0.0
  %3257 = vmatprep.subr.mxu0 0.0
  %3258 = vmatpush2.msra.mxu0 0.0
  %3259 = vmatprep.subr.mxu0 0.0
  %3260 = vmatpush2.msra.mxu0 0.0
  %3261 = vmatprep.subr.mxu0 0.0
  %3262 = vmatpush2.msra.mxu0 0.0
  %3263 = vmatprep.subr.mxu0 0.0
  %3264 = vmatpush2.msra.mxu0 0.0
  %3265 = vmatprep.subr.mxu0 0.0
  %3266 = vmatpush2.msra.mxu0 0.0
  %3267 = vmatprep.subr.mxu0 0.0
  %3268 = vmatpush2.msra.mxu0 0.0
  %3269 = vmatprep.subr.mxu0 0.0
  %3270 = vmatpush2.msra.mxu0 0.0
  %3271 = vmatprep.subr.mxu0 0.0
  %3272 = vmatpush2.msra.mxu0 0.0
  %3273 = vmatprep.subr.mxu0 0.0
  %3274 = vmatpush2.msra.mxu0 0.0
  %3275 = vmatprep.subr.mxu0 0.0
  %3276 = vmatpush2.msra.mxu0 0.0
  %3277 = vmatprep.subr.mxu0 0.0
  %3278 = vmatpush2.msra.mxu0 0.0
  %3279 = vmatprep.mubr.f32.mxu0 0.0
  %3280 = vmatmul.mubr.f32.gmra.mxu0 %v2726
  %v3281 = vpop.f32.mrf.mxu0
  %v3282 = vadd.f32 %v3073, %v3281
  %v3283 = vpop.f32.mrf.mxu0
  %v3284 = vadd.f32 %v3075, %v3283
  %3285 = vmatprep.mubr.f32.mxu0 0.0
  %3286 = vmatmul.mubr.f32.gmra.mxu0 %v2729
  %v3287 = vpop.f32.mrf.mxu0
  %v3288 = vadd.f32 %v3079, %v3287
  %v3289 = vpop.f32.mrf.mxu0
  %v3290 = vadd.f32 %v3081, %v3289
  %3291 = vmatprep.mubr.f32.mxu0 0.0
  %3292 = vmatmul.mubr.f32.gmra.mxu0 %v2732
  %v3293 = vpop.f32.mrf.mxu0
  %v3294 = vadd.f32 %v3085, %v3293
  %v3295 = vpop.f32.mrf.mxu0
  %v3296 = vadd.f32 %v3087, %v3295
  %3297 = vmatprep.mubr.f32.mxu0 0.0
  %3298 = vmatmul.mubr.f32.gmra.mxu0 %v2735
  %v3299 = vpop.f32.mrf.mxu0
  %v3300 = vadd.f32 %v3091, %v3299
  %v3301 = vpop.f32.mrf.mxu0
  %v3302 = vadd.f32 %v3093, %v3301
  %3303 = vmatprep.mubr.f32.mxu0 0.0
  %3304 = vmatmul.mubr.f32.gmra.mxu0 %v2738
  %v3305 = vpop.f32.mrf.mxu0
  %v3306 = vadd.f32 %v3097, %v3305
  %v3307 = vpop.f32.mrf.mxu0
  %v3308 = vadd.f32 %v3099, %v3307
  %3309 = vmatprep.mubr.f32.mxu0 0.0
  %3310 = vmatmul.mubr.f32.gmra.mxu0 %v2741
  %v3311 = vpop.f32.mrf.mxu0
  %v3312 = vadd.f32 %v3103, %v3311
  %v3313 = vpop.f32.mrf.mxu0
  %v3314 = vadd.f32 %v3105, %v3313
  %3315 = vmatprep.mubr.f32.mxu0 0.0
  %3316 = vmatmul.mubr.f32.gmra.mxu0 %v2744
  %v3317 = vpop.f32.mrf.mxu0
  %v3318 = vadd.f32 %v3109, %v3317
  %v3319 = vpop.f32.mrf.mxu0
  %v3320 = vadd.f32 %v3111, %v3319
  %3321 = vmatprep.mubr.f32.mxu0 0.0
  %3322 = vmatmul.mubr.f32.gmra.mxu0 %v2747
  %v3323 = vpop.f32.mrf.mxu0
  %v3324 = vadd.f32 %v3115, %v3323
  %v3325 = vpop.f32.mrf.mxu0
  %v3326 = vadd.f32 %v3117, %v3325
  %3327 = vmatprep.mubr.f32.mxu0 0.0
  %3328 = vmatmul.mubr.f32.gmra.mxu0 %v2750
  %v3329 = vpop.f32.mrf.mxu0
  %v3330 = vadd.f32 %v3121, %v3329
  %v3331 = vpop.f32.mrf.mxu0
  %v3332 = vadd.f32 %v3123, %v3331
  %3333 = vmatprep.mubr.f32.mxu0 0.0
  %3334 = vmatmul.mubr.f32.gmra.mxu0 %v2753
  %v3335 = vpop.f32.mrf.mxu0
  %v3336 = vadd.f32 %v3127, %v3335
  %v3337 = vpop.f32.mrf.mxu0
  %v3338 = vadd.f32 %v3129, %v3337
  %3339 = vmatprep.mubr.f32.mxu0 0.0
  %3340 = vmatmul.mubr.f32.gmra.mxu0 %v2756
  %v3341 = vpop.f32.mrf.mxu0
  %v3342 = vadd.f32 %v3133, %v3341
  %v3343 = vpop.f32.mrf.mxu0
  %v3344 = vadd.f32 %v3135, %v3343
  %3345 = vmatprep.mubr.f32.mxu0 0.0
  %3346 = vmatmul.mubr.f32.gmra.mxu0 %v2759
  %v3347 = vpop.f32.mrf.mxu0
  %v3348 = vadd.f32 %v3139, %v3347
  %v3349 = vpop.f32.mrf.mxu0
  %v3350 = vadd.f32 %v3141, %v3349
  %3351 = vmatprep.mubr.f32.mxu0 0.0
  %3352 = vmatmul.mubr.f32.gmra.mxu0 %v2762
  %v3353 = vpop.f32.mrf.mxu0
  %v3354 = vadd.f32 %v3145, %v3353
  %v3355 = vpop.f32.mrf.mxu0
  %v3356 = vadd.f32 %v3147, %v3355
  %3357 = vmatprep.mubr.f32.mxu0 0.0
  %3358 = vmatmul.mubr.f32.gmra.mxu0 %v2765
  %v3359 = vpop.f32.mrf.mxu0
  %v3360 = vadd.f32 %v3151, %v3359
  %v3361 = vpop.f32.mrf.mxu0
  %v3362 = vadd.f32 %v3153, %v3361
  %3363 = vmatprep.mubr.f32.mxu0 0.0
  %3364 = vmatmul.mubr.f32.gmra.mxu0 %v2768
  %v3365 = vpop.f32.mrf.mxu0
  %v3366 = vadd.f32 %v3157, %v3365
  %v3367 = vpop.f32.mrf.mxu0
  %v3368 = vadd.f32 %v3159, %v3367
  %3369 = vmatprep.mubr.f32.mxu0 0.0
  %3370 = vmatmul.mubr.f32.gmra.mxu0 %v2771
  %v3371 = vpop.f32.mrf.mxu0
  %v3372 = vadd.f32 %v3163, %v3371
  %v3373 = vpop.f32.mrf.mxu0
  %v3374 = vadd.f32 %v3165, %v3373
  %3375 = vmatprep.mubr.f32.mxu0 0.0
  %3376 = vmatmul.mubr.f32.gmra.mxu0 %v2774
  %v3377 = vpop.f32.mrf.mxu0
  %v3378 = vadd.f32 %v3169, %v3377
  %v3379 = vpop.f32.mrf.mxu0
  %v3380 = vadd.f32 %v3171, %v3379
  %3381 = vmatprep.mubr.f32.mxu0 0.0
  %3382 = vmatmul.mubr.f32.gmra.mxu0 %v2777
  %v3383 = vpop.f32.mrf.mxu0
  %v3384 = vadd.f32 %v3175, %v3383
  %v3385 = vpop.f32.mrf.mxu0
  %v3386 = vadd.f32 %v3177, %v3385
  %3387 = vmatprep.mubr.f32.mxu0 0.0
  %3388 = vmatmul.mubr.f32.gmra.mxu0 %v2780
  %v3389 = vpop.f32.mrf.mxu0
  %v3390 = vadd.f32 %v3181, %v3389
  %v3391 = vpop.f32.mrf.mxu0
  %v3392 = vadd.f32 %v3183, %v3391
  %3393 = vmatprep.mubr.f32.mxu0 0.0
  %3394 = vmatmul.mubr.f32.gmra.mxu0 %v2783
  %v3395 = vpop.f32.mrf.mxu0
  %v3396 = vadd.f32 %v3187, %v3395
  %v3397 = vpop.f32.mrf.mxu0
  %v3398 = vadd.f32 %v3189, %v3397
  %3399 = vmatprep.mubr.f32.mxu0 0.0
  %3400 = vmatmul.mubr.f32.gmra.mxu0 %v2786
  %v3401 = vpop.f32.mrf.mxu0
  %v3402 = vadd.f32 %v3193, %v3401
  %v3403 = vpop.f32.mrf.mxu0
  %v3404 = vadd.f32 %v3195, %v3403
  %3405 = vmatprep.mubr.f32.mxu0 0.0
  %3406 = vmatmul.mubr.f32.gmra.mxu0 %v2789
  %v3407 = vpop.f32.mrf.mxu0
  %v3408 = vadd.f32 %v3199, %v3407
  %v3409 = vpop.f32.mrf.mxu0
  %v3410 = vadd.f32 %v3201, %v3409
  %3411 = vmatprep.mubr.f32.mxu0 0.0
  %3412 = vmatmul.mubr.f32.gmra.mxu0 %v2792
  %v3413 = vpop.f32.mrf.mxu0
  %v3414 = vadd.f32 %v3205, %v3413
  %v3415 = vpop.f32.mrf.mxu0
  %v3416 = vadd.f32 %v3207, %v3415
  %3417 = vmatprep.mubr.f32.mxu0 0.0
  %3418 = vmatmul.mubr.f32.gmra.mxu0 %v2795
  %v3419 = vpop.f32.mrf.mxu0
  %v3420 = vadd.f32 %v3211, %v3419
  %v3421 = vpop.f32.mrf.mxu0
  %v3422 = vadd.f32 %v3213, %v3421
  %3423 = vdwg.mxu0
  %v3424 = vsel %vm161, %v3284, 0.0
  %v3425 = vadd.f32 %v3282, %v3424
  %3426 = vadd.xlane.f32.xlu0 %v3425
  %v3427 = vpop.xlane.xlu0 %3426
  %v3428 = vsel %vm161, %v3290, 0.0
  %v3429 = vadd.f32 %v3288, %v3428
  %3430 = vadd.xlane.f32.xlu0 %v3429
  %v3431 = vpop.xlane.xlu0 %3430
  %v3432 = vsel %vm161, %v3296, 0.0
  %v3433 = vadd.f32 %v3294, %v3432
  %3434 = vadd.xlane.f32.xlu0 %v3433
  %v3435 = vpop.xlane.xlu0 %3434
  %v3436 = vsel %vm161, %v3302, 0.0
  %v3437 = vadd.f32 %v3300, %v3436
  %3438 = vadd.xlane.f32.xlu0 %v3437
  %v3439 = vpop.xlane.xlu0 %3438
  %v3440 = vsel %vm161, %v3308, 0.0
  %v3441 = vadd.f32 %v3306, %v3440
  %3442 = vadd.xlane.f32.xlu0 %v3441
  %v3443 = vpop.xlane.xlu0 %3442
  %v3444 = vsel %vm161, %v3314, 0.0
  %v3445 = vadd.f32 %v3312, %v3444
  %3446 = vadd.xlane.f32.xlu0 %v3445
  %v3447 = vpop.xlane.xlu0 %3446
  %v3448 = vsel %vm161, %v3320, 0.0
  %v3449 = vadd.f32 %v3318, %v3448
  %3450 = vadd.xlane.f32.xlu0 %v3449
  %v3451 = vpop.xlane.xlu0 %3450
  %v3452 = vsel %vm161, %v3326, 0.0
  %v3453 = vadd.f32 %v3324, %v3452
  %3454 = vadd.xlane.f32.xlu0 %v3453
  %v3455 = vpop.xlane.xlu0 %3454
  %v3456 = vsel %vm161, %v3332, 0.0
  %v3457 = vadd.f32 %v3330, %v3456
  %3458 = vadd.xlane.f32.xlu0 %v3457
  %v3459 = vpop.xlane.xlu0 %3458
  %v3460 = vsel %vm161, %v3338, 0.0
  %v3461 = vadd.f32 %v3336, %v3460
  %3462 = vadd.xlane.f32.xlu0 %v3461
  %v3463 = vpop.xlane.xlu0 %3462
  %v3464 = vsel %vm161, %v3344, 0.0
  %v3465 = vadd.f32 %v3342, %v3464
  %3466 = vadd.xlane.f32.xlu0 %v3465
  %v3467 = vpop.xlane.xlu0 %3466
  %v3468 = vsel %vm161, %v3350, 0.0
  %v3469 = vadd.f32 %v3348, %v3468
  %3470 = vadd.xlane.f32.xlu0 %v3469
  %v3471 = vpop.xlane.xlu0 %3470
  %v3472 = vsel %vm161, %v3356, 0.0
  %v3473 = vadd.f32 %v3354, %v3472
  %3474 = vadd.xlane.f32.xlu0 %v3473
  %v3475 = vpop.xlane.xlu0 %3474
  %v3476 = vsel %vm161, %v3362, 0.0
  %v3477 = vadd.f32 %v3360, %v3476
  %3478 = vadd.xlane.f32.xlu0 %v3477
  %v3479 = vpop.xlane.xlu0 %3478
  %v3480 = vsel %vm161, %v3368, 0.0
  %v3481 = vadd.f32 %v3366, %v3480
  %3482 = vadd.xlane.f32.xlu0 %v3481
  %v3483 = vpop.xlane.xlu0 %3482
  %v3484 = vsel %vm161, %v3374, 0.0
  %v3485 = vadd.f32 %v3372, %v3484
  %3486 = vadd.xlane.f32.xlu0 %v3485
  %v3487 = vpop.xlane.xlu0 %3486
  %v3488 = vsel %vm161, %v3380, 0.0
  %v3489 = vadd.f32 %v3378, %v3488
  %3490 = vadd.xlane.f32.xlu0 %v3489
  %v3491 = vpop.xlane.xlu0 %3490
  %v3492 = vsel %vm161, %v3386, 0.0
  %v3493 = vadd.f32 %v3384, %v3492
  %3494 = vadd.xlane.f32.xlu0 %v3493
  %v3495 = vpop.xlane.xlu0 %3494
  %v3496 = vsel %vm161, %v3392, 0.0
  %v3497 = vadd.f32 %v3390, %v3496
  %3498 = vadd.xlane.f32.xlu0 %v3497
  %v3499 = vpop.xlane.xlu0 %3498
  %v3500 = vsel %vm161, %v3398, 0.0
  %v3501 = vadd.f32 %v3396, %v3500
  %3502 = vadd.xlane.f32.xlu0 %v3501
  %v3503 = vpop.xlane.xlu0 %3502
  %v3504 = vsel %vm161, %v3404, 0.0
  %v3505 = vadd.f32 %v3402, %v3504
  %3506 = vadd.xlane.f32.xlu0 %v3505
  %v3507 = vpop.xlane.xlu0 %3506
  %v3508 = vsel %vm161, %v3410, 0.0
  %v3509 = vadd.f32 %v3408, %v3508
  %3510 = vadd.xlane.f32.xlu0 %v3509
  %v3511 = vpop.xlane.xlu0 %3510
  %v3512 = vsel %vm161, %v3416, 0.0
  %v3513 = vadd.f32 %v3414, %v3512
  %3514 = vadd.xlane.f32.xlu0 %v3513
  %v3515 = vpop.xlane.xlu0 %3514
  %v3516 = vsel %vm161, %v3422, 0.0
  %v3517 = vadd.f32 %v3420, %v3516
  %3518 = vadd.xlane.f32.xlu0 %v3517
  %v3519 = vpop.xlane.xlu0 %3518
  %v3520 = vmul.f32 %v3282, %v3282
  %v3521 = vmul.f32 %v3284, %v3284
  %v3522 = vmul.f32 %v3288, %v3288
  %v3523 = vmul.f32 %v3290, %v3290
  %v3524 = vmul.f32 %v3294, %v3294
  %v3525 = vmul.f32 %v3296, %v3296
  %v3526 = vmul.f32 %v3300, %v3300
  %v3527 = vmul.f32 %v3302, %v3302
  %v3528 = vmul.f32 %v3306, %v3306
  %v3529 = vmul.f32 %v3308, %v3308
  %v3530 = vmul.f32 %v3312, %v3312
  %v3531 = vmul.f32 %v3314, %v3314
  %v3532 = vmul.f32 %v3318, %v3318
  %v3533 = vmul.f32 %v3320, %v3320
  %v3534 = vmul.f32 %v3324, %v3324
  %v3535 = vmul.f32 %v3326, %v3326
  %v3536 = vmul.f32 %v3330, %v3330
  %v3537 = vmul.f32 %v3332, %v3332
  %v3538 = vmul.f32 %v3336, %v3336
  %v3539 = vmul.f32 %v3338, %v3338
  %v3540 = vmul.f32 %v3342, %v3342
  %v3541 = vmul.f32 %v3344, %v3344
  %v3542 = vmul.f32 %v3348, %v3348
  %v3543 = vmul.f32 %v3350, %v3350
  %v3544 = vmul.f32 %v3354, %v3354
  %v3545 = vmul.f32 %v3356, %v3356
  %v3546 = vmul.f32 %v3360, %v3360
  %v3547 = vmul.f32 %v3362, %v3362
  %v3548 = vmul.f32 %v3366, %v3366
  %v3549 = vmul.f32 %v3368, %v3368
  %v3550 = vmul.f32 %v3372, %v3372
  %v3551 = vmul.f32 %v3374, %v3374
  %v3552 = vmul.f32 %v3378, %v3378
  %v3553 = vmul.f32 %v3380, %v3380
  %v3554 = vmul.f32 %v3384, %v3384
  %v3555 = vmul.f32 %v3386, %v3386
  %v3556 = vmul.f32 %v3390, %v3390
  %v3557 = vmul.f32 %v3392, %v3392
  %v3558 = vmul.f32 %v3396, %v3396
  %v3559 = vmul.f32 %v3398, %v3398
  %v3560 = vmul.f32 %v3402, %v3402
  %v3561 = vmul.f32 %v3404, %v3404
  %v3562 = vmul.f32 %v3408, %v3408
  %v3563 = vmul.f32 %v3410, %v3410
  %v3564 = vmul.f32 %v3414, %v3414
  %v3565 = vmul.f32 %v3416, %v3416
  %v3566 = vmul.f32 %v3420, %v3420
  %v3567 = vmul.f32 %v3422, %v3422
  %v3568 = vsel %vm161, %v3521, 0.0
  %v3569 = vadd.f32 %v3520, %v3568
  %3570 = vadd.xlane.f32.xlu0 %v3569
  %v3571 = vpop.xlane.xlu0 %3570
  %v3572 = vsel %vm161, %v3523, 0.0
  %v3573 = vadd.f32 %v3522, %v3572
  %3574 = vadd.xlane.f32.xlu0 %v3573
  %v3575 = vpop.xlane.xlu0 %3574
  %v3576 = vsel %vm161, %v3525, 0.0
  %v3577 = vadd.f32 %v3524, %v3576
  %3578 = vadd.xlane.f32.xlu0 %v3577
  %v3579 = vpop.xlane.xlu0 %3578
  %v3580 = vsel %vm161, %v3527, 0.0
  %v3581 = vadd.f32 %v3526, %v3580
  %3582 = vadd.xlane.f32.xlu0 %v3581
  %v3583 = vpop.xlane.xlu0 %3582
  %v3584 = vsel %vm161, %v3529, 0.0
  %v3585 = vadd.f32 %v3528, %v3584
  %3586 = vadd.xlane.f32.xlu0 %v3585
  %v3587 = vpop.xlane.xlu0 %3586
  %v3588 = vsel %vm161, %v3531, 0.0
  %v3589 = vadd.f32 %v3530, %v3588
  %3590 = vadd.xlane.f32.xlu0 %v3589
  %v3591 = vpop.xlane.xlu0 %3590
  %v3592 = vsel %vm161, %v3533, 0.0
  %v3593 = vadd.f32 %v3532, %v3592
  %3594 = vadd.xlane.f32.xlu0 %v3593
  %v3595 = vpop.xlane.xlu0 %3594
  %v3596 = vsel %vm161, %v3535, 0.0
  %v3597 = vadd.f32 %v3534, %v3596
  %3598 = vadd.xlane.f32.xlu0 %v3597
  %v3599 = vpop.xlane.xlu0 %3598
  %v3600 = vsel %vm161, %v3537, 0.0
  %v3601 = vadd.f32 %v3536, %v3600
  %3602 = vadd.xlane.f32.xlu0 %v3601
  %v3603 = vpop.xlane.xlu0 %3602
  %v3604 = vsel %vm161, %v3539, 0.0
  %v3605 = vadd.f32 %v3538, %v3604
  %3606 = vadd.xlane.f32.xlu0 %v3605
  %v3607 = vpop.xlane.xlu0 %3606
  %v3608 = vsel %vm161, %v3541, 0.0
  %v3609 = vadd.f32 %v3540, %v3608
  %3610 = vadd.xlane.f32.xlu0 %v3609
  %v3611 = vpop.xlane.xlu0 %3610
  %v3612 = vsel %vm161, %v3543, 0.0
  %v3613 = vadd.f32 %v3542, %v3612
  %3614 = vadd.xlane.f32.xlu0 %v3613
  %v3615 = vpop.xlane.xlu0 %3614
  %v3616 = vsel %vm161, %v3545, 0.0
  %v3617 = vadd.f32 %v3544, %v3616
  %3618 = vadd.xlane.f32.xlu0 %v3617
  %v3619 = vpop.xlane.xlu0 %3618
  %v3620 = vsel %vm161, %v3547, 0.0
  %v3621 = vadd.f32 %v3546, %v3620
  %3622 = vadd.xlane.f32.xlu0 %v3621
  %v3623 = vpop.xlane.xlu0 %3622
  %v3624 = vsel %vm161, %v3549, 0.0
  %v3625 = vadd.f32 %v3548, %v3624
  %3626 = vadd.xlane.f32.xlu0 %v3625
  %v3627 = vpop.xlane.xlu0 %3626
  %v3628 = vsel %vm161, %v3551, 0.0
  %v3629 = vadd.f32 %v3550, %v3628
  %3630 = vadd.xlane.f32.xlu0 %v3629
  %v3631 = vpop.xlane.xlu0 %3630
  %v3632 = vsel %vm161, %v3553, 0.0
  %v3633 = vadd.f32 %v3552, %v3632
  %3634 = vadd.xlane.f32.xlu0 %v3633
  %v3635 = vpop.xlane.xlu0 %3634
  %v3636 = vsel %vm161, %v3555, 0.0
  %v3637 = vadd.f32 %v3554, %v3636
  %3638 = vadd.xlane.f32.xlu0 %v3637
  %v3639 = vpop.xlane.xlu0 %3638
  %v3640 = vsel %vm161, %v3557, 0.0
  %v3641 = vadd.f32 %v3556, %v3640
  %3642 = vadd.xlane.f32.xlu0 %v3641
  %v3643 = vpop.xlane.xlu0 %3642
  %v3644 = vsel %vm161, %v3559, 0.0
  %v3645 = vadd.f32 %v3558, %v3644
  %3646 = vadd.xlane.f32.xlu0 %v3645
  %v3647 = vpop.xlane.xlu0 %3646
  %v3648 = vsel %vm161, %v3561, 0.0
  %v3649 = vadd.f32 %v3560, %v3648
  %3650 = vadd.xlane.f32.xlu0 %v3649
  %v3651 = vpop.xlane.xlu0 %3650
  %v3652 = vsel %vm161, %v3563, 0.0
  %v3653 = vadd.f32 %v3562, %v3652
  %3654 = vadd.xlane.f32.xlu0 %v3653
  %v3655 = vpop.xlane.xlu0 %3654
  %v3656 = vsel %vm161, %v3565, 0.0
  %v3657 = vadd.f32 %v3564, %v3656
  %3658 = vadd.xlane.f32.xlu0 %v3657
  %v3659 = vpop.xlane.xlu0 %3658
  %v3660 = vsel %vm161, %v3567, 0.0
  %v3661 = vadd.f32 %v3566, %v3660
  %3662 = vadd.xlane.f32.xlu0 %v3661
  %v3663 = vpop.xlane.xlu0 %3662
  %v3664 = vmul.f32 %v3427, 0.0051020407
  %v3665 = vmul.f32 %v3431, 0.0051020407
  %v3666 = vmul.f32 %v3435, 0.0051020407
  %v3667 = vmul.f32 %v3439, 0.0051020407
  %v3668 = vmul.f32 %v3443, 0.0051020407
  %v3669 = vmul.f32 %v3447, 0.0051020407
  %v3670 = vmul.f32 %v3451, 0.0051020407
  %v3671 = vmul.f32 %v3455, 0.0051020407
  %v3672 = vmul.f32 %v3459, 0.0051020407
  %v3673 = vmul.f32 %v3463, 0.0051020407
  %v3674 = vmul.f32 %v3467, 0.0051020407
  %v3675 = vmul.f32 %v3471, 0.0051020407
  %v3676 = vmul.f32 %v3475, 0.0051020407
  %v3677 = vmul.f32 %v3479, 0.0051020407
  %v3678 = vmul.f32 %v3483, 0.0051020407
  %v3679 = vmul.f32 %v3487, 0.0051020407
  %v3680 = vmul.f32 %v3491, 0.0051020407
  %v3681 = vmul.f32 %v3495, 0.0051020407
  %v3682 = vmul.f32 %v3499, 0.0051020407
  %v3683 = vmul.f32 %v3503, 0.0051020407
  %v3684 = vmul.f32 %v3507, 0.0051020407
  %v3685 = vmul.f32 %v3511, 0.0051020407
  %v3686 = vmul.f32 %v3515, 0.0051020407
  %v3687 = vmul.f32 %v3519, 0.0051020407
  %v3688 = vmul.f32 %v3571, 0.0051020407
  %v3689 = vmul.f32 %v3575, 0.0051020407
  %v3690 = vmul.f32 %v3579, 0.0051020407
  %v3691 = vmul.f32 %v3583, 0.0051020407
  %v3692 = vmul.f32 %v3587, 0.0051020407
  %v3693 = vmul.f32 %v3591, 0.0051020407
  %v3694 = vmul.f32 %v3595, 0.0051020407
  %v3695 = vmul.f32 %v3599, 0.0051020407
  %v3696 = vmul.f32 %v3603, 0.0051020407
  %v3697 = vmul.f32 %v3607, 0.0051020407
  %v3698 = vmul.f32 %v3611, 0.0051020407
  %v3699 = vmul.f32 %v3615, 0.0051020407
  %v3700 = vmul.f32 %v3619, 0.0051020407
  %v3701 = vmul.f32 %v3623, 0.0051020407
  %v3702 = vmul.f32 %v3627, 0.0051020407
  %v3703 = vmul.f32 %v3631, 0.0051020407
  %v3704 = vmul.f32 %v3635, 0.0051020407
  %v3705 = vmul.f32 %v3639, 0.0051020407
  %v3706 = vmul.f32 %v3643, 0.0051020407
  %v3707 = vmul.f32 %v3647, 0.0051020407
  %v3708 = vmul.f32 %v3651, 0.0051020407
  %v3709 = vmul.f32 %v3655, 0.0051020407
  %v3710 = vmul.f32 %v3659, 0.0051020407
  %v3711 = vmul.f32 %v3663, 0.0051020407
  %v3712 = vmul.f32 %v3664, %v3664
  %v3713 = vmul.f32 %v3665, %v3665
  %v3714 = vmul.f32 %v3666, %v3666
  %v3715 = vmul.f32 %v3667, %v3667
  %v3716 = vmul.f32 %v3668, %v3668
  %v3717 = vmul.f32 %v3669, %v3669
  %v3718 = vmul.f32 %v3670, %v3670
  %v3719 = vmul.f32 %v3671, %v3671
  %v3720 = vmul.f32 %v3672, %v3672
  %v3721 = vmul.f32 %v3673, %v3673
  %v3722 = vmul.f32 %v3674, %v3674
  %v3723 = vmul.f32 %v3675, %v3675
  %v3724 = vmul.f32 %v3676, %v3676
  %v3725 = vmul.f32 %v3677, %v3677
  %v3726 = vmul.f32 %v3678, %v3678
  %v3727 = vmul.f32 %v3679, %v3679
  %v3728 = vmul.f32 %v3680, %v3680
  %v3729 = vmul.f32 %v3681, %v3681
  %v3730 = vmul.f32 %v3682, %v3682
  %v3731 = vmul.f32 %v3683, %v3683
  %v3732 = vmul.f32 %v3684, %v3684
  %v3733 = vmul.f32 %v3685, %v3685
  %v3734 = vmul.f32 %v3686, %v3686
  %v3735 = vmul.f32 %v3687, %v3687
  %v3736 = vsub.f32 %v3688, %v3712
  %v3737 = vsub.f32 %v3689, %v3713
  %v3738 = vsub.f32 %v3690, %v3714
  %v3739 = vsub.f32 %v3691, %v3715
  %v3740 = vsub.f32 %v3692, %v3716
  %v3741 = vsub.f32 %v3693, %v3717
  %v3742 = vsub.f32 %v3694, %v3718
  %v3743 = vsub.f32 %v3695, %v3719
  %v3744 = vsub.f32 %v3696, %v3720
  %v3745 = vsub.f32 %v3697, %v3721
  %v3746 = vsub.f32 %v3698, %v3722
  %v3747 = vsub.f32 %v3699, %v3723
  %v3748 = vsub.f32 %v3700, %v3724
  %v3749 = vsub.f32 %v3701, %v3725
  %v3750 = vsub.f32 %v3702, %v3726
  %v3751 = vsub.f32 %v3703, %v3727
  %v3752 = vsub.f32 %v3704, %v3728
  %v3753 = vsub.f32 %v3705, %v3729
  %v3754 = vsub.f32 %v3706, %v3730
  %v3755 = vsub.f32 %v3707, %v3731
  %v3756 = vsub.f32 %v3708, %v3732
  %v3757 = vsub.f32 %v3709, %v3733
  %v3758 = vsub.f32 %v3710, %v3734
  %v3759 = vsub.f32 %v3711, %v3735
  %v3760 = vld [vmem:[%s4] sm:$0xff]
  %v3761 = vld [vmem:[%s4 + $0x8] sm:$0xff]
  %v3762 = vld [vmem:[%s4 + $0x10] sm:$0xff]
  %v3763 = vld [vmem:[%s4 + $0x18] sm:$0xff]
  %v3764 = vld [vmem:[%s4 + $0x20] sm:$0xff]
  %v3765 = vld [vmem:[%s4 + $0x28] sm:$0xff]
  %v3766 = vld [vmem:[%s4 + $0x30] sm:$0xff]
  %v3767 = vld [vmem:[%s4 + $0x38] sm:$0xff]
  %v3768 = vld [vmem:[%s4 + $0x40] sm:$0xff]
  %v3769 = vld [vmem:[%s4 + $0x48] sm:$0xff]
  %v3770 = vld [vmem:[%s4 + $0x50] sm:$0xff]
  %v3771 = vld [vmem:[%s4 + $0x58] sm:$0xff]
  %v3772 = vld [vmem:[%s4 + $0x60] sm:$0xff]
  %v3773 = vld [vmem:[%s4 + $0x68] sm:$0xff]
  %v3774 = vld [vmem:[%s4 + $0x70] sm:$0xff]
  %v3775 = vld [vmem:[%s4 + $0x78] sm:$0xff]
  %v3776 = vld [vmem:[%s4 + $0x80] sm:$0xff]
  %v3777 = vld [vmem:[%s4 + $0x88] sm:$0xff]
  %v3778 = vld [vmem:[%s4 + $0x90] sm:$0xff]
  %v3779 = vld [vmem:[%s4 + $0x98] sm:$0xff]
  %v3780 = vld [vmem:[%s4 + $0xa0] sm:$0xff]
  %v3781 = vld [vmem:[%s4 + $0xa8] sm:$0xff]
  %v3782 = vld [vmem:[%s4 + $0xb0] sm:$0xff]
  %v3783 = vld [vmem:[%s4 + $0xb8] sm:$0xff]
  %v3784 = vadd.f32 %v3736, 1e-05
  %v3785 = vadd.f32 %v3737, 1e-05
  %v3786 = vadd.f32 %v3738, 1e-05
  %v3787 = vadd.f32 %v3739, 1e-05
  %v3788 = vadd.f32 %v3740, 1e-05
  %v3789 = vadd.f32 %v3741, 1e-05
  %v3790 = vadd.f32 %v3742, 1e-05
  %v3791 = vadd.f32 %v3743, 1e-05
  %v3792 = vadd.f32 %v3744, 1e-05
  %v3793 = vadd.f32 %v3745, 1e-05
  %v3794 = vadd.f32 %v3746, 1e-05
  %v3795 = vadd.f32 %v3747, 1e-05
  %v3796 = vadd.f32 %v3748, 1e-05
  %v3797 = vadd.f32 %v3749, 1e-05
  %v3798 = vadd.f32 %v3750, 1e-05
  %v3799 = vadd.f32 %v3751, 1e-05
  %v3800 = vadd.f32 %v3752, 1e-05
  %v3801 = vadd.f32 %v3753, 1e-05
  %v3802 = vadd.f32 %v3754, 1e-05
  %v3803 = vadd.f32 %v3755, 1e-05
  %v3804 = vadd.f32 %v3756, 1e-05
  %v3805 = vadd.f32 %v3757, 1e-05
  %v3806 = vadd.f32 %v3758, 1e-05
  %v3807 = vadd.f32 %v3759, 1e-05
  %v3808 = vrsqrt.pop %v3784
  %v3809 = vrsqrt.pop %v3785
  %v3810 = vrsqrt.pop %v3786
  %v3811 = vrsqrt.pop %v3787
  %v3812 = vrsqrt.pop %v3788
  %v3813 = vrsqrt.pop %v3789
  %v3814 = vrsqrt.pop %v3790
  %v3815 = vrsqrt.pop %v3791
  %v3816 = vrsqrt.pop %v3792
  %v3817 = vrsqrt.pop %v3793
  %v3818 = vrsqrt.pop %v3794
  %v3819 = vrsqrt.pop %v3795
  %v3820 = vrsqrt.pop %v3796
  %v3821 = vrsqrt.pop %v3797
  %v3822 = vrsqrt.pop %v3798
  %v3823 = vrsqrt.pop %v3799
  %v3824 = vrsqrt.pop %v3800
  %v3825 = vrsqrt.pop %v3801
  %v3826 = vrsqrt.pop %v3802
  %v3827 = vrsqrt.pop %v3803
  %v3828 = vrsqrt.pop %v3804
  %v3829 = vrsqrt.pop %v3805
  %v3830 = vrsqrt.pop %v3806
  %v3831 = vrsqrt.pop %v3807
  %v3832 = vmul.f32 %v3760, %v3808
  %v3833 = vmul.f32 %v3761, %v3809
  %v3834 = vmul.f32 %v3762, %v3810
  %v3835 = vmul.f32 %v3763, %v3811
  %v3836 = vmul.f32 %v3764, %v3812
  %v3837 = vmul.f32 %v3765, %v3813
  %v3838 = vmul.f32 %v3766, %v3814
  %v3839 = vmul.f32 %v3767, %v3815
  %v3840 = vmul.f32 %v3768, %v3816
  %v3841 = vmul.f32 %v3769, %v3817
  %v3842 = vmul.f32 %v3770, %v3818
  %v3843 = vmul.f32 %v3771, %v3819
  %v3844 = vmul.f32 %v3772, %v3820
  %v3845 = vmul.f32 %v3773, %v3821
  %v3846 = vmul.f32 %v3774, %v3822
  %v3847 = vmul.f32 %v3775, %v3823
  %v3848 = vmul.f32 %v3776, %v3824
  %v3849 = vmul.f32 %v3777, %v3825
  %v3850 = vmul.f32 %v3778, %v3826
  %v3851 = vmul.f32 %v3779, %v3827
  %v3852 = vmul.f32 %v3780, %v3828
  %v3853 = vmul.f32 %v3781, %v3829
  %v3854 = vmul.f32 %v3782, %v3830
  %v3855 = vmul.f32 %v3783, %v3831
  %v3856 = vld [vmem:[%s5] sm:$0xff]
  %v3857 = vld [vmem:[%s5 + $0x8] sm:$0xff]
  %v3858 = vld [vmem:[%s5 + $0x10] sm:$0xff]
  %v3859 = vld [vmem:[%s5 + $0x18] sm:$0xff]
  %v3860 = vld [vmem:[%s5 + $0x20] sm:$0xff]
  %v3861 = vld [vmem:[%s5 + $0x28] sm:$0xff]
  %v3862 = vld [vmem:[%s5 + $0x30] sm:$0xff]
  %v3863 = vld [vmem:[%s5 + $0x38] sm:$0xff]
  %v3864 = vld [vmem:[%s5 + $0x40] sm:$0xff]
  %v3865 = vld [vmem:[%s5 + $0x48] sm:$0xff]
  %v3866 = vld [vmem:[%s5 + $0x50] sm:$0xff]
  %v3867 = vld [vmem:[%s5 + $0x58] sm:$0xff]
  %v3868 = vld [vmem:[%s5 + $0x60] sm:$0xff]
  %v3869 = vld [vmem:[%s5 + $0x68] sm:$0xff]
  %v3870 = vld [vmem:[%s5 + $0x70] sm:$0xff]
  %v3871 = vld [vmem:[%s5 + $0x78] sm:$0xff]
  %v3872 = vld [vmem:[%s5 + $0x80] sm:$0xff]
  %v3873 = vld [vmem:[%s5 + $0x88] sm:$0xff]
  %v3874 = vld [vmem:[%s5 + $0x90] sm:$0xff]
  %v3875 = vld [vmem:[%s5 + $0x98] sm:$0xff]
  %v3876 = vld [vmem:[%s5 + $0xa0] sm:$0xff]
  %v3877 = vld [vmem:[%s5 + $0xa8] sm:$0xff]
  %v3878 = vld [vmem:[%s5 + $0xb0] sm:$0xff]
  %v3879 = vld [vmem:[%s5 + $0xb8] sm:$0xff]
  %v3880 = vmul.f32 %v3664, %v3832
  %v3881 = vmul.f32 %v3665, %v3833
  %v3882 = vmul.f32 %v3666, %v3834
  %v3883 = vmul.f32 %v3667, %v3835
  %v3884 = vmul.f32 %v3668, %v3836
  %v3885 = vmul.f32 %v3669, %v3837
  %v3886 = vmul.f32 %v3670, %v3838
  %v3887 = vmul.f32 %v3671, %v3839
  %v3888 = vmul.f32 %v3672, %v3840
  %v3889 = vmul.f32 %v3673, %v3841
  %v3890 = vmul.f32 %v3674, %v3842
  %v3891 = vmul.f32 %v3675, %v3843
  %v3892 = vmul.f32 %v3676, %v3844
  %v3893 = vmul.f32 %v3677, %v3845
  %v3894 = vmul.f32 %v3678, %v3846
  %v3895 = vmul.f32 %v3679, %v3847
  %v3896 = vmul.f32 %v3680, %v3848
  %v3897 = vmul.f32 %v3681, %v3849
  %v3898 = vmul.f32 %v3682, %v3850
  %v3899 = vmul.f32 %v3683, %v3851
  %v3900 = vmul.f32 %v3684, %v3852
  %v3901 = vmul.f32 %v3685, %v3853
  %v3902 = vmul.f32 %v3686, %v3854
  %v3903 = vmul.f32 %v3687, %v3855
  %v3904 = vsub.f32 %v3856, %v3880
  %v3905 = vsub.f32 %v3857, %v3881
  %v3906 = vsub.f32 %v3858, %v3882
  %v3907 = vsub.f32 %v3859, %v3883
  %v3908 = vsub.f32 %v3860, %v3884
  %v3909 = vsub.f32 %v3861, %v3885
  %v3910 = vsub.f32 %v3862, %v3886
  %v3911 = vsub.f32 %v3863, %v3887
  %v3912 = vsub.f32 %v3864, %v3888
  %v3913 = vsub.f32 %v3865, %v3889
  %v3914 = vsub.f32 %v3866, %v3890
  %v3915 = vsub.f32 %v3867, %v3891
  %v3916 = vsub.f32 %v3868, %v3892
  %v3917 = vsub.f32 %v3869, %v3893
  %v3918 = vsub.f32 %v3870, %v3894
  %v3919 = vsub.f32 %v3871, %v3895
  %v3920 = vsub.f32 %v3872, %v3896
  %v3921 = vsub.f32 %v3873, %v3897
  %v3922 = vsub.f32 %v3874, %v3898
  %v3923 = vsub.f32 %v3875, %v3899
  %v3924 = vsub.f32 %v3876, %v3900
  %v3925 = vsub.f32 %v3877, %v3901
  %v3926 = vsub.f32 %v3878, %v3902
  %v3927 = vsub.f32 %v3879, %v3903
  %3929 = vset.pattern.permute.xlu0 0
  %3930 = vperm.xlu0 %3929, %v3832
  %v3931 = vpop.permute.xlu0 %3930
  %3934 = vset.pattern.permute.xlu0 0
  %3935 = vperm.xlu0 %3934, %v3833
  %v3936 = vpop.permute.xlu0 %3935
  %3939 = vset.pattern.permute.xlu0 0
  %3940 = vperm.xlu0 %3939, %v3834
  %v3941 = vpop.permute.xlu0 %3940
  %3944 = vset.pattern.permute.xlu0 0
  %3945 = vperm.xlu0 %3944, %v3835
  %v3946 = vpop.permute.xlu0 %3945
  %3949 = vset.pattern.permute.xlu0 0
  %3950 = vperm.xlu0 %3949, %v3836
  %v3951 = vpop.permute.xlu0 %3950
  %3954 = vset.pattern.permute.xlu0 0
  %3955 = vperm.xlu0 %3954, %v3837
  %v3956 = vpop.permute.xlu0 %3955
  %3959 = vset.pattern.permute.xlu0 0
  %3960 = vperm.xlu0 %3959, %v3838
  %v3961 = vpop.permute.xlu0 %3960
  %3964 = vset.pattern.permute.xlu0 0
  %3965 = vperm.xlu0 %3964, %v3839
  %v3966 = vpop.permute.xlu0 %3965
  %3969 = vset.pattern.permute.xlu0 0
  %3970 = vperm.xlu0 %3969, %v3840
  %v3971 = vpop.permute.xlu0 %3970
  %3974 = vset.pattern.permute.xlu0 0
  %3975 = vperm.xlu0 %3974, %v3841
  %v3976 = vpop.permute.xlu0 %3975
  %3979 = vset.pattern.permute.xlu0 0
  %3980 = vperm.xlu0 %3979, %v3842
  %v3981 = vpop.permute.xlu0 %3980
  %3984 = vset.pattern.permute.xlu0 0
  %3985 = vperm.xlu0 %3984, %v3843
  %v3986 = vpop.permute.xlu0 %3985
  %3989 = vset.pattern.permute.xlu0 0
  %3990 = vperm.xlu0 %3989, %v3844
  %v3991 = vpop.permute.xlu0 %3990
  %3994 = vset.pattern.permute.xlu0 0
  %3995 = vperm.xlu0 %3994, %v3845
  %v3996 = vpop.permute.xlu0 %3995
  %3999 = vset.pattern.permute.xlu0 0
  %4000 = vperm.xlu0 %3999, %v3846
  %v4001 = vpop.permute.xlu0 %4000
  %4004 = vset.pattern.permute.xlu0 0
  %4005 = vperm.xlu0 %4004, %v3847
  %v4006 = vpop.permute.xlu0 %4005
  %4009 = vset.pattern.permute.xlu0 0
  %4010 = vperm.xlu0 %4009, %v3848
  %v4011 = vpop.permute.xlu0 %4010
  %4014 = vset.pattern.permute.xlu0 0
  %4015 = vperm.xlu0 %4014, %v3849
  %v4016 = vpop.permute.xlu0 %4015
  %4019 = vset.pattern.permute.xlu0 0
  %4020 = vperm.xlu0 %4019, %v3850
  %v4021 = vpop.permute.xlu0 %4020
  %4024 = vset.pattern.permute.xlu0 0
  %4025 = vperm.xlu0 %4024, %v3851
  %v4026 = vpop.permute.xlu0 %4025
  %4029 = vset.pattern.permute.xlu0 0
  %4030 = vperm.xlu0 %4029, %v3852
  %v4031 = vpop.permute.xlu0 %4030
  %4034 = vset.pattern.permute.xlu0 0
  %4035 = vperm.xlu0 %4034, %v3853
  %v4036 = vpop.permute.xlu0 %4035
  %4039 = vset.pattern.permute.xlu0 0
  %4040 = vperm.xlu0 %4039, %v3854
  %v4041 = vpop.permute.xlu0 %4040
  %4044 = vset.pattern.permute.xlu0 0
  %4045 = vperm.xlu0 %4044, %v3855
  %v4046 = vpop.permute.xlu0 %4045
  %v4048 = vmul.f32 %v3282, %v3931
  %v4049 = vmul.f32 %v3284, %v3931
  %v4050 = vmul.f32 %v3288, %v3936
  %v4051 = vmul.f32 %v3290, %v3936
  %v4052 = vmul.f32 %v3294, %v3941
  %v4053 = vmul.f32 %v3296, %v3941
  %v4054 = vmul.f32 %v3300, %v3946
  %v4055 = vmul.f32 %v3302, %v3946
  %v4056 = vmul.f32 %v3306, %v3951
  %v4057 = vmul.f32 %v3308, %v3951
  %v4058 = vmul.f32 %v3312, %v3956
  %v4059 = vmul.f32 %v3314, %v3956
  %v4060 = vmul.f32 %v3318, %v3961
  %v4061 = vmul.f32 %v3320, %v3961
  %v4062 = vmul.f32 %v3324, %v3966
  %v4063 = vmul.f32 %v3326, %v3966
  %v4064 = vmul.f32 %v3330, %v3971
  %v4065 = vmul.f32 %v3332, %v3971
  %v4066 = vmul.f32 %v3336, %v3976
  %v4067 = vmul.f32 %v3338, %v3976
  %v4068 = vmul.f32 %v3342, %v3981
  %v4069 = vmul.f32 %v3344, %v3981
  %v4070 = vmul.f32 %v3348, %v3986
  %v4071 = vmul.f32 %v3350, %v3986
  %v4072 = vmul.f32 %v3354, %v3991
  %v4073 = vmul.f32 %v3356, %v3991
  %v4074 = vmul.f32 %v3360, %v3996
  %v4075 = vmul.f32 %v3362, %v3996
  %v4076 = vmul.f32 %v3366, %v4001
  %v4077 = vmul.f32 %v3368, %v4001
  %v4078 = vmul.f32 %v3372, %v4006
  %v4079 = vmul.f32 %v3374, %v4006
  %v4080 = vmul.f32 %v3378, %v4011
  %v4081 = vmul.f32 %v3380, %v4011
  %v4082 = vmul.f32 %v3384, %v4016
  %v4083 = vmul.f32 %v3386, %v4016
  %v4084 = vmul.f32 %v3390, %v4021
  %v4085 = vmul.f32 %v3392, %v4021
  %v4086 = vmul.f32 %v3396, %v4026
  %v4087 = vmul.f32 %v3398, %v4026
  %v4088 = vmul.f32 %v3402, %v4031
  %v4089 = vmul.f32 %v3404, %v4031
  %v4090 = vmul.f32 %v3408, %v4036
  %v4091 = vmul.f32 %v3410, %v4036
  %v4092 = vmul.f32 %v3414, %v4041
  %v4093 = vmul.f32 %v3416, %v4041
  %v4094 = vmul.f32 %v3420, %v4046
  %v4095 = vmul.f32 %v3422, %v4046
  %4097 = vset.pattern.permute.xlu0 0
  %4098 = vperm.xlu0 %4097, %v3904
  %v4099 = vpop.permute.xlu0 %4098
  %4102 = vset.pattern.permute.xlu0 0
  %4103 = vperm.xlu0 %4102, %v3905
  %v4104 = vpop.permute.xlu0 %4103
  %4107 = vset.pattern.permute.xlu0 0
  %4108 = vperm.xlu0 %4107, %v3906
  %v4109 = vpop.permute.xlu0 %4108
  %4112 = vset.pattern.permute.xlu0 0
  %4113 = vperm.xlu0 %4112, %v3907
  %v4114 = vpop.permute.xlu0 %4113
  %4117 = vset.pattern.permute.xlu0 0
  %4118 = vperm.xlu0 %4117, %v3908
  %v4119 = vpop.permute.xlu0 %4118
  %4122 = vset.pattern.permute.xlu0 0
  %4123 = vperm.xlu0 %4122, %v3909
  %v4124 = vpop.permute.xlu0 %4123
  %4127 = vset.pattern.permute.xlu0 0
  %4128 = vperm.xlu0 %4127, %v3910
  %v4129 = vpop.permute.xlu0 %4128
  %4132 = vset.pattern.permute.xlu0 0
  %4133 = vperm.xlu0 %4132, %v3911
  %v4134 = vpop.permute.xlu0 %4133
  %4137 = vset.pattern.permute.xlu0 0
  %4138 = vperm.xlu0 %4137, %v3912
  %v4139 = vpop.permute.xlu0 %4138
  %4142 = vset.pattern.permute.xlu0 0
  %4143 = vperm.xlu0 %4142, %v3913
  %v4144 = vpop.permute.xlu0 %4143
  %4147 = vset.pattern.permute.xlu0 0
  %4148 = vperm.xlu0 %4147, %v3914
  %v4149 = vpop.permute.xlu0 %4148
  %4152 = vset.pattern.permute.xlu0 0
  %4153 = vperm.xlu0 %4152, %v3915
  %v4154 = vpop.permute.xlu0 %4153
  %4157 = vset.pattern.permute.xlu0 0
  %4158 = vperm.xlu0 %4157, %v3916
  %v4159 = vpop.permute.xlu0 %4158
  %4162 = vset.pattern.permute.xlu0 0
  %4163 = vperm.xlu0 %4162, %v3917
  %v4164 = vpop.permute.xlu0 %4163
  %4167 = vset.pattern.permute.xlu0 0
  %4168 = vperm.xlu0 %4167, %v3918
  %v4169 = vpop.permute.xlu0 %4168
  %4172 = vset.pattern.permute.xlu0 0
  %4173 = vperm.xlu0 %4172, %v3919
  %v4174 = vpop.permute.xlu0 %4173
  %4177 = vset.pattern.permute.xlu0 0
  %4178 = vperm.xlu0 %4177, %v3920
  %v4179 = vpop.permute.xlu0 %4178
  %4182 = vset.pattern.permute.xlu0 0
  %4183 = vperm.xlu0 %4182, %v3921
  %v4184 = vpop.permute.xlu0 %4183
  %4187 = vset.pattern.permute.xlu0 0
  %4188 = vperm.xlu0 %4187, %v3922
  %v4189 = vpop.permute.xlu0 %4188
  %4192 = vset.pattern.permute.xlu0 0
  %4193 = vperm.xlu0 %4192, %v3923
  %v4194 = vpop.permute.xlu0 %4193
  %4197 = vset.pattern.permute.xlu0 0
  %4198 = vperm.xlu0 %4197, %v3924
  %v4199 = vpop.permute.xlu0 %4198
  %4202 = vset.pattern.permute.xlu0 0
  %4203 = vperm.xlu0 %4202, %v3925
  %v4204 = vpop.permute.xlu0 %4203
  %4207 = vset.pattern.permute.xlu0 0
  %4208 = vperm.xlu0 %4207, %v3926
  %v4209 = vpop.permute.xlu0 %4208
  %4212 = vset.pattern.permute.xlu0 0
  %4213 = vperm.xlu0 %4212, %v3927
  %v4214 = vpop.permute.xlu0 %4213
  %v4216 = vadd.f32 %v4048, %v4099
  %v4217 = vadd.f32 %v4049, %v4099
  %v4218 = vadd.f32 %v4050, %v4104
  %v4219 = vadd.f32 %v4051, %v4104
  %v4220 = vadd.f32 %v4052, %v4109
  %v4221 = vadd.f32 %v4053, %v4109
  %v4222 = vadd.f32 %v4054, %v4114
  %v4223 = vadd.f32 %v4055, %v4114
  %v4224 = vadd.f32 %v4056, %v4119
  %v4225 = vadd.f32 %v4057, %v4119
  %v4226 = vadd.f32 %v4058, %v4124
  %v4227 = vadd.f32 %v4059, %v4124
  %v4228 = vadd.f32 %v4060, %v4129
  %v4229 = vadd.f32 %v4061, %v4129
  %v4230 = vadd.f32 %v4062, %v4134
  %v4231 = vadd.f32 %v4063, %v4134
  %v4232 = vadd.f32 %v4064, %v4139
  %v4233 = vadd.f32 %v4065, %v4139
  %v4234 = vadd.f32 %v4066, %v4144
  %v4235 = vadd.f32 %v4067, %v4144
  %v4236 = vadd.f32 %v4068, %v4149
  %v4237 = vadd.f32 %v4069, %v4149
  %v4238 = vadd.f32 %v4070, %v4154
  %v4239 = vadd.f32 %v4071, %v4154
  %v4240 = vadd.f32 %v4072, %v4159
  %v4241 = vadd.f32 %v4073, %v4159
  %v4242 = vadd.f32 %v4074, %v4164
  %v4243 = vadd.f32 %v4075, %v4164
  %v4244 = vadd.f32 %v4076, %v4169
  %v4245 = vadd.f32 %v4077, %v4169
  %v4246 = vadd.f32 %v4078, %v4174
  %v4247 = vadd.f32 %v4079, %v4174
  %v4248 = vadd.f32 %v4080, %v4179
  %v4249 = vadd.f32 %v4081, %v4179
  %v4250 = vadd.f32 %v4082, %v4184
  %v4251 = vadd.f32 %v4083, %v4184
  %v4252 = vadd.f32 %v4084, %v4189
  %v4253 = vadd.f32 %v4085, %v4189
  %v4254 = vadd.f32 %v4086, %v4194
  %v4255 = vadd.f32 %v4087, %v4194
  %v4256 = vadd.f32 %v4088, %v4199
  %v4257 = vadd.f32 %v4089, %v4199
  %v4258 = vadd.f32 %v4090, %v4204
  %v4259 = vadd.f32 %v4091, %v4204
  %v4260 = vadd.f32 %v4092, %v4209
  %v4261 = vadd.f32 %v4093, %v4209
  %v4262 = vadd.f32 %v4094, %v4214
  %v4263 = vadd.f32 %v4095, %v4214
  %v4264 = vmax.f32 %v4216, 0.0
  %v4265 = vmax.f32 %v4217, 0.0
  %v4266 = vmax.f32 %v4218, 0.0
  %v4267 = vmax.f32 %v4219, 0.0
  %v4268 = vmax.f32 %v4220, 0.0
  %v4269 = vmax.f32 %v4221, 0.0
  %v4270 = vmax.f32 %v4222, 0.0
  %v4271 = vmax.f32 %v4223, 0.0
  %v4272 = vmax.f32 %v4224, 0.0
  %v4273 = vmax.f32 %v4225, 0.0
  %v4274 = vmax.f32 %v4226, 0.0
  %v4275 = vmax.f32 %v4227, 0.0
  %v4276 = vmax.f32 %v4228, 0.0
  %v4277 = vmax.f32 %v4229, 0.0
  %v4278 = vmax.f32 %v4230, 0.0
  %v4279 = vmax.f32 %v4231, 0.0
  %v4280 = vmax.f32 %v4232, 0.0
  %v4281 = vmax.f32 %v4233, 0.0
  %v4282 = vmax.f32 %v4234, 0.0
  %v4283 = vmax.f32 %v4235, 0.0
  %v4284 = vmax.f32 %v4236, 0.0
  %v4285 = vmax.f32 %v4237, 0.0
  %v4286 = vmax.f32 %v4238, 0.0
  %v4287 = vmax.f32 %v4239, 0.0
  %v4288 = vmax.f32 %v4240, 0.0
  %v4289 = vmax.f32 %v4241, 0.0
  %v4290 = vmax.f32 %v4242, 0.0
  %v4291 = vmax.f32 %v4243, 0.0
  %v4292 = vmax.f32 %v4244, 0.0
  %v4293 = vmax.f32 %v4245, 0.0
  %v4294 = vmax.f32 %v4246, 0.0
  %v4295 = vmax.f32 %v4247, 0.0
  %v4296 = vmax.f32 %v4248, 0.0
  %v4297 = vmax.f32 %v4249, 0.0
  %v4298 = vmax.f32 %v4250, 0.0
  %v4299 = vmax.f32 %v4251, 0.0
  %v4300 = vmax.f32 %v4252, 0.0
  %v4301 = vmax.f32 %v4253, 0.0
  %v4302 = vmax.f32 %v4254, 0.0
  %v4303 = vmax.f32 %v4255, 0.0
  %v4304 = vmax.f32 %v4256, 0.0
  %v4305 = vmax.f32 %v4257, 0.0
  %v4306 = vmax.f32 %v4258, 0.0
  %v4307 = vmax.f32 %v4259, 0.0
  %v4308 = vmax.f32 %v4260, 0.0
  %v4309 = vmax.f32 %v4261, 0.0
  %v4310 = vmax.f32 %v4262, 0.0
  %v4311 = vmax.f32 %v4263, 0.0
  %4312 = vst [vmem:[#allocation2] sm:$0xff] 0.0
  %4313 = vst [vmem:[#allocation2 + $0x8] sm:$0xff] 0.0
  %4314 = vst [vmem:[#allocation2 + $0x10] sm:$0xff] 0.0
  %4315 = vst [vmem:[#allocation2 + $0x18] sm:$0xff] 0.0
  %4316 = vst [vmem:[#allocation2 + $0x20] sm:$0xff] 0.0
  %4317 = vst [vmem:[#allocation2 + $0x28] sm:$0xff] 0.0
  %4318 = vst [vmem:[#allocation2 + $0x30] sm:$0xff] 0.0
  %4319 = vst [vmem:[#allocation2 + $0x38] sm:$0xff] 0.0
  %4320 = vst [vmem:[#allocation2 + $0x40] sm:$0xff] 0.0
  %4321 = vst [vmem:[#allocation2 + $0x48] sm:$0xff] 0.0
  %4322 = vst [vmem:[#allocation2 + $0x50] sm:$0xff] 0.0
  %4323 = vst [vmem:[#allocation2 + $0x58] sm:$0xff] 0.0
  %4324 = vst [vmem:[#allocation2 + $0x60] sm:$0xff] 0.0
  %4325 = vst [vmem:[#allocation2 + $0x68] sm:$0xff] 0.0
  %4326 = vst [vmem:[#allocation2 + $0x70] sm:$0xff] 0.0
  %4327 = vst [vmem:[#allocation2 + $0x78] sm:$0xff] 0.0
  %4328 = vst [vmem:[#allocation2 + $0x80] sm:$0xff] 0.0
  %4329 = vst [vmem:[#allocation2 + $0x88] sm:$0xff] 0.0
  %4330 = vst [vmem:[#allocation2 + $0x90] sm:$0xff] 0.0
  %4331 = vst [vmem:[#allocation2 + $0x98] sm:$0xff] 0.0
  %4332 = vst [vmem:[#allocation2 + $0xa0] sm:$0xff] 0.0
  %4333 = vst [vmem:[#allocation2 + $0xa8] sm:$0xff] 0.0
  %4334 = vst [vmem:[#allocation2 + $0xb0] sm:$0xff] 0.0
  %4335 = vst [vmem:[#allocation2 + $0xb8] sm:$0xff] 0.0
  %4336 = vst [vmem:[#allocation2 + $0xc0] sm:$0xff] 0.0
  %4337 = vst [vmem:[#allocation2 + $0xc8] sm:$0xff] 0.0
  %4338 = vst [vmem:[#allocation2 + $0xd0] sm:$0xff] 0.0
  %4339 = vst [vmem:[#allocation2 + $0xd8] sm:$0xff] 0.0
  %4340 = vst [vmem:[#allocation2 + $0xe0] sm:$0xff] 0.0
  %4341 = vst [vmem:[#allocation2 + $0xe8] sm:$0xff] 0.0
  %4342 = vst [vmem:[#allocation2 + $0xf0] sm:$0xff] 0.0
  %4343 = vst [vmem:[#allocation2 + $0xf8] sm:$0xff] 0.0
  %4344 = vst [vmem:[#allocation2 + $0x100] sm:$0xff] 0.0
  %4345 = vst [vmem:[#allocation2 + $0x108] sm:$0xff] 0.0
  %4346 = vst [vmem:[#allocation2 + $0x110] sm:$0xff] 0.0
  %4347 = vst [vmem:[#allocation2 + $0x118] sm:$0xff] 0.0
  %4348 = vst [vmem:[#allocation2 + $0x120] sm:$0xff] 0.0
  %4349 = vst [vmem:[#allocation2 + $0x128] sm:$0xff] 0.0
  %4350 = vst [vmem:[#allocation2 + $0x130] sm:$0xff] 0.0
  %4351 = vst [vmem:[#allocation2 + $0x138] sm:$0xff] 0.0
  %4352 = vst [vmem:[#allocation2 + $0x140] sm:$0xff] 0.0
  %4353 = vst [vmem:[#allocation2 + $0x148] sm:$0xff] 0.0
  %4354 = vst [vmem:[#allocation2 + $0x150] sm:$0xff] 0.0
  %4355 = vst [vmem:[#allocation2 + $0x158] sm:$0xff] 0.0
  %4356 = vst [vmem:[#allocation2 + $0x160] sm:$0xff] 0.0
  %4357 = vst [vmem:[#allocation2 + $0x168] sm:$0xff] 0.0
  %4358 = vst [vmem:[#allocation2 + $0x170] sm:$0xff] 0.0
  %4359 = vst [vmem:[#allocation2 + $0x178] sm:$0xff] 0.0
  %4360 = vst [vmem:[#allocation2] sm:$0xff] %v4264
  %4361 = vst.msk [vmem:[#allocation2 + $0x8] sm:$0xff] %vm161, %v4265
  %4362 = vst [vmem:[#allocation2 + $0x10] sm:$0xff] %v4266
  %4363 = vst.msk [vmem:[#allocation2 + $0x18] sm:$0xff] %vm161, %v4267
  %4364 = vst [vmem:[#allocation2 + $0x20] sm:$0xff] %v4268
  %4365 = vst.msk [vmem:[#allocation2 + $0x28] sm:$0xff] %vm161, %v4269
  %4366 = vst [vmem:[#allocation2 + $0x30] sm:$0xff] %v4270
  %4367 = vst.msk [vmem:[#allocation2 + $0x38] sm:$0xff] %vm161, %v4271
  %4368 = vst [vmem:[#allocation2 + $0x40] sm:$0xff] %v4272
  %4369 = vst.msk [vmem:[#allocation2 + $0x48] sm:$0xff] %vm161, %v4273
  %4370 = vst [vmem:[#allocation2 + $0x50] sm:$0xff] %v4274
  %4371 = vst.msk [vmem:[#allocation2 + $0x58] sm:$0xff] %vm161, %v4275
  %4372 = vst [vmem:[#allocation2 + $0x60] sm:$0xff] %v4276
  %4373 = vst.msk [vmem:[#allocation2 + $0x68] sm:$0xff] %vm161, %v4277
  %4374 = vst [vmem:[#allocation2 + $0x70] sm:$0xff] %v4278
  %4375 = vst.msk [vmem:[#allocation2 + $0x78] sm:$0xff] %vm161, %v4279
  %4376 = vst [vmem:[#allocation2 + $0x80] sm:$0xff] %v4280
  %4377 = vst.msk [vmem:[#allocation2 + $0x88] sm:$0xff] %vm161, %v4281
  %4378 = vst [vmem:[#allocation2 + $0x90] sm:$0xff] %v4282
  %4379 = vst.msk [vmem:[#allocation2 + $0x98] sm:$0xff] %vm161, %v4283
  %4380 = vst [vmem:[#allocation2 + $0xa0] sm:$0xff] %v4284
  %4381 = vst.msk [vmem:[#allocation2 + $0xa8] sm:$0xff] %vm161, %v4285
  %4382 = vst [vmem:[#allocation2 + $0xb0] sm:$0xff] %v4286
  %4383 = vst.msk [vmem:[#allocation2 + $0xb8] sm:$0xff] %vm161, %v4287
  %4384 = vst [vmem:[#allocation2 + $0xc0] sm:$0xff] %v4288
  %4385 = vst.msk [vmem:[#allocation2 + $0xc8] sm:$0xff] %vm161, %v4289
  %4386 = vst [vmem:[#allocation2 + $0xd0] sm:$0xff] %v4290
  %4387 = vst.msk [vmem:[#allocation2 + $0xd8] sm:$0xff] %vm161, %v4291
  %4388 = vst [vmem:[#allocation2 + $0xe0] sm:$0xff] %v4292
  %4389 = vst.msk [vmem:[#allocation2 + $0xe8] sm:$0xff] %vm161, %v4293
  %4390 = vst [vmem:[#allocation2 + $0xf0] sm:$0xff] %v4294
  %4391 = vst.msk [vmem:[#allocation2 + $0xf8] sm:$0xff] %vm161, %v4295
  %4392 = vst [vmem:[#allocation2 + $0x100] sm:$0xff] %v4296
  %4393 = vst.msk [vmem:[#allocation2 + $0x108] sm:$0xff] %vm161, %v4297
  %4394 = vst [vmem:[#allocation2 + $0x110] sm:$0xff] %v4298
  %4395 = vst.msk [vmem:[#allocation2 + $0x118] sm:$0xff] %vm161, %v4299
  %4396 = vst [vmem:[#allocation2 + $0x120] sm:$0xff] %v4300
  %4397 = vst.msk [vmem:[#allocation2 + $0x128] sm:$0xff] %vm161, %v4301
  %4398 = vst [vmem:[#allocation2 + $0x130] sm:$0xff] %v4302
  %4399 = vst.msk [vmem:[#allocation2 + $0x138] sm:$0xff] %vm161, %v4303
  %4400 = vst [vmem:[#allocation2 + $0x140] sm:$0xff] %v4304
  %4401 = vst.msk [vmem:[#allocation2 + $0x148] sm:$0xff] %vm161, %v4305
  %4402 = vst [vmem:[#allocation2 + $0x150] sm:$0xff] %v4306
  %4403 = vst.msk [vmem:[#allocation2 + $0x158] sm:$0xff] %vm161, %v4307
  %4404 = vst [vmem:[#allocation2 + $0x160] sm:$0xff] %v4308
  %4405 = vst.msk [vmem:[#allocation2 + $0x168] sm:$0xff] %vm161, %v4309
  %4406 = vst [vmem:[#allocation2 + $0x170] sm:$0xff] %v4310
  %4407 = vst.msk [vmem:[#allocation2 + $0x178] sm:$0xff] %vm161, %v4311
  %v4408 = vld [vmem:[%s6] sm:$0xff]
  %v4409 = vld [vmem:[%s6 + $0x8] sm:$0xff]
  %v4410 = vld [vmem:[%s6 + $0x10] sm:$0xff]
  %v4411 = vld [vmem:[%s6 + $0x18] sm:$0xff]
  %v4412 = vld [vmem:[%s6 + $0x20] sm:$0xff]
  %v4413 = vld [vmem:[%s6 + $0x28] sm:$0xff]
  %v4414 = vld [vmem:[%s6 + $0x30] sm:$0xff]
  %v4415 = vld [vmem:[%s6 + $0x38] sm:$0xff]
  %v4416 = vld [vmem:[%s6 + $0x40] sm:$0xff]
  %v4417 = vld [vmem:[%s6 + $0x48] sm:$0xff]
  %v4418 = vld [vmem:[%s6 + $0x50] sm:$0xff]
  %v4419 = vld [vmem:[%s6 + $0x58] sm:$0xff]
  %v4420 = vld [vmem:[%s6 + $0x60] sm:$0xff]
  %v4421 = vld [vmem:[%s6 + $0x68] sm:$0xff]
  %v4422 = vld [vmem:[%s6 + $0x70] sm:$0xff]
  %v4423 = vld [vmem:[%s6 + $0x78] sm:$0xff]
  %v4424 = vld [vmem:[%s6 + $0x80] sm:$0xff]
  %v4425 = vld [vmem:[%s6 + $0x88] sm:$0xff]
  %v4426 = vld [vmem:[%s6 + $0x90] sm:$0xff]
  %v4427 = vld [vmem:[%s6 + $0x98] sm:$0xff]
  %v4428 = vld [vmem:[%s6 + $0xa0] sm:$0xff]
  %v4429 = vld [vmem:[%s6 + $0xa8] sm:$0xff]
  %v4430 = vld [vmem:[%s6 + $0xb0] sm:$0xff]
  %v4431 = vld [vmem:[%s6 + $0xb8] sm:$0xff]
  %v4432 = vld [vmem:[%s6 + $0xc0] sm:$0xff]
  %v4433 = vld [vmem:[%s6 + $0xc8] sm:$0xff]
  %v4434 = vld [vmem:[%s6 + $0xd0] sm:$0xff]
  %v4435 = vld [vmem:[%s6 + $0xd8] sm:$0xff]
  %v4436 = vld [vmem:[%s6 + $0xe0] sm:$0xff]
  %v4437 = vld [vmem:[%s6 + $0xe8] sm:$0xff]
  %v4438 = vld [vmem:[%s6 + $0xf0] sm:$0xff]
  %v4439 = vld [vmem:[%s6 + $0xf8] sm:$0xff]
  %v4440 = vld [vmem:[%s6 + $0x100] sm:$0xff]
  %v4441 = vld [vmem:[%s6 + $0x108] sm:$0xff]
  %v4442 = vld [vmem:[%s6 + $0x110] sm:$0xff]
  %v4443 = vld [vmem:[%s6 + $0x118] sm:$0xff]
  %v4444 = vld [vmem:[%s6 + $0x120] sm:$0xff]
  %v4445 = vld [vmem:[%s6 + $0x128] sm:$0xff]
  %v4446 = vld [vmem:[%s6 + $0x130] sm:$0xff]
  %v4447 = vld [vmem:[%s6 + $0x138] sm:$0xff]
  %v4448 = vld [vmem:[%s6 + $0x140] sm:$0xff]
  %v4449 = vld [vmem:[%s6 + $0x148] sm:$0xff]
  %v4450 = vld [vmem:[%s6 + $0x150] sm:$0xff]
  %v4451 = vld [vmem:[%s6 + $0x158] sm:$0xff]
  %v4452 = vld [vmem:[%s6 + $0x160] sm:$0xff]
  %v4453 = vld [vmem:[%s6 + $0x168] sm:$0xff]
  %v4454 = vld [vmem:[%s6 + $0x170] sm:$0xff]
  %v4455 = vld [vmem:[%s6 + $0x178] sm:$0xff]
  %v4456 = vld [vmem:[%s6 + $0x180] sm:$0xff]
  %v4457 = vld [vmem:[%s6 + $0x188] sm:$0xff]
  %v4458 = vld [vmem:[%s6 + $0x190] sm:$0xff]
  %v4459 = vld [vmem:[%s6 + $0x198] sm:$0xff]
  %v4460 = vld [vmem:[%s6 + $0x1a0] sm:$0xff]
  %v4461 = vld [vmem:[%s6 + $0x1a8] sm:$0xff]
  %v4462 = vld [vmem:[%s6 + $0x1b0] sm:$0xff]
  %v4463 = vld [vmem:[%s6 + $0x1b8] sm:$0xff]
  %v4464 = vld [vmem:[%s6 + $0x1c0] sm:$0xff]
  %v4465 = vld [vmem:[%s6 + $0x1c8] sm:$0xff]
  %v4466 = vld [vmem:[%s6 + $0x1d0] sm:$0xff]
  %v4467 = vld [vmem:[%s6 + $0x1d8] sm:$0xff]
  %v4468 = vld [vmem:[%s6 + $0x1e0] sm:$0xff]
  %v4469 = vld [vmem:[%s6 + $0x1e8] sm:$0xff]
  %v4470 = vld [vmem:[%s6 + $0x1f0] sm:$0xff]
  %v4471 = vld [vmem:[%s6 + $0x1f8] sm:$0xff]
  %v4472 = vld [vmem:[%s6 + $0x200] sm:$0xff]
  %v4473 = vld [vmem:[%s6 + $0x208] sm:$0xff]
  %v4474 = vld [vmem:[%s6 + $0x210] sm:$0xff]
  %v4475 = vld [vmem:[%s6 + $0x218] sm:$0xff]
  %v4476 = vld [vmem:[%s6 + $0x220] sm:$0xff]
  %v4477 = vld [vmem:[%s6 + $0x228] sm:$0xff]
  %v4478 = vld [vmem:[%s6 + $0x230] sm:$0xff]
  %v4479 = vld [vmem:[%s6 + $0x238] sm:$0xff]
  %v4480 = vld [vmem:[%s6 + $0x240] sm:$0xff]
  %v4481 = vld [vmem:[%s6 + $0x248] sm:$0xff]
  %v4482 = vld [vmem:[%s6 + $0x250] sm:$0xff]
  %v4483 = vld [vmem:[%s6 + $0x258] sm:$0xff]
  %v4484 = vld [vmem:[%s6 + $0x260] sm:$0xff]
  %v4485 = vld [vmem:[%s6 + $0x268] sm:$0xff]
  %v4486 = vld [vmem:[%s6 + $0x270] sm:$0xff]
  %v4487 = vld [vmem:[%s6 + $0x278] sm:$0xff]
  %v4488 = vld [vmem:[%s6 + $0x280] sm:$0xff]
  %v4489 = vld [vmem:[%s6 + $0x288] sm:$0xff]
  %v4490 = vld [vmem:[%s6 + $0x290] sm:$0xff]
  %v4491 = vld [vmem:[%s6 + $0x298] sm:$0xff]
  %v4492 = vld [vmem:[%s6 + $0x2a0] sm:$0xff]
  %v4493 = vld [vmem:[%s6 + $0x2a8] sm:$0xff]
  %v4494 = vld [vmem:[%s6 + $0x2b0] sm:$0xff]
  %v4495 = vld [vmem:[%s6 + $0x2b8] sm:$0xff]
  %v4496 = vld [vmem:[%s6 + $0x2c0] sm:$0xff]
  %v4497 = vld [vmem:[%s6 + $0x2c8] sm:$0xff]
  %v4498 = vld [vmem:[%s6 + $0x2d0] sm:$0xff]
  %v4499 = vld [vmem:[%s6 + $0x2d8] sm:$0xff]
  %v4500 = vld [vmem:[%s6 + $0x2e0] sm:$0xff]
  %v4501 = vld [vmem:[%s6 + $0x2e8] sm:$0xff]
  %v4502 = vld [vmem:[%s6 + $0x2f0] sm:$0xff]
  %v4503 = vld [vmem:[%s6 + $0x2f8] sm:$0xff]
  %v4504 = vld [vmem:[%s6 + $0x300] sm:$0xff]
  %v4505 = vld [vmem:[%s6 + $0x308] sm:$0xff]
  %v4506 = vld [vmem:[%s6 + $0x310] sm:$0xff]
  %v4507 = vld [vmem:[%s6 + $0x318] sm:$0xff]
  %v4508 = vld [vmem:[%s6 + $0x320] sm:$0xff]
  %v4509 = vld [vmem:[%s6 + $0x328] sm:$0xff]
  %v4510 = vld [vmem:[%s6 + $0x330] sm:$0xff]
  %v4511 = vld [vmem:[%s6 + $0x338] sm:$0xff]
  %v4512 = vld [vmem:[%s6 + $0x340] sm:$0xff]
  %v4513 = vld [vmem:[%s6 + $0x348] sm:$0xff]
  %v4514 = vld [vmem:[%s6 + $0x350] sm:$0xff]
  %v4515 = vld [vmem:[%s6 + $0x358] sm:$0xff]
  %v4516 = vld [vmem:[#allocation2] sm:$0xff]
  %v4517 = vld [vmem:[#allocation2 + $0x8] sm:$0xff]
  %v4518 = vld [vmem:[#allocation2 + $0x10] sm:$0xff]
  %v4519 = vld [vmem:[#allocation2 + $0x18] sm:$0xff]
  %v4520 = vld [vmem:[#allocation2 + $0x20] sm:$0xff]
  %v4521 = vld [vmem:[#allocation2 + $0x28] sm:$0xff]
  %v4522 = vld [vmem:[#allocation2 + $0x30] sm:$0xff]
  %v4523 = vld [vmem:[#allocation2 + $0x38] sm:$0xff]
  %v4524 = vld [vmem:[#allocation2 + $0x40] sm:$0xff]
  %v4525 = vld [vmem:[#allocation2 + $0x48] sm:$0xff]
  %v4526 = vld [vmem:[#allocation2 + $0x50] sm:$0xff]
  %v4527 = vld [vmem:[#allocation2 + $0x58] sm:$0xff]
  %v4528 = vld [vmem:[#allocation2 + $0x60] sm:$0xff]
  %v4529 = vld [vmem:[#allocation2 + $0x68] sm:$0xff]
  %v4530 = vld [vmem:[#allocation2 + $0x70] sm:$0xff]
  %v4531 = vld [vmem:[#allocation2 + $0x78] sm:$0xff]
  %v4532 = vld [vmem:[#allocation2 + $0x80] sm:$0xff]
  %v4533 = vld [vmem:[#allocation2 + $0x88] sm:$0xff]
  %v4534 = vld [vmem:[#allocation2 + $0x90] sm:$0xff]
  %v4535 = vld [vmem:[#allocation2 + $0x98] sm:$0xff]
  %v4536 = vld [vmem:[#allocation2 + $0xa0] sm:$0xff]
  %v4537 = vld [vmem:[#allocation2 + $0xa8] sm:$0xff]
  %v4538 = vld [vmem:[#allocation2 + $0xb0] sm:$0xff]
  %v4539 = vld [vmem:[#allocation2 + $0xb8] sm:$0xff]
  %v4540 = vld [vmem:[#allocation2 + $0xc0] sm:$0xff]
  %v4541 = vld [vmem:[#allocation2 + $0xc8] sm:$0xff]
  %v4542 = vld [vmem:[#allocation2 + $0xd0] sm:$0xff]
  %v4543 = vld [vmem:[#allocation2 + $0xd8] sm:$0xff]
  %v4544 = vld [vmem:[#allocation2 + $0xe0] sm:$0xff]
  %v4545 = vld [vmem:[#allocation2 + $0xe8] sm:$0xff]
  %v4546 = vld [vmem:[#allocation2 + $0xf0] sm:$0xff]
  %v4547 = vld [vmem:[#allocation2 + $0xf8] sm:$0xff]
  %v4548 = vld [vmem:[#allocation2 + $0x100] sm:$0xff]
  %v4549 = vld [vmem:[#allocation2 + $0x108] sm:$0xff]
  %v4550 = vld [vmem:[#allocation2 + $0x110] sm:$0xff]
  %v4551 = vld [vmem:[#allocation2 + $0x118] sm:$0xff]
  %v4552 = vld [vmem:[#allocation2 + $0x120] sm:$0xff]
  %v4553 = vld [vmem:[#allocation2 + $0x128] sm:$0xff]
  %v4554 = vld [vmem:[#allocation2 + $0x130] sm:$0xff]
  %v4555 = vld [vmem:[#allocation2 + $0x138] sm:$0xff]
  %v4556 = vld [vmem:[#allocation2 + $0x140] sm:$0xff]
  %v4557 = vld [vmem:[#allocation2 + $0x148] sm:$0xff]
  %v4558 = vld [vmem:[#allocation2 + $0x150] sm:$0xff]
  %v4559 = vld [vmem:[#allocation2 + $0x158] sm:$0xff]
  %v4560 = vld [vmem:[#allocation2 + $0x160] sm:$0xff]
  %v4561 = vld [vmem:[#allocation2 + $0x168] sm:$0xff]
  %v4562 = vld [vmem:[#allocation2 + $0x170] sm:$0xff]
  %v4563 = vld [vmem:[#allocation2 + $0x178] sm:$0xff]
  %vm4564 = vcmask 523264
  %v4566 = vsel %vm4564, %v4409, 0
  %v4569 = vsel %vm4564, %v4411, 0
  %v4572 = vsel %vm4564, %v4413, 0
  %v4575 = vsel %vm4564, %v4415, 0
  %v4578 = vsel %vm4564, %v4417, 0
  %v4581 = vsel %vm4564, %v4419, 0
  %v4584 = vsel %vm4564, %v4421, 0
  %v4587 = vsel %vm4564, %v4423, 0
  %v4590 = vsel %vm4564, %v4425, 0
  %v4593 = vsel %vm4564, %v4427, 0
  %v4596 = vsel %vm4564, %v4429, 0
  %v4599 = vsel %vm4564, %v4431, 0
  %v4602 = vsel %vm4564, %v4433, 0
  %v4605 = vsel %vm4564, %v4435, 0
  %v4608 = vsel %vm4564, %v4437, 0
  %v4611 = vsel %vm4564, %v4439, 0
  %v4614 = vsel %vm4564, %v4441, 0
  %v4617 = vsel %vm4564, %v4443, 0
  %v4620 = vsel %vm4564, %v4445, 0
  %v4623 = vsel %vm4564, %v4447, 0
  %v4626 = vsel %vm4564, %v4449, 0
  %v4629 = vsel %vm4564, %v4451, 0
  %v4632 = vsel %vm4564, %v4453, 0
  %v4635 = vsel %vm4564, %v4455, 0
  %v4638 = vsel %vm4564, %v4457, 0
  %v4641 = vsel %vm4564, %v4459, 0
  %v4644 = vsel %vm4564, %v4461, 0
  %v4647 = vsel %vm4564, %v4463, 0
  %v4650 = vsel %vm4564, %v4465, 0
  %v4653 = vsel %vm4564, %v4467, 0
  %v4656 = vsel %vm4564, %v4469, 0
  %v4659 = vsel %vm4564, %v4471, 0
  %v4662 = vsel %vm4564, %v4473, 0
  %v4665 = vsel %vm4564, %v4475, 0
  %v4668 = vsel %vm4564, %v4477, 0
  %v4671 = vsel %vm4564, %v4479, 0
  %v4674 = vsel %vm4564, %v4481, 0
  %v4677 = vsel %vm4564, %v4483, 0
  %v4680 = vsel %vm4564, %v4485, 0
  %v4683 = vsel %vm4564, %v4487, 0
  %v4686 = vsel %vm4564, %v4489, 0
  %v4689 = vsel %vm4564, %v4491, 0
  %v4692 = vsel %vm4564, %v4493, 0
  %v4695 = vsel %vm4564, %v4495, 0
  %v4698 = vsel %vm4564, %v4497, 0
  %v4701 = vsel %vm4564, %v4499, 0
  %v4704 = vsel %vm4564, %v4501, 0
  %v4707 = vsel %vm4564, %v4503, 0
  %v4710 = vsel %vm4564, %v4505, 0
  %v4713 = vsel %vm4564, %v4507, 0
  %v4716 = vsel %vm4564, %v4509, 0
  %v4719 = vsel %vm4564, %v4511, 0
  %v4722 = vsel %vm4564, %v4513, 0
  %v4725 = vsel %vm4564, %v4515, 0
  %4727 = vmatprep.subr.mxu0 %v4547
  %4728 = vmatpush1.msra.mxu0 %v4546
  %4729 = vmatprep.subr.mxu0 %v4545
  %4730 = vmatpush1.msra.mxu0 %v4544
  %4731 = vmatprep.subr.mxu0 %v4543
  %4732 = vmatpush1.msra.mxu0 %v4542
  %4733 = vmatprep.subr.mxu0 %v4541
  %4734 = vmatpush1.msra.mxu0 %v4540
  %4735 = vmatprep.subr.mxu0 %v4539
  %4736 = vmatpush1.msra.mxu0 %v4538
  %4737 = vmatprep.subr.mxu0 %v4537
  %4738 = vmatpush1.msra.mxu0 %v4536
  %4739 = vmatprep.subr.mxu0 %v4535
  %4740 = vmatpush1.msra.mxu0 %v4534
  %4741 = vmatprep.subr.mxu0 %v4533
  %4742 = vmatpush1.msra.mxu0 %v4532
  %4743 = vmatprep.subr.mxu0 %v4531
  %4744 = vmatpush1.msra.mxu0 %v4530
  %4745 = vmatprep.subr.mxu0 %v4529
  %4746 = vmatpush1.msra.mxu0 %v4528
  %4747 = vmatprep.subr.mxu0 %v4527
  %4748 = vmatpush1.msra.mxu0 %v4526
  %4749 = vmatprep.subr.mxu0 %v4525
  %4750 = vmatpush1.msra.mxu0 %v4524
  %4751 = vmatprep.subr.mxu0 %v4523
  %4752 = vmatpush1.msra.mxu0 %v4522
  %4753 = vmatprep.subr.mxu0 %v4521
  %4754 = vmatpush1.msra.mxu0 %v4520
  %4755 = vmatprep.subr.mxu0 %v4519
  %4756 = vmatpush1.msra.mxu0 %v4518
  %4757 = vmatprep.subr.mxu0 %v4517
  %4758 = vmatpush1.msra.mxu0 %v4516
  %4759 = vmatprep.subr.mxu0 0.0
  %4760 = vmatpush2.msra.mxu0 0.0
  %4761 = vmatprep.subr.mxu0 0.0
  %4762 = vmatpush2.msra.mxu0 0.0
  %4763 = vmatprep.subr.mxu0 0.0
  %4764 = vmatpush2.msra.mxu0 0.0
  %4765 = vmatprep.subr.mxu0 0.0
  %4766 = vmatpush2.msra.mxu0 0.0
  %4767 = vmatprep.subr.mxu0 0.0
  %4768 = vmatpush2.msra.mxu0 0.0
  %4769 = vmatprep.subr.mxu0 0.0
  %4770 = vmatpush2.msra.mxu0 0.0
  %4771 = vmatprep.subr.mxu0 0.0
  %4772 = vmatpush2.msra.mxu0 0.0
  %4773 = vmatprep.subr.mxu0 0.0
  %4774 = vmatpush2.msra.mxu0 0.0
  %4775 = vmatprep.subr.mxu0 %v4563
  %4776 = vmatpush2.msra.mxu0 %v4562
  %4777 = vmatprep.subr.mxu0 %v4561
  %4778 = vmatpush2.msra.mxu0 %v4560
  %4779 = vmatprep.subr.mxu0 %v4559
  %4780 = vmatpush2.msra.mxu0 %v4558
  %4781 = vmatprep.subr.mxu0 %v4557
  %4782 = vmatpush2.msra.mxu0 %v4556
  %4783 = vmatprep.subr.mxu0 %v4555
  %4784 = vmatpush2.msra.mxu0 %v4554
  %4785 = vmatprep.subr.mxu0 %v4553
  %4786 = vmatpush2.msra.mxu0 %v4552
  %4787 = vmatprep.subr.mxu0 %v4551
  %4788 = vmatpush2.msra.mxu0 %v4550
  %4789 = vmatprep.subr.mxu0 %v4549
  %4790 = vmatpush2.msra.mxu0 %v4548
  %4791 = vmatprep.mubr.f32.mxu0 %v4566
  %4792 = vmatmul.mubr.f32.gmra.mxu0 %v4408
  %v4793 = vpop.f32.mrf.mxu0
  %v4794 = vadd.f32 0.0, %v4793
  %v4795 = vpop.f32.mrf.mxu0
  %v4796 = vadd.f32 0.0, %v4795
  %4797 = vmatprep.mubr.f32.mxu0 %v4569
  %4798 = vmatmul.mubr.f32.gmra.mxu0 %v4410
  %v4799 = vpop.f32.mrf.mxu0
  %v4800 = vadd.f32 0.0, %v4799
  %v4801 = vpop.f32.mrf.mxu0
  %v4802 = vadd.f32 0.0, %v4801
  %4803 = vmatprep.mubr.f32.mxu0 %v4572
  %4804 = vmatmul.mubr.f32.gmra.mxu0 %v4412
  %v4805 = vpop.f32.mrf.mxu0
  %v4806 = vadd.f32 0.0, %v4805
  %v4807 = vpop.f32.mrf.mxu0
  %v4808 = vadd.f32 0.0, %v4807
  %4809 = vmatprep.mubr.f32.mxu0 %v4575
  %4810 = vmatmul.mubr.f32.gmra.mxu0 %v4414
  %v4811 = vpop.f32.mrf.mxu0
  %v4812 = vadd.f32 0.0, %v4811
  %v4813 = vpop.f32.mrf.mxu0
  %v4814 = vadd.f32 0.0, %v4813
  %4815 = vmatprep.mubr.f32.mxu0 %v4578
  %4816 = vmatmul.mubr.f32.gmra.mxu0 %v4416
  %v4817 = vpop.f32.mrf.mxu0
  %v4818 = vadd.f32 0.0, %v4817
  %v4819 = vpop.f32.mrf.mxu0
  %v4820 = vadd.f32 0.0, %v4819
  %4821 = vmatprep.mubr.f32.mxu0 %v4581
  %4822 = vmatmul.mubr.f32.gmra.mxu0 %v4418
  %v4823 = vpop.f32.mrf.mxu0
  %v4824 = vadd.f32 0.0, %v4823
  %v4825 = vpop.f32.mrf.mxu0
  %v4826 = vadd.f32 0.0, %v4825
  %4827 = vmatprep.mubr.f32.mxu0 %v4584
  %4828 = vmatmul.mubr.f32.gmra.mxu0 %v4420
  %v4829 = vpop.f32.mrf.mxu0
  %v4830 = vadd.f32 0.0, %v4829
  %v4831 = vpop.f32.mrf.mxu0
  %v4832 = vadd.f32 0.0, %v4831
  %4833 = vmatprep.mubr.f32.mxu0 %v4587
  %4834 = vmatmul.mubr.f32.gmra.mxu0 %v4422
  %v4835 = vpop.f32.mrf.mxu0
  %v4836 = vadd.f32 0.0, %v4835
  %v4837 = vpop.f32.mrf.mxu0
  %v4838 = vadd.f32 0.0, %v4837
  %4839 = vmatprep.mubr.f32.mxu0 %v4590
  %4840 = vmatmul.mubr.f32.gmra.mxu0 %v4424
  %v4841 = vpop.f32.mrf.mxu0
  %v4842 = vadd.f32 0.0, %v4841
  %v4843 = vpop.f32.mrf.mxu0
  %v4844 = vadd.f32 0.0, %v4843
  %4845 = vmatprep.mubr.f32.mxu0 %v4593
  %4846 = vmatmul.mubr.f32.gmra.mxu0 %v4426
  %v4847 = vpop.f32.mrf.mxu0
  %v4848 = vadd.f32 0.0, %v4847
  %v4849 = vpop.f32.mrf.mxu0
  %v4850 = vadd.f32 0.0, %v4849
  %4851 = vmatprep.mubr.f32.mxu0 %v4596
  %4852 = vmatmul.mubr.f32.gmra.mxu0 %v4428
  %v4853 = vpop.f32.mrf.mxu0
  %v4854 = vadd.f32 0.0, %v4853
  %v4855 = vpop.f32.mrf.mxu0
  %v4856 = vadd.f32 0.0, %v4855
  %4857 = vmatprep.mubr.f32.mxu0 %v4599
  %4858 = vmatmul.mubr.f32.gmra.mxu0 %v4430
  %v4859 = vpop.f32.mrf.mxu0
  %v4860 = vadd.f32 0.0, %v4859
  %v4861 = vpop.f32.mrf.mxu0
  %v4862 = vadd.f32 0.0, %v4861
  %4863 = vmatprep.mubr.f32.mxu0 %v4602
  %4864 = vmatmul.mubr.f32.gmra.mxu0 %v4432
  %v4865 = vpop.f32.mrf.mxu0
  %v4866 = vadd.f32 0.0, %v4865
  %v4867 = vpop.f32.mrf.mxu0
  %v4868 = vadd.f32 0.0, %v4867
  %4869 = vmatprep.mubr.f32.mxu0 %v4605
  %4870 = vmatmul.mubr.f32.gmra.mxu0 %v4434
  %v4871 = vpop.f32.mrf.mxu0
  %v4872 = vadd.f32 0.0, %v4871
  %v4873 = vpop.f32.mrf.mxu0
  %v4874 = vadd.f32 0.0, %v4873
  %4875 = vmatprep.mubr.f32.mxu0 %v4608
  %4876 = vmatmul.mubr.f32.gmra.mxu0 %v4436
  %v4877 = vpop.f32.mrf.mxu0
  %v4878 = vadd.f32 0.0, %v4877
  %v4879 = vpop.f32.mrf.mxu0
  %v4880 = vadd.f32 0.0, %v4879
  %4881 = vmatprep.mubr.f32.mxu0 %v4611
  %4882 = vmatmul.mubr.f32.gmra.mxu0 %v4438
  %v4883 = vpop.f32.mrf.mxu0
  %v4884 = vadd.f32 0.0, %v4883
  %v4885 = vpop.f32.mrf.mxu0
  %v4886 = vadd.f32 0.0, %v4885
  %4887 = vmatprep.mubr.f32.mxu0 %v4614
  %4888 = vmatmul.mubr.f32.gmra.mxu0 %v4440
  %v4889 = vpop.f32.mrf.mxu0
  %v4890 = vadd.f32 0.0, %v4889
  %v4891 = vpop.f32.mrf.mxu0
  %v4892 = vadd.f32 0.0, %v4891
  %4893 = vmatprep.mubr.f32.mxu0 %v4617
  %4894 = vmatmul.mubr.f32.gmra.mxu0 %v4442
  %v4895 = vpop.f32.mrf.mxu0
  %v4896 = vadd.f32 0.0, %v4895
  %v4897 = vpop.f32.mrf.mxu0
  %v4898 = vadd.f32 0.0, %v4897
  %4899 = vmatprep.mubr.f32.mxu0 %v4620
  %4900 = vmatmul.mubr.f32.gmra.mxu0 %v4444
  %v4901 = vpop.f32.mrf.mxu0
  %v4902 = vadd.f32 0.0, %v4901
  %v4903 = vpop.f32.mrf.mxu0
  %v4904 = vadd.f32 0.0, %v4903
  %4905 = vmatprep.mubr.f32.mxu0 %v4623
  %4906 = vmatmul.mubr.f32.gmra.mxu0 %v4446
  %v4907 = vpop.f32.mrf.mxu0
  %v4908 = vadd.f32 0.0, %v4907
  %v4909 = vpop.f32.mrf.mxu0
  %v4910 = vadd.f32 0.0, %v4909
  %4911 = vmatprep.mubr.f32.mxu0 %v4626
  %4912 = vmatmul.mubr.f32.gmra.mxu0 %v4448
  %v4913 = vpop.f32.mrf.mxu0
  %v4914 = vadd.f32 0.0, %v4913
  %v4915 = vpop.f32.mrf.mxu0
  %v4916 = vadd.f32 0.0, %v4915
  %4917 = vmatprep.mubr.f32.mxu0 %v4629
  %4918 = vmatmul.mubr.f32.gmra.mxu0 %v4450
  %v4919 = vpop.f32.mrf.mxu0
  %v4920 = vadd.f32 0.0, %v4919
  %v4921 = vpop.f32.mrf.mxu0
  %v4922 = vadd.f32 0.0, %v4921
  %4923 = vmatprep.mubr.f32.mxu0 %v4632
  %4924 = vmatmul.mubr.f32.gmra.mxu0 %v4452
  %v4925 = vpop.f32.mrf.mxu0
  %v4926 = vadd.f32 0.0, %v4925
  %v4927 = vpop.f32.mrf.mxu0
  %v4928 = vadd.f32 0.0, %v4927
  %4929 = vmatprep.mubr.f32.mxu0 %v4635
  %4930 = vmatmul.mubr.f32.gmra.mxu0 %v4454
  %v4931 = vpop.f32.mrf.mxu0
  %v4932 = vadd.f32 0.0, %v4931
  %v4933 = vpop.f32.mrf.mxu0
  %v4934 = vadd.f32 0.0, %v4933
  %4935 = vmatprep.mubr.f32.mxu0 %v4638
  %4936 = vmatmul.mubr.f32.gmra.mxu0 %v4456
  %v4937 = vpop.f32.mrf.mxu0
  %v4938 = vadd.f32 0.0, %v4937
  %v4939 = vpop.f32.mrf.mxu0
  %v4940 = vadd.f32 0.0, %v4939
  %4941 = vmatprep.mubr.f32.mxu0 %v4641
  %4942 = vmatmul.mubr.f32.gmra.mxu0 %v4458
  %v4943 = vpop.f32.mrf.mxu0
  %v4944 = vadd.f32 0.0, %v4943
  %v4945 = vpop.f32.mrf.mxu0
  %v4946 = vadd.f32 0.0, %v4945
  %4947 = vmatprep.mubr.f32.mxu0 %v4644
  %4948 = vmatmul.mubr.f32.gmra.mxu0 %v4460
  %v4949 = vpop.f32.mrf.mxu0
  %v4950 = vadd.f32 0.0, %v4949
  %v4951 = vpop.f32.mrf.mxu0
  %v4952 = vadd.f32 0.0, %v4951
  %4953 = vmatprep.mubr.f32.mxu0 %v4647
  %4954 = vmatmul.mubr.f32.gmra.mxu0 %v4462
  %v4955 = vpop.f32.mrf.mxu0
  %v4956 = vadd.f32 0.0, %v4955
  %v4957 = vpop.f32.mrf.mxu0
  %v4958 = vadd.f32 0.0, %v4957
  %4959 = vmatprep.mubr.f32.mxu0 %v4650
  %4960 = vmatmul.mubr.f32.gmra.mxu0 %v4464
  %v4961 = vpop.f32.mrf.mxu0
  %v4962 = vadd.f32 0.0, %v4961
  %v4963 = vpop.f32.mrf.mxu0
  %v4964 = vadd.f32 0.0, %v4963
  %4965 = vmatprep.mubr.f32.mxu0 %v4653
  %4966 = vmatmul.mubr.f32.gmra.mxu0 %v4466
  %v4967 = vpop.f32.mrf.mxu0
  %v4968 = vadd.f32 0.0, %v4967
  %v4969 = vpop.f32.mrf.mxu0
  %v4970 = vadd.f32 0.0, %v4969
  %4971 = vmatprep.mubr.f32.mxu0 %v4656
  %4972 = vmatmul.mubr.f32.gmra.mxu0 %v4468
  %v4973 = vpop.f32.mrf.mxu0
  %v4974 = vadd.f32 0.0, %v4973
  %v4975 = vpop.f32.mrf.mxu0
  %v4976 = vadd.f32 0.0, %v4975
  %4977 = vmatprep.mubr.f32.mxu0 %v4659
  %4978 = vmatmul.mubr.f32.gmra.mxu0 %v4470
  %v4979 = vpop.f32.mrf.mxu0
  %v4980 = vadd.f32 0.0, %v4979
  %v4981 = vpop.f32.mrf.mxu0
  %v4982 = vadd.f32 0.0, %v4981
  %4983 = vmatprep.mubr.f32.mxu0 %v4662
  %4984 = vmatmul.mubr.f32.gmra.mxu0 %v4472
  %v4985 = vpop.f32.mrf.mxu0
  %v4986 = vadd.f32 0.0, %v4985
  %v4987 = vpop.f32.mrf.mxu0
  %v4988 = vadd.f32 0.0, %v4987
  %4989 = vmatprep.mubr.f32.mxu0 %v4665
  %4990 = vmatmul.mubr.f32.gmra.mxu0 %v4474
  %v4991 = vpop.f32.mrf.mxu0
  %v4992 = vadd.f32 0.0, %v4991
  %v4993 = vpop.f32.mrf.mxu0
  %v4994 = vadd.f32 0.0, %v4993
  %4995 = vmatprep.mubr.f32.mxu0 %v4668
  %4996 = vmatmul.mubr.f32.gmra.mxu0 %v4476
  %v4997 = vpop.f32.mrf.mxu0
  %v4998 = vadd.f32 0.0, %v4997
  %v4999 = vpop.f32.mrf.mxu0
  %v5000 = vadd.f32 0.0, %v4999
  %5001 = vmatprep.mubr.f32.mxu0 %v4671
  %5002 = vmatmul.mubr.f32.gmra.mxu0 %v4478
  %v5003 = vpop.f32.mrf.mxu0
  %v5004 = vadd.f32 0.0, %v5003
  %v5005 = vpop.f32.mrf.mxu0
  %v5006 = vadd.f32 0.0, %v5005
  %5007 = vmatprep.mubr.f32.mxu0 %v4674
  %5008 = vmatmul.mubr.f32.gmra.mxu0 %v4480
  %v5009 = vpop.f32.mrf.mxu0
  %v5010 = vadd.f32 0.0, %v5009
  %v5011 = vpop.f32.mrf.mxu0
  %v5012 = vadd.f32 0.0, %v5011
  %5013 = vmatprep.mubr.f32.mxu0 %v4677
  %5014 = vmatmul.mubr.f32.gmra.mxu0 %v4482
  %v5015 = vpop.f32.mrf.mxu0
  %v5016 = vadd.f32 0.0, %v5015
  %v5017 = vpop.f32.mrf.mxu0
  %v5018 = vadd.f32 0.0, %v5017
  %5019 = vmatprep.mubr.f32.mxu0 %v4680
  %5020 = vmatmul.mubr.f32.gmra.mxu0 %v4484
  %v5021 = vpop.f32.mrf.mxu0
  %v5022 = vadd.f32 0.0, %v5021
  %v5023 = vpop.f32.mrf.mxu0
  %v5024 = vadd.f32 0.0, %v5023
  %5025 = vmatprep.mubr.f32.mxu0 %v4683
  %5026 = vmatmul.mubr.f32.gmra.mxu0 %v4486
  %v5027 = vpop.f32.mrf.mxu0
  %v5028 = vadd.f32 0.0, %v5027
  %v5029 = vpop.f32.mrf.mxu0
  %v5030 = vadd.f32 0.0, %v5029
  %5031 = vmatprep.mubr.f32.mxu0 %v4686
  %5032 = vmatmul.mubr.f32.gmra.mxu0 %v4488
  %v5033 = vpop.f32.mrf.mxu0
  %v5034 = vadd.f32 0.0, %v5033
  %v5035 = vpop.f32.mrf.mxu0
  %v5036 = vadd.f32 0.0, %v5035
  %5037 = vmatprep.mubr.f32.mxu0 %v4689
  %5038 = vmatmul.mubr.f32.gmra.mxu0 %v4490
  %v5039 = vpop.f32.mrf.mxu0
  %v5040 = vadd.f32 0.0, %v5039
  %v5041 = vpop.f32.mrf.mxu0
  %v5042 = vadd.f32 0.0, %v5041
  %5043 = vmatprep.mubr.f32.mxu0 %v4692
  %5044 = vmatmul.mubr.f32.gmra.mxu0 %v4492
  %v5045 = vpop.f32.mrf.mxu0
  %v5046 = vadd.f32 0.0, %v5045
  %v5047 = vpop.f32.mrf.mxu0
  %v5048 = vadd.f32 0.0, %v5047
  %5049 = vmatprep.mubr.f32.mxu0 %v4695
  %5050 = vmatmul.mubr.f32.gmra.mxu0 %v4494
  %v5051 = vpop.f32.mrf.mxu0
  %v5052 = vadd.f32 0.0, %v5051
  %v5053 = vpop.f32.mrf.mxu0
  %v5054 = vadd.f32 0.0, %v5053
  %5055 = vmatprep.mubr.f32.mxu0 %v4698
  %5056 = vmatmul.mubr.f32.gmra.mxu0 %v4496
  %v5057 = vpop.f32.mrf.mxu0
  %v5058 = vadd.f32 0.0, %v5057
  %v5059 = vpop.f32.mrf.mxu0
  %v5060 = vadd.f32 0.0, %v5059
  %5061 = vmatprep.mubr.f32.mxu0 %v4701
  %5062 = vmatmul.mubr.f32.gmra.mxu0 %v4498
  %v5063 = vpop.f32.mrf.mxu0
  %v5064 = vadd.f32 0.0, %v5063
  %v5065 = vpop.f32.mrf.mxu0
  %v5066 = vadd.f32 0.0, %v5065
  %5067 = vmatprep.mubr.f32.mxu0 %v4704
  %5068 = vmatmul.mubr.f32.gmra.mxu0 %v4500
  %v5069 = vpop.f32.mrf.mxu0
  %v5070 = vadd.f32 0.0, %v5069
  %v5071 = vpop.f32.mrf.mxu0
  %v5072 = vadd.f32 0.0, %v5071
  %5073 = vmatprep.mubr.f32.mxu0 %v4707
  %5074 = vmatmul.mubr.f32.gmra.mxu0 %v4502
  %v5075 = vpop.f32.mrf.mxu0
  %v5076 = vadd.f32 0.0, %v5075
  %v5077 = vpop.f32.mrf.mxu0
  %v5078 = vadd.f32 0.0, %v5077
  %5079 = vmatprep.mubr.f32.mxu0 %v4710
  %5080 = vmatmul.mubr.f32.gmra.mxu0 %v4504
  %v5081 = vpop.f32.mrf.mxu0
  %v5082 = vadd.f32 0.0, %v5081
  %v5083 = vpop.f32.mrf.mxu0
  %v5084 = vadd.f32 0.0, %v5083
  %5085 = vmatprep.mubr.f32.mxu0 %v4713
  %5086 = vmatmul.mubr.f32.gmra.mxu0 %v4506
  %v5087 = vpop.f32.mrf.mxu0
  %v5088 = vadd.f32 0.0, %v5087
  %v5089 = vpop.f32.mrf.mxu0
  %v5090 = vadd.f32 0.0, %v5089
  %5091 = vmatprep.mubr.f32.mxu0 %v4716
  %5092 = vmatmul.mubr.f32.gmra.mxu0 %v4508
  %v5093 = vpop.f32.mrf.mxu0
  %v5094 = vadd.f32 0.0, %v5093
  %v5095 = vpop.f32.mrf.mxu0
  %v5096 = vadd.f32 0.0, %v5095
  %5097 = vmatprep.mubr.f32.mxu0 %v4719
  %5098 = vmatmul.mubr.f32.gmra.mxu0 %v4510
  %v5099 = vpop.f32.mrf.mxu0
  %v5100 = vadd.f32 0.0, %v5099
  %v5101 = vpop.f32.mrf.mxu0
  %v5102 = vadd.f32 0.0, %v5101
  %5103 = vmatprep.mubr.f32.mxu0 %v4722
  %5104 = vmatmul.mubr.f32.gmra.mxu0 %v4512
  %v5105 = vpop.f32.mrf.mxu0
  %v5106 = vadd.f32 0.0, %v5105
  %v5107 = vpop.f32.mrf.mxu0
  %v5108 = vadd.f32 0.0, %v5107
  %5109 = vmatprep.mubr.f32.mxu0 %v4725
  %5110 = vmatmul.mubr.f32.gmra.mxu0 %v4514
  %v5111 = vpop.f32.mrf.mxu0
  %v5112 = vadd.f32 0.0, %v5111
  %v5113 = vpop.f32.mrf.mxu0
  %v5114 = vadd.f32 0.0, %v5113
  %5115 = vdwg.mxu0
  %v5116 = vld [vmem:[%s7] sm:$0xff]
  %v5117 = vld [vmem:[%s7 + $0x8] sm:$0xff]
  %v5118 = vld [vmem:[%s7 + $0x10] sm:$0x1]
  %v5119 = vld [vmem:[%s7 + $0x18] sm:$0x1]
  %5120 = vrot.lane.b32.xlu0 %v4794, 15
  %v5121 = vpop.permute.xlu0 %5120
  %5122 = vrot.lane.b32.xlu0 %v4800, 15
  %v5123 = vpop.permute.xlu0 %5122
  %5124 = vrot.lane.b32.xlu0 %v4806, 15
  %v5125 = vpop.permute.xlu0 %5124
  %5126 = vrot.lane.b32.xlu0 %v4812, 15
  %v5127 = vpop.permute.xlu0 %5126
  %5128 = vrot.lane.b32.xlu0 %v4818, 15
  %v5129 = vpop.permute.xlu0 %5128
  %5130 = vrot.lane.b32.xlu0 %v4824, 15
  %v5131 = vpop.permute.xlu0 %5130
  %5132 = vrot.lane.b32.xlu0 %v4796, 15
  %v5133 = vpop.permute.xlu0 %5132
  %5134 = vrot.lane.b32.xlu0 %v4802, 15
  %v5135 = vpop.permute.xlu0 %5134
  %5136 = vrot.lane.b32.xlu0 %v4808, 15
  %v5137 = vpop.permute.xlu0 %5136
  %5138 = vrot.lane.b32.xlu0 %v4814, 15
  %v5139 = vpop.permute.xlu0 %5138
  %5140 = vrot.lane.b32.xlu0 %v4820, 15
  %v5141 = vpop.permute.xlu0 %5140
  %5142 = vrot.lane.b32.xlu0 %v4826, 15
  %v5143 = vpop.permute.xlu0 %5142
  %v5144 = vlaneseq
  %v5145 = vand.u32 %v5144, 127
  %vm5146 = vcmp.lt.s32.totalorder %v5145, 15
  %v5147 = vsel %vm5146, %v5121, %v5133
  %v5148 = vsel %vm5146, %v5123, %v5135
  %v5149 = vsel %vm5146, %v5125, %v5137
  %v5150 = vsel %vm5146, %v5127, %v5139
  %v5151 = vsel %vm5146, %v5129, %v5141
  %v5152 = vsel %vm5146, %v5131, %v5143
  %v5153 = vsel %vm5146, %v5133, %v5121
  %v5154 = vsel %vm5146, %v5135, %v5123
  %v5155 = vsel %vm5146, %v5137, %v5125
  %v5156 = vsel %vm5146, %v5139, %v5127
  %v5157 = vsel %vm5146, %v5141, %v5129
  %v5158 = vsel %vm5146, %v5143, %v5131
  %v5159 = vlaneseq
  %v5160 = vshrl.u32 %v5159, 7
  %v5161 = vsub.s32 0, %v5160
  %v5162 = vrot.slane %v5116, %v5161
  %v5163 = vlaneseq
  %v5164 = vshrl.u32 %v5163, 7
  %v5165 = vsub.s32 0, %v5164
  %v5166 = vrot.slane %v5117, %v5165
  %v5167 = vmul.f32 %v5153, %v5162
  %v5168 = vmul.f32 %v5147, %v5166
  %v5169 = vmul.f32 %v5154, %v5162
  %v5170 = vmul.f32 %v5148, %v5166
  %v5171 = vmul.f32 %v5155, %v5162
  %v5172 = vmul.f32 %v5149, %v5166
  %v5173 = vmul.f32 %v5156, %v5162
  %v5174 = vmul.f32 %v5150, %v5166
  %v5175 = vmul.f32 %v5157, %v5162
  %v5176 = vmul.f32 %v5151, %v5166
  %v5177 = vmul.f32 %v5158, %v5162
  %v5178 = vmul.f32 %v5152, %v5166
  %v5179 = vadd.f32 %v4938, %v5167
  %v5180 = vadd.f32 %v4940, %v5168
  %v5181 = vadd.f32 %v4944, %v5169
  %v5182 = vadd.f32 %v4946, %v5170
  %v5183 = vadd.f32 %v4950, %v5171
  %v5184 = vadd.f32 %v4952, %v5172
  %v5185 = vadd.f32 %v4956, %v5173
  %v5186 = vadd.f32 %v4958, %v5174
  %v5187 = vadd.f32 %v4962, %v5175
  %v5188 = vadd.f32 %v4964, %v5176
  %v5189 = vadd.f32 %v4968, %v5177
  %v5190 = vadd.f32 %v4970, %v5178
  %5191 = vrot.lane.b32.xlu0 %v4830, 14
  %v5192 = vpop.permute.xlu0 %5191
  %5193 = vrot.lane.b32.xlu0 %v4836, 14
  %v5194 = vpop.permute.xlu0 %5193
  %5195 = vrot.lane.b32.xlu0 %v4842, 14
  %v5196 = vpop.permute.xlu0 %5195
  %5197 = vrot.lane.b32.xlu0 %v4848, 14
  %v5198 = vpop.permute.xlu0 %5197
  %5199 = vrot.lane.b32.xlu0 %v4854, 14
  %v5200 = vpop.permute.xlu0 %5199
  %5201 = vrot.lane.b32.xlu0 %v4860, 14
  %v5202 = vpop.permute.xlu0 %5201
  %5203 = vrot.lane.b32.xlu0 %v4832, 14
  %v5204 = vpop.permute.xlu0 %5203
  %5205 = vrot.lane.b32.xlu0 %v4838, 14
  %v5206 = vpop.permute.xlu0 %5205
  %5207 = vrot.lane.b32.xlu0 %v4844, 14
  %v5208 = vpop.permute.xlu0 %5207
  %5209 = vrot.lane.b32.xlu0 %v4850, 14
  %v5210 = vpop.permute.xlu0 %5209
  %5211 = vrot.lane.b32.xlu0 %v4856, 14
  %v5212 = vpop.permute.xlu0 %5211
  %5213 = vrot.lane.b32.xlu0 %v4862, 14
  %v5214 = vpop.permute.xlu0 %5213
  %vm5215 = vcmp.lt.s32.totalorder %v5145, 14
  %v5216 = vsel %vm5215, %v5192, %v5204
  %v5217 = vsel %vm5215, %v5194, %v5206
  %v5218 = vsel %vm5215, %v5196, %v5208
  %v5219 = vsel %vm5215, %v5198, %v5210
  %v5220 = vsel %vm5215, %v5200, %v5212
  %v5221 = vsel %vm5215, %v5202, %v5214
  %v5222 = vsel %vm5215, %v5204, %v5192
  %v5223 = vsel %vm5215, %v5206, %v5194
  %v5224 = vsel %vm5215, %v5208, %v5196
  %v5225 = vsel %vm5215, %v5210, %v5198
  %v5226 = vsel %vm5215, %v5212, %v5200
  %v5227 = vsel %vm5215, %v5214, %v5202
  %v5228 = vlaneseq
  %v5229 = vshrl.u32 %v5228, 7
  %v5230 = vsub.s32 1, %v5229
  %v5231 = vrot.slane %v5116, %v5230
  %v5232 = vlaneseq
  %v5233 = vshrl.u32 %v5232, 7
  %v5234 = vsub.s32 1, %v5233
  %v5235 = vrot.slane %v5117, %v5234
  %v5236 = vmul.f32 %v5222, %v5231
  %v5237 = vmul.f32 %v5216, %v5235
  %v5238 = vmul.f32 %v5223, %v5231
  %v5239 = vmul.f32 %v5217, %v5235
  %v5240 = vmul.f32 %v5224, %v5231
  %v5241 = vmul.f32 %v5218, %v5235
  %v5242 = vmul.f32 %v5225, %v5231
  %v5243 = vmul.f32 %v5219, %v5235
  %v5244 = vmul.f32 %v5226, %v5231
  %v5245 = vmul.f32 %v5220, %v5235
  %v5246 = vmul.f32 %v5227, %v5231
  %v5247 = vmul.f32 %v5221, %v5235
  %v5248 = vadd.f32 %v5179, %v5236
  %v5249 = vadd.f32 %v5180, %v5237
  %v5250 = vadd.f32 %v5181, %v5238
  %v5251 = vadd.f32 %v5182, %v5239
  %v5252 = vadd.f32 %v5183, %v5240
  %v5253 = vadd.f32 %v5184, %v5241
  %v5254 = vadd.f32 %v5185, %v5242
  %v5255 = vadd.f32 %v5186, %v5243
  %v5256 = vadd.f32 %v5187, %v5244
  %v5257 = vadd.f32 %v5188, %v5245
  %v5258 = vadd.f32 %v5189, %v5246
  %v5259 = vadd.f32 %v5190, %v5247
  %5260 = vrot.lane.b32.xlu0 %v4866, 13
  %v5261 = vpop.permute.xlu0 %5260
  %5262 = vrot.lane.b32.xlu0 %v4872, 13
  %v5263 = vpop.permute.xlu0 %5262
  %5264 = vrot.lane.b32.xlu0 %v4878, 13
  %v5265 = vpop.permute.xlu0 %5264
  %5266 = vrot.lane.b32.xlu0 %v4884, 13
  %v5267 = vpop.permute.xlu0 %5266
  %5268 = vrot.lane.b32.xlu0 %v4890, 13
  %v5269 = vpop.permute.xlu0 %5268
  %5270 = vrot.lane.b32.xlu0 %v4896, 13
  %v5271 = vpop.permute.xlu0 %5270
  %5272 = vrot.lane.b32.xlu0 %v4868, 13
  %v5273 = vpop.permute.xlu0 %5272
  %5274 = vrot.lane.b32.xlu0 %v4874, 13
  %v5275 = vpop.permute.xlu0 %5274
  %5276 = vrot.lane.b32.xlu0 %v4880, 13
  %v5277 = vpop.permute.xlu0 %5276
  %5278 = vrot.lane.b32.xlu0 %v4886, 13
  %v5279 = vpop.permute.xlu0 %5278
  %5280 = vrot.lane.b32.xlu0 %v4892, 13
  %v5281 = vpop.permute.xlu0 %5280
  %5282 = vrot.lane.b32.xlu0 %v4898, 13
  %v5283 = vpop.permute.xlu0 %5282
  %vm5284 = vcmp.lt.s32.totalorder %v5145, 13
  %v5285 = vsel %vm5284, %v5261, %v5273
  %v5286 = vsel %vm5284, %v5263, %v5275
  %v5287 = vsel %vm5284, %v5265, %v5277
  %v5288 = vsel %vm5284, %v5267, %v5279
  %v5289 = vsel %vm5284, %v5269, %v5281
  %v5290 = vsel %vm5284, %v5271, %v5283
  %v5291 = vsel %vm5284, %v5273, %v5261
  %v5292 = vsel %vm5284, %v5275, %v5263
  %v5293 = vsel %vm5284, %v5277, %v5265
  %v5294 = vsel %vm5284, %v5279, %v5267
  %v5295 = vsel %vm5284, %v5281, %v5269
  %v5296 = vsel %vm5284, %v5283, %v5271
  %v5297 = vlaneseq
  %v5298 = vshrl.u32 %v5297, 7
  %v5299 = vsub.s32 2, %v5298
  %v5300 = vrot.slane %v5116, %v5299
  %v5301 = vlaneseq
  %v5302 = vshrl.u32 %v5301, 7
  %v5303 = vsub.s32 2, %v5302
  %v5304 = vrot.slane %v5117, %v5303
  %v5305 = vmul.f32 %v5291, %v5300
  %v5306 = vmul.f32 %v5285, %v5304
  %v5307 = vmul.f32 %v5292, %v5300
  %v5308 = vmul.f32 %v5286, %v5304
  %v5309 = vmul.f32 %v5293, %v5300
  %v5310 = vmul.f32 %v5287, %v5304
  %v5311 = vmul.f32 %v5294, %v5300
  %v5312 = vmul.f32 %v5288, %v5304
  %v5313 = vmul.f32 %v5295, %v5300
  %v5314 = vmul.f32 %v5289, %v5304
  %v5315 = vmul.f32 %v5296, %v5300
  %v5316 = vmul.f32 %v5290, %v5304
  %v5317 = vadd.f32 %v5248, %v5305
  %v5318 = vadd.f32 %v5249, %v5306
  %v5319 = vadd.f32 %v5250, %v5307
  %v5320 = vadd.f32 %v5251, %v5308
  %v5321 = vadd.f32 %v5252, %v5309
  %v5322 = vadd.f32 %v5253, %v5310
  %v5323 = vadd.f32 %v5254, %v5311
  %v5324 = vadd.f32 %v5255, %v5312
  %v5325 = vadd.f32 %v5256, %v5313
  %v5326 = vadd.f32 %v5257, %v5314
  %v5327 = vadd.f32 %v5258, %v5315
  %v5328 = vadd.f32 %v5259, %v5316
  %5329 = vrot.lane.b32.xlu0 %v4902, 1
  %v5330 = vpop.permute.xlu0 %5329
  %5331 = vrot.lane.b32.xlu0 %v4908, 1
  %v5332 = vpop.permute.xlu0 %5331
  %5333 = vrot.lane.b32.xlu0 %v4914, 1
  %v5334 = vpop.permute.xlu0 %5333
  %5335 = vrot.lane.b32.xlu0 %v4920, 1
  %v5336 = vpop.permute.xlu0 %5335
  %5337 = vrot.lane.b32.xlu0 %v4926, 1
  %v5338 = vpop.permute.xlu0 %5337
  %5339 = vrot.lane.b32.xlu0 %v4932, 1
  %v5340 = vpop.permute.xlu0 %5339
  %5341 = vrot.lane.b32.xlu0 %v4904, 1
  %v5342 = vpop.permute.xlu0 %5341
  %5343 = vrot.lane.b32.xlu0 %v4910, 1
  %v5344 = vpop.permute.xlu0 %5343
  %5345 = vrot.lane.b32.xlu0 %v4916, 1
  %v5346 = vpop.permute.xlu0 %5345
  %5347 = vrot.lane.b32.xlu0 %v4922, 1
  %v5348 = vpop.permute.xlu0 %5347
  %5349 = vrot.lane.b32.xlu0 %v4928, 1
  %v5350 = vpop.permute.xlu0 %5349
  %5351 = vrot.lane.b32.xlu0 %v4934, 1
  %v5352 = vpop.permute.xlu0 %5351
  %vm5353 = vcmp.lt.s32.totalorder %v5145, 1
  %v5354 = vsel %vm5353, %v5330, %v5342
  %v5355 = vsel %vm5353, %v5332, %v5344
  %v5356 = vsel %vm5353, %v5334, %v5346
  %v5357 = vsel %vm5353, %v5336, %v5348
  %v5358 = vsel %vm5353, %v5338, %v5350
  %v5359 = vsel %vm5353, %v5340, %v5352
  %v5360 = vsel %vm5353, %v5342, %v5330
  %v5361 = vsel %vm5353, %v5344, %v5332
  %v5362 = vsel %vm5353, %v5346, %v5334
  %v5363 = vsel %vm5353, %v5348, %v5336
  %v5364 = vsel %vm5353, %v5350, %v5338
  %v5365 = vsel %vm5353, %v5352, %v5340
  %v5366 = vlaneseq
  %v5367 = vshrl.u32 %v5366, 7
  %v5368 = vsub.s32 3, %v5367
  %v5369 = vrot.slane %v5116, %v5368
  %v5370 = vlaneseq
  %v5371 = vshrl.u32 %v5370, 7
  %v5372 = vsub.s32 3, %v5371
  %v5373 = vrot.slane %v5117, %v5372
  %v5374 = vmul.f32 %v5360, %v5369
  %v5375 = vmul.f32 %v5354, %v5373
  %v5376 = vmul.f32 %v5361, %v5369
  %v5377 = vmul.f32 %v5355, %v5373
  %v5378 = vmul.f32 %v5362, %v5369
  %v5379 = vmul.f32 %v5356, %v5373
  %v5380 = vmul.f32 %v5363, %v5369
  %v5381 = vmul.f32 %v5357, %v5373
  %v5382 = vmul.f32 %v5364, %v5369
  %v5383 = vmul.f32 %v5358, %v5373
  %v5384 = vmul.f32 %v5365, %v5369
  %v5385 = vmul.f32 %v5359, %v5373
  %v5386 = vadd.f32 %v5317, %v5374
  %v5387 = vadd.f32 %v5318, %v5375
  %v5388 = vadd.f32 %v5319, %v5376
  %v5389 = vadd.f32 %v5320, %v5377
  %v5390 = vadd.f32 %v5321, %v5378
  %v5391 = vadd.f32 %v5322, %v5379
  %v5392 = vadd.f32 %v5323, %v5380
  %v5393 = vadd.f32 %v5324, %v5381
  %v5394 = vadd.f32 %v5325, %v5382
  %v5395 = vadd.f32 %v5326, %v5383
  %v5396 = vadd.f32 %v5327, %v5384
  %v5397 = vadd.f32 %v5328, %v5385
  %5398 = vrot.lane.b32.xlu0 %v4974, 127
  %v5399 = vpop.permute.xlu0 %5398
  %5400 = vrot.lane.b32.xlu0 %v4980, 127
  %v5401 = vpop.permute.xlu0 %5400
  %5402 = vrot.lane.b32.xlu0 %v4986, 127
  %v5403 = vpop.permute.xlu0 %5402
  %5404 = vrot.lane.b32.xlu0 %v4992, 127
  %v5405 = vpop.permute.xlu0 %5404
  %5406 = vrot.lane.b32.xlu0 %v4998, 127
  %v5407 = vpop.permute.xlu0 %5406
  %5408 = vrot.lane.b32.xlu0 %v5004, 127
  %v5409 = vpop.permute.xlu0 %5408
  %5410 = vrot.lane.b32.xlu0 %v4976, 127
  %v5411 = vpop.permute.xlu0 %5410
  %5412 = vrot.lane.b32.xlu0 %v4982, 127
  %v5413 = vpop.permute.xlu0 %5412
  %5414 = vrot.lane.b32.xlu0 %v4988, 127
  %v5415 = vpop.permute.xlu0 %5414
  %5416 = vrot.lane.b32.xlu0 %v4994, 127
  %v5417 = vpop.permute.xlu0 %5416
  %5418 = vrot.lane.b32.xlu0 %v5000, 127
  %v5419 = vpop.permute.xlu0 %5418
  %5420 = vrot.lane.b32.xlu0 %v5006, 127
  %v5421 = vpop.permute.xlu0 %5420
  %vm5422 = vcmp.lt.s32.totalorder %v5145, 127
  %v5423 = vsel %vm5422, %v5399, %v5411
  %v5424 = vsel %vm5422, %v5401, %v5413
  %v5425 = vsel %vm5422, %v5403, %v5415
  %v5426 = vsel %vm5422, %v5405, %v5417
  %v5427 = vsel %vm5422, %v5407, %v5419
  %v5428 = vsel %vm5422, %v5409, %v5421
  %v5429 = vsel %vm5422, %v5411, %v5399
  %v5430 = vsel %vm5422, %v5413, %v5401
  %v5431 = vsel %vm5422, %v5415, %v5403
  %v5432 = vsel %vm5422, %v5417, %v5405
  %v5433 = vsel %vm5422, %v5419, %v5407
  %v5434 = vsel %vm5422, %v5421, %v5409
  %v5435 = vlaneseq
  %v5436 = vshrl.u32 %v5435, 7
  %v5437 = vsub.s32 5, %v5436
  %v5438 = vrot.slane %v5116, %v5437
  %v5439 = vlaneseq
  %v5440 = vshrl.u32 %v5439, 7
  %v5441 = vsub.s32 5, %v5440
  %v5442 = vrot.slane %v5117, %v5441
  %v5443 = vmul.f32 %v5423, %v5438
  %v5444 = vmul.f32 %v5429, %v5442
  %v5445 = vmul.f32 %v5424, %v5438
  %v5446 = vmul.f32 %v5430, %v5442
  %v5447 = vmul.f32 %v5425, %v5438
  %v5448 = vmul.f32 %v5431, %v5442
  %v5449 = vmul.f32 %v5426, %v5438
  %v5450 = vmul.f32 %v5432, %v5442
  %v5451 = vmul.f32 %v5427, %v5438
  %v5452 = vmul.f32 %v5433, %v5442
  %v5453 = vmul.f32 %v5428, %v5438
  %v5454 = vmul.f32 %v5434, %v5442
  %v5455 = vadd.f32 %v5386, %v5443
  %v5456 = vadd.f32 %v5387, %v5444
  %v5457 = vadd.f32 %v5388, %v5445
  %v5458 = vadd.f32 %v5389, %v5446
  %v5459 = vadd.f32 %v5390, %v5447
  %v5460 = vadd.f32 %v5391, %v5448
  %v5461 = vadd.f32 %v5392, %v5449
  %v5462 = vadd.f32 %v5393, %v5450
  %v5463 = vadd.f32 %v5394, %v5451
  %v5464 = vadd.f32 %v5395, %v5452
  %v5465 = vadd.f32 %v5396, %v5453
  %v5466 = vadd.f32 %v5397, %v5454
  %5467 = vrot.lane.b32.xlu0 %v5010, 115
  %v5468 = vpop.permute.xlu0 %5467
  %5469 = vrot.lane.b32.xlu0 %v5016, 115
  %v5470 = vpop.permute.xlu0 %5469
  %5471 = vrot.lane.b32.xlu0 %v5022, 115
  %v5472 = vpop.permute.xlu0 %5471
  %5473 = vrot.lane.b32.xlu0 %v5028, 115
  %v5474 = vpop.permute.xlu0 %5473
  %5475 = vrot.lane.b32.xlu0 %v5034, 115
  %v5476 = vpop.permute.xlu0 %5475
  %5477 = vrot.lane.b32.xlu0 %v5040, 115
  %v5478 = vpop.permute.xlu0 %5477
  %5479 = vrot.lane.b32.xlu0 %v5012, 115
  %v5480 = vpop.permute.xlu0 %5479
  %5481 = vrot.lane.b32.xlu0 %v5018, 115
  %v5482 = vpop.permute.xlu0 %5481
  %5483 = vrot.lane.b32.xlu0 %v5024, 115
  %v5484 = vpop.permute.xlu0 %5483
  %5485 = vrot.lane.b32.xlu0 %v5030, 115
  %v5486 = vpop.permute.xlu0 %5485
  %5487 = vrot.lane.b32.xlu0 %v5036, 115
  %v5488 = vpop.permute.xlu0 %5487
  %5489 = vrot.lane.b32.xlu0 %v5042, 115
  %v5490 = vpop.permute.xlu0 %5489
  %vm5491 = vcmp.lt.s32.totalorder %v5145, 115
  %v5492 = vsel %vm5491, %v5468, %v5480
  %v5493 = vsel %vm5491, %v5470, %v5482
  %v5494 = vsel %vm5491, %v5472, %v5484
  %v5495 = vsel %vm5491, %v5474, %v5486
  %v5496 = vsel %vm5491, %v5476, %v5488
  %v5497 = vsel %vm5491, %v5478, %v5490
  %v5498 = vsel %vm5491, %v5480, %v5468
  %v5499 = vsel %vm5491, %v5482, %v5470
  %v5500 = vsel %vm5491, %v5484, %v5472
  %v5501 = vsel %vm5491, %v5486, %v5474
  %v5502 = vsel %vm5491, %v5488, %v5476
  %v5503 = vsel %vm5491, %v5490, %v5478
  %v5504 = vlaneseq
  %v5505 = vshrl.u32 %v5504, 7
  %v5506 = vsub.s32 6, %v5505
  %v5507 = vrot.slane %v5116, %v5506
  %v5508 = vlaneseq
  %v5509 = vshrl.u32 %v5508, 7
  %v5510 = vsub.s32 6, %v5509
  %v5511 = vrot.slane %v5117, %v5510
  %v5512 = vmul.f32 %v5492, %v5507
  %v5513 = vmul.f32 %v5498, %v5511
  %v5514 = vmul.f32 %v5493, %v5507
  %v5515 = vmul.f32 %v5499, %v5511
  %v5516 = vmul.f32 %v5494, %v5507
  %v5517 = vmul.f32 %v5500, %v5511
  %v5518 = vmul.f32 %v5495, %v5507
  %v5519 = vmul.f32 %v5501, %v5511
  %v5520 = vmul.f32 %v5496, %v5507
  %v5521 = vmul.f32 %v5502, %v5511
  %v5522 = vmul.f32 %v5497, %v5507
  %v5523 = vmul.f32 %v5503, %v5511
  %v5524 = vadd.f32 %v5455, %v5512
  %v5525 = vadd.f32 %v5456, %v5513
  %v5526 = vadd.f32 %v5457, %v5514
  %v5527 = vadd.f32 %v5458, %v5515
  %v5528 = vadd.f32 %v5459, %v5516
  %v5529 = vadd.f32 %v5460, %v5517
  %v5530 = vadd.f32 %v5461, %v5518
  %v5531 = vadd.f32 %v5462, %v5519
  %v5532 = vadd.f32 %v5463, %v5520
  %v5533 = vadd.f32 %v5464, %v5521
  %v5534 = vadd.f32 %v5465, %v5522
  %v5535 = vadd.f32 %v5466, %v5523
  %5536 = vrot.lane.b32.xlu0 %v5046, 114
  %v5537 = vpop.permute.xlu0 %5536
  %5538 = vrot.lane.b32.xlu0 %v5052, 114
  %v5539 = vpop.permute.xlu0 %5538
  %5540 = vrot.lane.b32.xlu0 %v5058, 114
  %v5541 = vpop.permute.xlu0 %5540
  %5542 = vrot.lane.b32.xlu0 %v5064, 114
  %v5543 = vpop.permute.xlu0 %5542
  %5544 = vrot.lane.b32.xlu0 %v5070, 114
  %v5545 = vpop.permute.xlu0 %5544
  %5546 = vrot.lane.b32.xlu0 %v5076, 114
  %v5547 = vpop.permute.xlu0 %5546
  %5548 = vrot.lane.b32.xlu0 %v5048, 114
  %v5549 = vpop.permute.xlu0 %5548
  %5550 = vrot.lane.b32.xlu0 %v5054, 114
  %v5551 = vpop.permute.xlu0 %5550
  %5552 = vrot.lane.b32.xlu0 %v5060, 114
  %v5553 = vpop.permute.xlu0 %5552
  %5554 = vrot.lane.b32.xlu0 %v5066, 114
  %v5555 = vpop.permute.xlu0 %5554
  %5556 = vrot.lane.b32.xlu0 %v5072, 114
  %v5557 = vpop.permute.xlu0 %5556
  %5558 = vrot.lane.b32.xlu0 %v5078, 114
  %v5559 = vpop.permute.xlu0 %5558
  %vm5560 = vcmp.lt.s32.totalorder %v5145, 114
  %v5561 = vsel %vm5560, %v5537, %v5549
  %v5562 = vsel %vm5560, %v5539, %v5551
  %v5563 = vsel %vm5560, %v5541, %v5553
  %v5564 = vsel %vm5560, %v5543, %v5555
  %v5565 = vsel %vm5560, %v5545, %v5557
  %v5566 = vsel %vm5560, %v5547, %v5559
  %v5567 = vsel %vm5560, %v5549, %v5537
  %v5568 = vsel %vm5560, %v5551, %v5539
  %v5569 = vsel %vm5560, %v5553, %v5541
  %v5570 = vsel %vm5560, %v5555, %v5543
  %v5571 = vsel %vm5560, %v5557, %v5545
  %v5572 = vsel %vm5560, %v5559, %v5547
  %v5573 = vlaneseq
  %v5574 = vshrl.u32 %v5573, 7
  %v5575 = vsub.s32 7, %v5574
  %v5576 = vrot.slane %v5116, %v5575
  %v5577 = vlaneseq
  %v5578 = vshrl.u32 %v5577, 7
  %v5579 = vsub.s32 7, %v5578
  %v5580 = vrot.slane %v5117, %v5579
  %v5581 = vmul.f32 %v5561, %v5576
  %v5582 = vmul.f32 %v5567, %v5580
  %v5583 = vmul.f32 %v5562, %v5576
  %v5584 = vmul.f32 %v5568, %v5580
  %v5585 = vmul.f32 %v5563, %v5576
  %v5586 = vmul.f32 %v5569, %v5580
  %v5587 = vmul.f32 %v5564, %v5576
  %v5588 = vmul.f32 %v5570, %v5580
  %v5589 = vmul.f32 %v5565, %v5576
  %v5590 = vmul.f32 %v5571, %v5580
  %v5591 = vmul.f32 %v5566, %v5576
  %v5592 = vmul.f32 %v5572, %v5580
  %v5593 = vadd.f32 %v5524, %v5581
  %v5594 = vadd.f32 %v5525, %v5582
  %v5595 = vadd.f32 %v5526, %v5583
  %v5596 = vadd.f32 %v5527, %v5584
  %v5597 = vadd.f32 %v5528, %v5585
  %v5598 = vadd.f32 %v5529, %v5586
  %v5599 = vadd.f32 %v5530, %v5587
  %v5600 = vadd.f32 %v5531, %v5588
  %v5601 = vadd.f32 %v5532, %v5589
  %v5602 = vadd.f32 %v5533, %v5590
  %v5603 = vadd.f32 %v5534, %v5591
  %v5604 = vadd.f32 %v5535, %v5592
  %5605 = vrot.lane.b32.xlu0 %v5082, 113
  %v5606 = vpop.permute.xlu0 %5605
  %5607 = vrot.lane.b32.xlu0 %v5088, 113
  %v5608 = vpop.permute.xlu0 %5607
  %5609 = vrot.lane.b32.xlu0 %v5094, 113
  %v5610 = vpop.permute.xlu0 %5609
  %5611 = vrot.lane.b32.xlu0 %v5100, 113
  %v5612 = vpop.permute.xlu0 %5611
  %5613 = vrot.lane.b32.xlu0 %v5106, 113
  %v5614 = vpop.permute.xlu0 %5613
  %5615 = vrot.lane.b32.xlu0 %v5112, 113
  %v5616 = vpop.permute.xlu0 %5615
  %5617 = vrot.lane.b32.xlu0 %v5084, 113
  %v5618 = vpop.permute.xlu0 %5617
  %5619 = vrot.lane.b32.xlu0 %v5090, 113
  %v5620 = vpop.permute.xlu0 %5619
  %5621 = vrot.lane.b32.xlu0 %v5096, 113
  %v5622 = vpop.permute.xlu0 %5621
  %5623 = vrot.lane.b32.xlu0 %v5102, 113
  %v5624 = vpop.permute.xlu0 %5623
  %5625 = vrot.lane.b32.xlu0 %v5108, 113
  %v5626 = vpop.permute.xlu0 %5625
  %5627 = vrot.lane.b32.xlu0 %v5114, 113
  %v5628 = vpop.permute.xlu0 %5627
  %vm5629 = vcmp.lt.s32.totalorder %v5145, 113
  %v5630 = vsel %vm5629, %v5606, %v5618
  %v5631 = vsel %vm5629, %v5608, %v5620
  %v5632 = vsel %vm5629, %v5610, %v5622
  %v5633 = vsel %vm5629, %v5612, %v5624
  %v5634 = vsel %vm5629, %v5614, %v5626
  %v5635 = vsel %vm5629, %v5616, %v5628
  %v5636 = vsel %vm5629, %v5618, %v5606
  %v5637 = vsel %vm5629, %v5620, %v5608
  %v5638 = vsel %vm5629, %v5622, %v5610
  %v5639 = vsel %vm5629, %v5624, %v5612
  %v5640 = vsel %vm5629, %v5626, %v5614
  %v5641 = vsel %vm5629, %v5628, %v5616
  %v5642 = vlaneseq
  %v5643 = vshrl.u32 %v5642, 7
  %v5644 = vsub.s32 0, %v5643
  %v5645 = vrot.slane %v5118, %v5644
  %v5646 = vlaneseq
  %v5647 = vshrl.u32 %v5646, 7
  %v5648 = vsub.s32 0, %v5647
  %v5649 = vrot.slane %v5119, %v5648
  %v5650 = vmul.f32 %v5630, %v5645
  %v5651 = vmul.f32 %v5636, %v5649
  %v5652 = vmul.f32 %v5631, %v5645
  %v5653 = vmul.f32 %v5637, %v5649
  %v5654 = vmul.f32 %v5632, %v5645
  %v5655 = vmul.f32 %v5638, %v5649
  %v5656 = vmul.f32 %v5633, %v5645
  %v5657 = vmul.f32 %v5639, %v5649
  %v5658 = vmul.f32 %v5634, %v5645
  %v5659 = vmul.f32 %v5640, %v5649
  %v5660 = vmul.f32 %v5635, %v5645
  %v5661 = vmul.f32 %v5641, %v5649
  %v5662 = vadd.f32 %v5593, %v5650
  %v5663 = vadd.f32 %v5594, %v5651
  %v5664 = vadd.f32 %v5595, %v5652
  %v5665 = vadd.f32 %v5596, %v5653
  %v5666 = vadd.f32 %v5597, %v5654
  %v5667 = vadd.f32 %v5598, %v5655
  %v5668 = vadd.f32 %v5599, %v5656
  %v5669 = vadd.f32 %v5600, %v5657
  %v5670 = vadd.f32 %v5601, %v5658
  %v5671 = vadd.f32 %v5602, %v5659
  %v5672 = vadd.f32 %v5603, %v5660
  %v5673 = vadd.f32 %v5604, %v5661
  %5674 = vst [vmem:[%s8] sm:$0xff] %v5662
  %5675 = vst [vmem:[%s8 + $0x8] sm:$0xff] %v5663
  %5676 = vst [vmem:[%s8 + $0x10] sm:$0xff] %v5664
  %5677 = vst [vmem:[%s8 + $0x18] sm:$0xff] %v5665
  %5678 = vst [vmem:[%s8 + $0x20] sm:$0xff] %v5666
  %5679 = vst [vmem:[%s8 + $0x28] sm:$0xff] %v5667
  %5680 = vst [vmem:[%s8 + $0x30] sm:$0xff] %v5668
  %5681 = vst [vmem:[%s8 + $0x38] sm:$0xff] %v5669
  %5682 = vst [vmem:[%s8 + $0x40] sm:$0xff] %v5670
  %5683 = vst [vmem:[%s8 + $0x48] sm:$0xff] %v5671
  %5684 = vst [vmem:[%s8 + $0x50] sm:$0xff] %v5672
  %5685 = vst [vmem:[%s8 + $0x58] sm:$0xff] %v5673
  // Predicated region
  $region34: #{model_forward.1} parent=0 // pred_check
    _
  $region35: #{model_forward.1} parent=0 // pred_check_branch
    %5687 = sbr.rel (0) target = $region37
  $region36: #{model_forward.1} parent=0 // pred_region
    _
  $region37: #{model_forward.1} parent=0 // pred_fallthru
    _
  // Predicated region
  $region38: #{model_forward.1} parent=0 // pred_check
    _
  $region39: #{model_forward.1} parent=0 // pred_check_branch
    %5689 = sbr.rel (0) target = $region41
  $region40: #{model_forward.1} parent=0 // pred_region
    _
  $region41: #{model_forward.1} parent=0 // pred_fallthru
    _

</llo_original>
